<compile_context>
chip_gen: v7x
topology: tpu7x:2x2x1
jax: 0.10.0
libtpu: 0.0.40
codegen_flags: <defaults>
</compile_context>

<pallas_src>
import functools

import jax
import jax.numpy as jnp
import numpy as np
from jax import lax
from jax.experimental import pallas as pl
from jax.experimental.pallas import tpu as pltpu

LANES = 128
GROUP = 32            # lanes per pool-offset group (4 groups x 32 = 128)
NS = 8                # samples per stage-2 grid block (FC rows padded to 8)
S2 = 25               # 5x5 pooled spatial positions after conv2
C2 = 16               # conv2 output channels
FEAT = C2 * S2        # 400 = fc1 input features (PyTorch NCHW flatten order)
FEAT_PAD = 512        # 400 padded to a lane multiple
F2PAD = 640           # 4*25*6 = 600 padded to a lane multiple


def _round_up(x, m):
    return (x + m - 1) // m * m


def _pad_lanes(a, width=LANES):
    return jnp.pad(a, ((0, 0), (0, width - a.shape[1])))


# ---------------------------------------------------------------------------
# Pallas kernels
# ---------------------------------------------------------------------------
def _conv_pool_relu_kernel(p_ref, w_ref, b_ref, o_ref):
    """One M-tile of: conv (all 4 pool offsets in 4 lane groups via the
    block-diagonal weight) -> pool max across lane groups (XLU rolls) ->
    bias + ReLU.  Output stays 128-lane dense (unmasked vst)."""
    z = jnp.dot(p_ref[...], w_ref[...], preferred_element_type=jnp.float32)
    z = jnp.maximum(z, pltpu.roll(z, shift=2 * GROUP, axis=1))
    z = jnp.maximum(z, pltpu.roll(z, shift=GROUP, axis=1))
    # relu(max_j(z_j) + b) == max_j(relu(z_j + b)); bias only in lanes [0, Cout)
    o_ref[...] = jnp.maximum(z + b_ref[...], 0.0)


def conv_relu_pool(p, wbd, bpad, tm):
    """Stage 1: conv1 + ReLU + 2x2 maxpool for the whole batch, M-tiled grid."""
    mp, fpad = p.shape
    return pl.pallas_call(
        _conv_pool_relu_kernel,
        out_shape=jax.ShapeDtypeStruct((mp, LANES), jnp.float32),
        grid=(mp // tm,),
        in_specs=[
            pl.BlockSpec((tm, fpad), lambda i: (i, 0)),
            pl.BlockSpec((fpad, LANES), lambda i: (0, 0)),
            pl.BlockSpec((1, LANES), lambda i: (0, 0)),
        ],
        out_specs=pl.BlockSpec((tm, LANES), lambda i: (i, 0)),
        compiler_params=pltpu.CompilerParams(
            dimension_semantics=("parallel",)),
    )(p, wbd, bpad)


def _stage2_kernel(p_ref, wbd_ref, bc_ref, pexp_ref, mask_ref, sel_ref,
                   w1_ref, b1_ref, w2_ref, b2_ref, o_ref):
    """Fused: conv2 + pool + bias + ReLU + NCHW flatten + fc1 + ReLU + fc2
    for one block of NS samples (NS*25 patch rows)."""
    z = jnp.dot(p_ref[...], wbd_ref[...], preferred_element_type=jnp.float32)
    z = jnp.maximum(z, pltpu.roll(z, shift=2 * GROUP, axis=1))
    z = jnp.maximum(z, pltpu.roll(z, shift=GROUP, axis=1))
    a = jnp.maximum(z + bc_ref[...], 0.0)                 # (NS*25, 128)
    # NCHW flatten without relayout, via exact 0/1 matmuls:
    #   B[r, co*25+s'] = a[r, co]       (lane expansion, pexp)
    #   Mask keeps only s' == r mod 25  (row-periodic constant)
    #   Sel sums the 25 rows of each sample -> feat[n, co*25+s]  (PyTorch order)
    b = jnp.dot(a, pexp_ref[...], preferred_element_type=jnp.float32)
    feat = jnp.dot(sel_ref[...], b * mask_ref[...],
                   preferred_element_type=jnp.float32)    # (NS, 512)
    h = jnp.dot(feat, w1_ref[...], preferred_element_type=jnp.float32)
    h = jnp.maximum(h + b1_ref[...], 0.0)                 # (NS, 128)
    o_ref[...] = (jnp.dot(h, w2_ref[...], preferred_element_type=jnp.float32)
                  + b2_ref[...])


def conv2_flatten_fc(p2, prep, npad):
    rows = NS * S2                                        # 200 patch rows/block
    _, f2pad = p2.shape
    return pl.pallas_call(
        _stage2_kernel,
        out_shape=jax.ShapeDtypeStruct((npad, LANES), jnp.float32),
        grid=(npad // NS,),
        in_specs=[
            pl.BlockSpec((rows, f2pad), lambda i: (i, 0)),
            pl.BlockSpec((f2pad, LANES), lambda i: (0, 0)),
            pl.BlockSpec((1, LANES), lambda i: (0, 0)),
            pl.BlockSpec((LANES, FEAT_PAD), lambda i: (0, 0)),
            pl.BlockSpec((rows, FEAT_PAD), lambda i: (0, 0)),
            pl.BlockSpec((NS, rows), lambda i: (0, 0)),
            pl.BlockSpec((FEAT_PAD, LANES), lambda i: (0, 0)),
            pl.BlockSpec((1, LANES), lambda i: (0, 0)),
            pl.BlockSpec((LANES, LANES), lambda i: (0, 0)),
            pl.BlockSpec((1, LANES), lambda i: (0, 0)),
        ],
        out_specs=pl.BlockSpec((NS, LANES), lambda i: (i, 0)),
        compiler_params=pltpu.CompilerParams(
            dimension_semantics=("parallel",)),
    )(p2, prep["w2bd"], prep["b2pad"], prep["pexp"], prep["mask"], prep["sel"],
      prep["w1fc"], prep["b1fc"], prep["w2fc"], prep["b2fc"])


# ---------------------------------------------------------------------------
# XLA glue: ONE one-hot stride-2 conv per stage does im2col + pool grouping,
# already emitting the lane-padded feature count (no transpose, no pad op).
# Feature order: f = j*(K*K*C) + (kh*K+kw)*C + ci,  j = dh*2+dw.
# ---------------------------------------------------------------------------
@functools.lru_cache(maxsize=None)
def _pool_patch_onehot(k, c, pool, f_pad):
    ke = k + pool - 1
    kkc = k * k * c
    ker = np.zeros((ke, ke, c, f_pad), np.float32)
    for dh in range(pool):
        for dw in range(pool):
            j = dh * pool + dw
            for kh in range(k):
                for kw in range(k):
                    for ci in range(c):
                        f = j * kkc + (kh * k + kw) * c + ci
                        ker[dh + kh, dw + kw, ci, f] = 1.0
    return ker


def _pool_patches(xh, k, pool, f_pad):
    """xh: (N,H,W,C) -> ((N*Hp*Wp, f_pad), Hp, Wp), rows ordered (n, ph*Wp+pw)."""
    n, h, w, c = xh.shape
    hp, wp = (h - k + 1) // pool, (w - k + 1) // pool
    ker = jnp.asarray(_pool_patch_onehot(k, c, pool, f_pad))
    out = lax.conv_general_dilated(
        xh, ker, (pool, pool), "VALID",
        dimension_numbers=("NHWC", "HWIO", "NHWC"),
        precision=lax.Precision.HIGHEST)                  # (N, Hp, Wp, f_pad)
    return out.reshape(n * hp * wp, f_pad), hp, wp


@functools.lru_cache(maxsize=None)
def _flatten_helpers():
    """Constant 0/1 matrices implementing the NCHW flatten inside the kernel."""
    pexp = np.zeros((LANES, FEAT_PAD), np.float32)
    for co in range(C2):
        for s in range(S2):
            pexp[co, co * S2 + s] = 1.0
    mask = np.zeros((NS * S2, FEAT_PAD), np.float32)
    for r in range(NS * S2):
        for co in range(C2):
            mask[r, co * S2 + (r % S2)] = 1.0
    sel = np.zeros((NS, NS * S2), np.float32)
    for n_ in range(NS):
        sel[n_, n_ * S2:(n_ + 1) * S2] = 1.0
    return pexp, mask, sel


# ---------------------------------------------------------------------------
# One-time parameter preparation (hoisted out of the per-call path)
# ---------------------------------------------------------------------------
def prepare_params(params, in_channels):
    cin = in_channels
    kkc1 = 25 * cin
    kkc2 = 25 * 6
    f1pad = _round_up(4 * kkc1, LANES)

    def block_diag(wflat, kkc, cout, fpad):
        wbd = jnp.zeros((fpad, LANES), jnp.float32)
        for j in range(4):
            wbd = wbd.at[j * kkc:(j + 1) * kkc,
                         j * GROUP:j * GROUP + cout].set(wflat)
        return wbd

    # (Cout, Cin, kh, kw) -> (kh, kw, Cin, Cout) -> (K*K*Cin, Cout)
    w1flat = jnp.transpose(params["conv1_w"], (2, 3, 1, 0)).reshape(kkc1, 6)
    w2flat = jnp.transpose(params["conv2_w"], (2, 3, 1, 0)).reshape(kkc2, C2)
    pexp, mask, sel = _flatten_helpers()
    return {
        "w1bd": block_diag(w1flat, kkc1, 6, f1pad),
        "b1pad": _pad_lanes(params["conv1_b"].reshape(1, 6)),
        "w2bd": block_diag(w2flat, kkc2, C2, F2PAD),
        "b2pad": _pad_lanes(params["conv2_b"].reshape(1, C2)),
        "pexp": jnp.asarray(pexp),
        "mask": jnp.asarray(mask),
        "sel": jnp.asarray(sel),
        "w1fc": jnp.pad(params["fc1_w"].T,
                        ((0, FEAT_PAD - FEAT), (0, LANES - 120))),
        "b1fc": _pad_lanes(params["fc1_b"].reshape(1, -1)),
        "w2fc": jnp.pad(params["fc2_w"].T, ((0, LANES - 120), (0, LANES - 84))),
        "b2fc": _pad_lanes(params["fc2_b"].reshape(1, -1)),
    }


def _stage1_tiles(m, tmax=512):
    """Tile the conv1 M dimension; bounds VMEM per step, enables pipelining
    and v7x dual-TC sharding for larger batches (single step at N=2)."""
    tm = _round_up(m, 8) if m <= tmax else tmax
    return tm, _round_up(m, tm)


# ---------------------------------------------------------------------------
# LeNet5_conv forward (PyTorch-equivalent semantics)
# ---------------------------------------------------------------------------
def lenet5_conv_forward(x, prep, padding=0):
    n, cin = x.shape[0], x.shape[1]
    if padding:
        x = jnp.pad(x, ((0, 0), (0, 0), (padding, padding), (padding, padding)))
    xh = jnp.transpose(x, (0, 2, 3, 1))                   # NCHW -> NHWC

    # ---- stage 1: conv1(5x5) + relu + maxpool(2x2), M-tiled Pallas matmul ---
    f1pad = _round_up(4 * 25 * cin, LANES)
    p1, hp1, wp1 = _pool_patches(xh, 5, 2, f1pad)         # (N*196, f1pad)
    m1 = n * hp1 * wp1
    tm1, m1p = _stage1_tiles(m1)
    if m1p != m1:
        p1 = jnp.pad(p1, ((0, m1p - m1), (0, 0)))
    y1 = conv_relu_pool(p1, prep["w1bd"], prep["b1pad"], tm1)   # (m1p, 128)
    y1 = y1[:m1, :6].reshape(n, hp1, wp1, 6)              # pooled NHWC map

    # ---- stage 2: conv2 + relu + pool + NCHW flatten + fc1 + relu + fc2 -----
    #      all fused in ONE pallas_call, tiled over blocks of NS samples.
    p2, hp2, wp2 = _pool_patches(y1, 5, 2, F2PAD)         # (N*25, 640)
    assert hp2 * wp2 == S2, "fc1 expects a 5x5x16 feature map"
    m2 = n * hp2 * wp2
    npad = _round_up(n, NS)
    m2p = npad * S2
    if m2p != m2:
        p2 = jnp.pad(p2, ((0, m2p - m2), (0, 0)))
    out = conv2_flatten_fc(p2, prep, npad)                # (npad, 128)
    return out[:n, :84]


# ---------------------------------------------------------------------------
# Deterministic parameter init (shapes match the PyTorch module)
# ---------------------------------------------------------------------------
def init_params(key, in_channels):
    ks = jax.random.split(key, 8)

    def u(k, shape, fan_in):
        bound = 1.0 / np.sqrt(fan_in)
        return jax.random.uniform(k, shape, jnp.float32, -bound, bound)

    return {
        "conv1_w": u(ks[0], (6, in_channels, 5, 5), in_channels * 25),
        "conv1_b": u(ks[1], (6,), in_channels * 25),
        "conv2_w": u(ks[2], (16, 6, 5, 5), 6 * 25),
        "conv2_b": u(ks[3], (16,), 6 * 25),
        "fc1_w": u(ks[4], (120, 16 * 5 * 5), 16 * 5 * 5),
        "fc1_b": u(ks[5], (120,), 16 * 5 * 5),
        "fc2_w": u(ks[6], (84, 120), 120),
        "fc2_b": u(ks[7], (84,), 120),
    }


# ---------------------------------------------------------------------------
# Pure-JAX reference (mirrors the PyTorch forward) for a correctness check
# ---------------------------------------------------------------------------
def reference_forward(x, params, padding=0):
    dn = ("NCHW", "OIHW", "NCHW")
    pad = [(padding, padding), (padding, padding)]
    hi = lax.Precision.HIGHEST
    y = lax.conv_general_dilated(x, params["conv1_w"], (1, 1), pad,
                                 dimension_numbers=dn, precision=hi)
    y = jnp.maximum(y + params["conv1_b"][None, :, None, None], 0.0)
    y = lax.reduce_window(y, -jnp.inf, lax.max, (1, 1, 2, 2), (1, 1, 2, 2), "VALID")
    y = lax.conv_general_dilated(y, params["conv2_w"], (1, 1), [(0, 0), (0, 0)],
                                 dimension_numbers=dn, precision=hi)
    y = jnp.maximum(y + params["conv2_b"][None, :, None, None], 0.0)
    y = lax.reduce_window(y, -jnp.inf, lax.max, (1, 1, 2, 2), (1, 1, 2, 2), "VALID")
    y = y.reshape(y.shape[0], -1)
    y = jnp.maximum(jnp.dot(y, params["fc1_w"].T, precision=hi) + params["fc1_b"], 0.0)
    return jnp.dot(y, params["fc2_w"].T, precision=hi) + params["fc2_b"]


if __name__ == "__main__":
    N, Cin, padding = 2, 1, 0          # (N, Cin, 32, 32) in -> (N, 84) out
    key = jax.random.PRNGKey(0)
    kx, kp = jax.random.split(key)
    x = jax.random.normal(kx, (N, Cin, 32, 32), jnp.float32)
    params = init_params(kp, Cin)

    prep = prepare_params(params, Cin)     # hoisted weight prep (done once)
    fwd = jax.jit(lambda xx, pp: lenet5_conv_forward(xx, pp, padding=padding))
    out = jax.block_until_ready(fwd(x, prep))
    assert out.shape == (N, 84), out.shape

    ref = jax.block_until_ready(reference_forward(x, params, padding))
    np.testing.assert_allclose(np.asarray(out), np.asarray(ref), rtol=5e-3, atol=5e-3)

    print("KERNEL_OK")
</pallas_src>

<mosaic_0001>
module attributes {stable_mosaic.version = 11 : i64} {
  func.func @_conv_pool_relu_kernel(%arg0: i32, %arg1: memref<392x128xf32, #tpu.memory_space<vmem>>, %arg2: memref<128x128xf32, #tpu.memory_space<vmem>>, %arg3: memref<1x128xf32, #tpu.memory_space<vmem>>, %arg4: memref<392x128xf32, #tpu.memory_space<vmem>>) attributes {dimension_semantics = [#tpu.dimension_semantics<parallel>], iteration_bounds = array<i64: 1>, scalar_prefetch = 0 : i64, scratch_operands = 0 : i64, tpu.core_type = #tpu.core_type<tc>, window_params = [{transform_indices = @transform_0, window_bounds = array<i64: 392, 128>}, {pipeline_mode = #tpu.pipeline_mode<synchronous>, transform_indices = @transform_1, window_bounds = array<i64: 128, 128>}, {pipeline_mode = #tpu.pipeline_mode<synchronous>, transform_indices = @transform_2, window_bounds = array<i64: 1, 128>}, {transform_indices = @transform_3, window_bounds = array<i64: 392, 128>}]} {
    %c0 = arith.constant 0 : index
    %c0_0 = arith.constant 0 : index
    %0 = vector.load %arg1[%c0, %c0_0] : memref<392x128xf32, #tpu.memory_space<vmem>>, vector<392x128xf32>
    %c0_1 = arith.constant 0 : index
    %c0_2 = arith.constant 0 : index
    %1 = vector.load %arg2[%c0_1, %c0_2] : memref<128x128xf32, #tpu.memory_space<vmem>>, vector<128x128xf32>
    %cst = arith.constant dense<0.000000e+00> : vector<392x128xf32>
    %2 = tpu.matmul %0, %1, %cst {dimension_numbers = #tpu.dot_dimension_numbers<[1], [0], [0], [1], [0, 0, 1, 1], [], []>} : vector<392x128xf32>, vector<128x128xf32>, vector<392x128xf32> -> vector<392x128xf32>
    %c64_i32 = arith.constant 64 : i32
    %3 = tpu.dynamic_rotate %2 by %c64_i32 dim 1 : vector<392x128xf32>, i32 -> vector<392x128xf32>
    %4 = arith.maximumf %2, %3 : vector<392x128xf32>
    %c32_i32 = arith.constant 32 : i32
    %5 = tpu.dynamic_rotate %4 by %c32_i32 dim 1 : vector<392x128xf32>, i32 -> vector<392x128xf32>
    %6 = arith.maximumf %4, %5 : vector<392x128xf32>
    %c0_3 = arith.constant 0 : index
    %c0_4 = arith.constant 0 : index
    %7 = vector.load %arg3[%c0_3, %c0_4] : memref<1x128xf32, #tpu.memory_space<vmem>>, vector<1x128xf32>
    %8 = vector.broadcast %7 : vector<1x128xf32> to vector<392x128xf32>
    %9 = arith.addf %6, %8 : vector<392x128xf32>
    %cst_5 = arith.constant 0.000000e+00 : f32
    %10 = vector.broadcast %cst_5 : f32 to vector<392x128xf32>
    %11 = arith.maximumf %9, %10 : vector<392x128xf32>
    %c0_6 = arith.constant 0 : index
    %c0_7 = arith.constant 0 : index
    %12 = vector.load %arg4[%c0_6, %c0_7] : memref<392x128xf32, #tpu.memory_space<vmem>>, vector<392x128xf32>
    tpu.vector_store %arg4[%c0_6, %c0_7], %11 {strides = array<i32>} : memref<392x128xf32, #tpu.memory_space<vmem>>, vector<392x128xf32>,
    return
  }
  func.func @transform_0(%arg0: i32) -> (i32, i32) {
    %c0_i32 = arith.constant 0 : i32
    %c0_i32_0 = arith.constant 0 : i32
    return %arg0, %c0_i32 : i32, i32
  }
  func.func @transform_1(%arg0: i32) -> (i32, i32) {
    %c0_i32 = arith.constant 0 : i32
    %c0_i32_0 = arith.constant 0 : i32
    %c0_i32_1 = arith.constant 0 : i32
    return %c0_i32, %c0_i32_0 : i32, i32
  }
  func.func @transform_2(%arg0: i32) -> (i32, i32) {
    %c0_i32 = arith.constant 0 : i32
    %c0_i32_0 = arith.constant 0 : i32
    %c0_i32_1 = arith.constant 0 : i32
    return %c0_i32, %c0_i32_0 : i32, i32
  }
  func.func @transform_3(%arg0: i32) -> (i32, i32) {
    %c0_i32 = arith.constant 0 : i32
    %c0_i32_0 = arith.constant 0 : i32
    return %arg0, %c0_i32 : i32, i32
  }
}

module attributes {stable_mosaic.version = 11 : i64} {
  func.func @_stage2_kernel(%arg0: i32, %arg1: memref<200x640xf32, #tpu.memory_space<vmem>>, %arg2: memref<640x128xf32, #tpu.memory_space<vmem>>, %arg3: memref<1x128xf32, #tpu.memory_space<vmem>>, %arg4: memref<128x512xf32, #tpu.memory_space<vmem>>, %arg5: memref<200x512xf32, #tpu.memory_space<vmem>>, %arg6: memref<8x200xf32, #tpu.memory_space<vmem>>, %arg7: memref<512x128xf32, #tpu.memory_space<vmem>>, %arg8: memref<1x128xf32, #tpu.memory_space<vmem>>, %arg9: memref<128x128xf32, #tpu.memory_space<vmem>>, %arg10: memref<1x128xf32, #tpu.memory_space<vmem>>, %arg11: memref<8x128xf32, #tpu.memory_space<vmem>>) attributes {dimension_semantics = [#tpu.dimension_semantics<parallel>], iteration_bounds = array<i64: 1>, scalar_prefetch = 0 : i64, scratch_operands = 0 : i64, tpu.core_type = #tpu.core_type<tc>, window_params = [{transform_indices = @transform_0, window_bounds = array<i64: 200, 640>}, {pipeline_mode = #tpu.pipeline_mode<synchronous>, transform_indices = @transform_1, window_bounds = array<i64: 640, 128>}, {pipeline_mode = #tpu.pipeline_mode<synchronous>, transform_indices = @transform_2, window_bounds = array<i64: 1, 128>}, {pipeline_mode = #tpu.pipeline_mode<synchronous>, transform_indices = @transform_3, window_bounds = array<i64: 128, 512>}, {pipeline_mode = #tpu.pipeline_mode<synchronous>, transform_indices = @transform_4, window_bounds = array<i64: 200, 512>}, {pipeline_mode = #tpu.pipeline_mode<synchronous>, transform_indices = @transform_5, window_bounds = array<i64: 8, 200>}, {pipeline_mode = #tpu.pipeline_mode<synchronous>, transform_indices = @transform_6, window_bounds = array<i64: 512, 128>}, {pipeline_mode = #tpu.pipeline_mode<synchronous>, transform_indices = @transform_7, window_bounds = array<i64: 1, 128>}, {pipeline_mode = #tpu.pipeline_mode<synchronous>, transform_indices = @transform_8, window_bounds = array<i64: 128, 128>}, {pipeline_mode = #tpu.pipeline_mode<synchronous>, transform_indices = @transform_9, window_bounds = array<i64: 1, 128>}, {transform_indices = @transform_10, window_bounds = array<i64: 8, 128>}]} {
    %c0 = arith.constant 0 : index
    %c0_0 = arith.constant 0 : index
    %0 = vector.load %arg1[%c0, %c0_0] : memref<200x640xf32, #tpu.memory_space<vmem>>, vector<200x640xf32>
    %c0_1 = arith.constant 0 : index
    %c0_2 = arith.constant 0 : index
    %1 = vector.load %arg2[%c0_1, %c0_2] : memref<640x128xf32, #tpu.memory_space<vmem>>, vector<640x128xf32>
    %cst = arith.constant dense<0.000000e+00> : vector<200x128xf32>
    %2 = tpu.matmul %0, %1, %cst {dimension_numbers = #tpu.dot_dimension_numbers<[1], [0], [0], [1], [0, 0, 1, 1], [], []>} : vector<200x640xf32>, vector<640x128xf32>, vector<200x128xf32> -> vector<200x128xf32>
    %c64_i32 = arith.constant 64 : i32
    %3 = tpu.dynamic_rotate %2 by %c64_i32 dim 1 : vector<200x128xf32>, i32 -> vector<200x128xf32>
    %4 = arith.maximumf %2, %3 : vector<200x128xf32>
    %c32_i32 = arith.constant 32 : i32
    %5 = tpu.dynamic_rotate %4 by %c32_i32 dim 1 : vector<200x128xf32>, i32 -> vector<200x128xf32>
    %6 = arith.maximumf %4, %5 : vector<200x128xf32>
    %c0_3 = arith.constant 0 : index
    %c0_4 = arith.constant 0 : index
    %7 = vector.load %arg3[%c0_3, %c0_4] : memref<1x128xf32, #tpu.memory_space<vmem>>, vector<1x128xf32>
    %8 = vector.broadcast %7 : vector<1x128xf32> to vector<200x128xf32>
    %9 = arith.addf %6, %8 : vector<200x128xf32>
    %cst_5 = arith.constant 0.000000e+00 : f32
    %10 = vector.broadcast %cst_5 : f32 to vector<200x128xf32>
    %11 = arith.maximumf %9, %10 : vector<200x128xf32>
    %c0_6 = arith.constant 0 : index
    %c0_7 = arith.constant 0 : index
    %12 = vector.load %arg4[%c0_6, %c0_7] : memref<128x512xf32, #tpu.memory_space<vmem>>, vector<128x512xf32>
    %cst_8 = arith.constant dense<0.000000e+00> : vector<200x512xf32>
    %13 = tpu.matmul %11, %12, %cst_8 {dimension_numbers = #tpu.dot_dimension_numbers<[1], [0], [0], [1], [0, 0, 1, 1], [], []>} : vector<200x128xf32>, vector<128x512xf32>, vector<200x512xf32> -> vector<200x512xf32>
    %c0_9 = arith.constant 0 : index
    %c0_10 = arith.constant 0 : index
    %14 = vector.load %arg6[%c0_9, %c0_10] : memref<8x200xf32, #tpu.memory_space<vmem>>, vector<8x200xf32>
    %c0_11 = arith.constant 0 : index
    %c0_12 = arith.constant 0 : index
    %15 = vector.load %arg5[%c0_11, %c0_12] : memref<200x512xf32, #tpu.memory_space<vmem>>, vector<200x512xf32>
    %16 = arith.mulf %13, %15 : vector<200x512xf32>
    %cst_13 = arith.constant dense<0.000000e+00> : vector<8x512xf32>
    %17 = tpu.matmul %14, %16, %cst_13 {dimension_numbers = #tpu.dot_dimension_numbers<[1], [0], [0], [1], [0, 0, 1, 1], [], []>} : vector<8x200xf32>, vector<200x512xf32>, vector<8x512xf32> -> vector<8x512xf32>
    %c0_14 = arith.constant 0 : index
    %c0_15 = arith.constant 0 : index
    %18 = vector.load %arg7[%c0_14, %c0_15] : memref<512x128xf32, #tpu.memory_space<vmem>>, vector<512x128xf32>
    %cst_16 = arith.constant dense<0.000000e+00> : vector<8x128xf32>
    %19 = tpu.matmul %17, %18, %cst_16 {dimension_numbers = #tpu.dot_dimension_numbers<[1], [0], [0], [1], [0, 0, 1, 1], [], []>} : vector<8x512xf32>, vector<512x128xf32>, vector<8x128xf32> -> vector<8x128xf32>
    %c0_17 = arith.constant 0 : index
    %c0_18 = arith.constant 0 : index
    %20 = vector.load %arg8[%c0_17, %c0_18] : memref<1x128xf32, #tpu.memory_space<vmem>>, vector<1x128xf32>
    %21 = vector.broadcast %20 : vector<1x128xf32> to vector<8x128xf32>
    %22 = arith.addf %19, %21 : vector<8x128xf32>
    %cst_19 = arith.constant 0.000000e+00 : f32
    %23 = vector.broadcast %cst_19 : f32 to vector<8x128xf32>
    %24 = arith.maximumf %22, %23 : vector<8x128xf32>
    %c0_20 = arith.constant 0 : index
    %c0_21 = arith.constant 0 : index
    %25 = vector.load %arg9[%c0_20, %c0_21] : memref<128x128xf32, #tpu.memory_space<vmem>>, vector<128x128xf32>
    %cst_22 = arith.constant dense<0.000000e+00> : vector<8x128xf32>
    %26 = tpu.matmul %24, %25, %cst_22 {dimension_numbers = #tpu.dot_dimension_numbers<[1], [0], [0], [1], [0, 0, 1, 1], [], []>} : vector<8x128xf32>, vector<128x128xf32>, vector<8x128xf32> -> vector<8x128xf32>
    %c0_23 = arith.constant 0 : index
    %c0_24 = arith.constant 0 : index
    %27 = vector.load %arg10[%c0_23, %c0_24] : memref<1x128xf32, #tpu.memory_space<vmem>>, vector<1x128xf32>
    %28 = vector.broadcast %27 : vector<1x128xf32> to vector<8x128xf32>
    %29 = arith.addf %26, %28 : vector<8x128xf32>
    %c0_25 = arith.constant 0 : index
    %c0_26 = arith.constant 0 : index
    %30 = vector.load %arg11[%c0_25, %c0_26] : memref<8x128xf32, #tpu.memory_space<vmem>>, vector<8x128xf32>
    tpu.vector_store %arg11[%c0_25, %c0_26], %29 {strides = array<i32>} : memref<8x128xf32, #tpu.memory_space<vmem>>, vector<8x128xf32>,
    return
  }
  func.func @transform_0(%arg0: i32) -> (i32, i32) {
    %c0_i32 = arith.constant 0 : i32
    %c0_i32_0 = arith.constant 0 : i32
    return %arg0, %c0_i32 : i32, i32
  }
  func.func @transform_1(%arg0: i32) -> (i32, i32) {
    %c0_i32 = arith.constant 0 : i32
    %c0_i32_0 = arith.constant 0 : i32
    %c0_i32_1 = arith.constant 0 : i32
    return %c0_i32, %c0_i32_0 : i32, i32
  }
  func.func @transform_2(%arg0: i32) -> (i32, i32) {
    %c0_i32 = arith.constant 0 : i32
    %c0_i32_0 = arith.constant 0 : i32
    %c0_i32_1 = arith.constant 0 : i32
    return %c0_i32, %c0_i32_0 : i32, i32
  }
  func.func @transform_3(%arg0: i32) -> (i32, i32) {
    %c0_i32 = arith.constant 0 : i32
    %c0_i32_0 = arith.constant 0 : i32
    %c0_i32_1 = arith.constant 0 : i32
    return %c0_i32, %c0_i32_0 : i32, i32
  }
  func.func @transform_4(%arg0: i32) -> (i32, i32) {
    %c0_i32 = arith.constant 0 : i32
    %c0_i32_0 = arith.constant 0 : i32
    %c0_i32_1 = arith.constant 0 : i32
    return %c0_i32, %c0_i32_0 : i32, i32
  }
  func.func @transform_5(%arg0: i32) -> (i32, i32) {
    %c0_i32 = arith.constant 0 : i32
    %c0_i32_0 = arith.constant 0 : i32
    %c0_i32_1 = arith.constant 0 : i32
    return %c0_i32, %c0_i32_0 : i32, i32
  }
  func.func @transform_6(%arg0: i32) -> (i32, i32) {
    %c0_i32 = arith.constant 0 : i32
    %c0_i32_0 = arith.constant 0 : i32
    %c0_i32_1 = arith.constant 0 : i32
    return %c0_i32, %c0_i32_0 : i32, i32
  }
  func.func @transform_7(%arg0: i32) -> (i32, i32) {
    %c0_i32 = arith.constant 0 : i32
    %c0_i32_0 = arith.constant 0 : i32
    %c0_i32_1 = arith.constant 0 : i32
    return %c0_i32, %c0_i32_0 : i32, i32
  }
  func.func @transform_8(%arg0: i32) -> (i32, i32) {
    %c0_i32 = arith.constant 0 : i32
    %c0_i32_0 = arith.constant 0 : i32
    %c0_i32_1 = arith.constant 0 : i32
    return %c0_i32, %c0_i32_0 : i32, i32
  }
  func.func @transform_9(%arg0: i32) -> (i32, i32) {
    %c0_i32 = arith.constant 0 : i32
    %c0_i32_0 = arith.constant 0 : i32
    %c0_i32_1 = arith.constant 0 : i32
    return %c0_i32, %c0_i32_0 : i32, i32
  }
  func.func @transform_10(%arg0: i32) -> (i32, i32) {
    %c0_i32 = arith.constant 0 : i32
    %c0_i32_0 = arith.constant 0 : i32
    return %arg0, %c0_i32 : i32, i32
  }
}

</mosaic_0001>

<llo_original>
// kernel: _lambda_.2
$region0: #{_lambda_.2}
  #allocation0 [shape = 'u32[]', space=smem, size = 0x4, offset = 0x4, fixed_abs, tag = 'smem constant byte address 0x4 - core index']
  #allocation1 [shape = 'u32[144,128]{1,0:T(1,128)}', space=vmem, size = 0x12000, scoped, tag = 'internal scratch']
  %s0 = inlined_call_operand.vmem [shape: f32[392,128], index: 0, kind: input, shape index: {}]
  %s1 = inlined_call_operand.vmem [shape: f32[128,128], index: 1, kind: input, shape index: {}]
  %s2 = inlined_call_operand.vmem [shape: f32[1,128], index: 2, kind: input, shape index: {}]
  %s3 = inlined_call_operand.vmem [shape: f32[392,128], index: 3, kind: output, shape index: {}]
  %s4 = sld [smem:[#allocation0]]
  $region22: #{_lambda_.2} parent=0
    _
  %s6 = ssub.s32 1, %s4
  %s7 = scalar_select 0, %s6, %s4
  // Predicated region
  $region2: #{_lambda_.2} parent=0 // pred_check
    _
  $region3: #{_lambda_.2} parent=0 // pred_check_branch
    %9 = sbr.rel (0) target = $region5
  $region4: #{_lambda_.2} parent=0 // pred_region
    _
  $region5: #{_lambda_.2} parent=0 // pred_fallthru
    _
  // Predicated region
  $region6: #{_lambda_.2} parent=0 // pred_check
    _
  $region7: #{_lambda_.2} parent=0 // pred_check_branch
    %11 = sbr.rel (0) target = $region9
  $region8: #{_lambda_.2} parent=0 // pred_region
    _
  $region9: #{_lambda_.2} parent=0 // pred_fallthru
    _
  // Predicated region
  $region10: #{_lambda_.2} parent=0 // pred_check
    _
  $region11: #{_lambda_.2} parent=0 // pred_check_branch
    %13 = sbr.rel (0) target = $region13
  $region12: #{_lambda_.2} parent=0 // pred_region
    _
  $region13: #{_lambda_.2} parent=0 // pred_fallthru
    _
  %v14 = vld [vmem:[%s0] sm:$0xff]
  %v15 = vld [vmem:[%s0 + $0x8] sm:$0xff]
  %v16 = vld [vmem:[%s0 + $0x10] sm:$0xff]
  %v17 = vld [vmem:[%s0 + $0x18] sm:$0xff]
  %v18 = vld [vmem:[%s0 + $0x20] sm:$0xff]
  %v19 = vld [vmem:[%s0 + $0x28] sm:$0xff]
  %v20 = vld [vmem:[%s0 + $0x30] sm:$0xff]
  %v21 = vld [vmem:[%s0 + $0x38] sm:$0xff]
  %v22 = vld [vmem:[%s0 + $0x40] sm:$0xff]
  %v23 = vld [vmem:[%s0 + $0x48] sm:$0xff]
  %v24 = vld [vmem:[%s0 + $0x50] sm:$0xff]
  %v25 = vld [vmem:[%s0 + $0x58] sm:$0xff]
  %v26 = vld [vmem:[%s0 + $0x60] sm:$0xff]
  %v27 = vld [vmem:[%s0 + $0x68] sm:$0xff]
  %v28 = vld [vmem:[%s0 + $0x70] sm:$0xff]
  %v29 = vld [vmem:[%s0 + $0x78] sm:$0xff]
  %v30 = vld [vmem:[%s0 + $0x80] sm:$0xff]
  %v31 = vld [vmem:[%s0 + $0x88] sm:$0xff]
  %v32 = vld [vmem:[%s0 + $0x90] sm:$0xff]
  %v33 = vld [vmem:[%s0 + $0x98] sm:$0xff]
  %v34 = vld [vmem:[%s0 + $0xa0] sm:$0xff]
  %v35 = vld [vmem:[%s0 + $0xa8] sm:$0xff]
  %v36 = vld [vmem:[%s0 + $0xb0] sm:$0xff]
  %v37 = vld [vmem:[%s0 + $0xb8] sm:$0xff]
  %v38 = vld [vmem:[%s0 + $0xc0] sm:$0xff]
  %v39 = vld [vmem:[%s0 + $0xc8] sm:$0xff]
  %v40 = vld [vmem:[%s0 + $0xd0] sm:$0xff]
  %v41 = vld [vmem:[%s0 + $0xd8] sm:$0xff]
  %v42 = vld [vmem:[%s0 + $0xe0] sm:$0xff]
  %v43 = vld [vmem:[%s0 + $0xe8] sm:$0xff]
  %v44 = vld [vmem:[%s0 + $0xf0] sm:$0xff]
  %v45 = vld [vmem:[%s0 + $0xf8] sm:$0xff]
  %v46 = vld [vmem:[%s0 + $0x100] sm:$0xff]
  %v47 = vld [vmem:[%s0 + $0x108] sm:$0xff]
  %v48 = vld [vmem:[%s0 + $0x110] sm:$0xff]
  %v49 = vld [vmem:[%s0 + $0x118] sm:$0xff]
  %v50 = vld [vmem:[%s0 + $0x120] sm:$0xff]
  %v51 = vld [vmem:[%s0 + $0x128] sm:$0xff]
  %v52 = vld [vmem:[%s0 + $0x130] sm:$0xff]
  %v53 = vld [vmem:[%s0 + $0x138] sm:$0xff]
  %v54 = vld [vmem:[%s0 + $0x140] sm:$0xff]
  %v55 = vld [vmem:[%s0 + $0x148] sm:$0xff]
  %v56 = vld [vmem:[%s0 + $0x150] sm:$0xff]
  %v57 = vld [vmem:[%s0 + $0x158] sm:$0xff]
  %v58 = vld [vmem:[%s0 + $0x160] sm:$0xff]
  %v59 = vld [vmem:[%s0 + $0x168] sm:$0xff]
  %v60 = vld [vmem:[%s0 + $0x170] sm:$0xff]
  %v61 = vld [vmem:[%s0 + $0x178] sm:$0xff]
  %v62 = vld [vmem:[%s0 + $0x180] sm:$0xff]
  %v63 = vld [vmem:[%s1] sm:$0xff]
  %v64 = vld [vmem:[%s1 + $0x8] sm:$0xff]
  %v65 = vld [vmem:[%s1 + $0x10] sm:$0xff]
  %v66 = vld [vmem:[%s1 + $0x18] sm:$0xff]
  %v67 = vld [vmem:[%s1 + $0x20] sm:$0xff]
  %v68 = vld [vmem:[%s1 + $0x28] sm:$0xff]
  %v69 = vld [vmem:[%s1 + $0x30] sm:$0xff]
  %v70 = vld [vmem:[%s1 + $0x38] sm:$0xff]
  %v71 = vld [vmem:[%s1 + $0x40] sm:$0xff]
  %v72 = vld [vmem:[%s1 + $0x48] sm:$0xff]
  %v73 = vld [vmem:[%s1 + $0x50] sm:$0xff]
  %v74 = vld [vmem:[%s1 + $0x58] sm:$0xff]
  %v75 = vld [vmem:[%s1 + $0x60] sm:$0xff]
  %v76 = vld [vmem:[%s1 + $0x68] sm:$0xff]
  %v77 = vld [vmem:[%s1 + $0x70] sm:$0xff]
  %v78 = vld [vmem:[%s1 + $0x78] sm:$0xff]
  %79 = vmatprep.subr.mxu0 0.0
  %80 = vmatpush1.msra.mxu0 %v63
  %81 = vmatprep.subr.mxu0 0.0
  %82 = vmatpush1.msra.mxu0 %v64
  %83 = vmatprep.subr.mxu0 0.0
  %84 = vmatpush1.msra.mxu0 %v65
  %85 = vmatprep.subr.mxu0 0.0
  %86 = vmatpush1.msra.mxu0 %v66
  %87 = vmatprep.subr.mxu0 0.0
  %88 = vmatpush1.msra.mxu0 %v67
  %89 = vmatprep.subr.mxu0 0.0
  %90 = vmatpush1.msra.mxu0 %v68
  %91 = vmatprep.subr.mxu0 0.0
  %92 = vmatpush1.msra.mxu0 %v69
  %93 = vmatprep.subr.mxu0 0.0
  %94 = vmatpush1.msra.mxu0 %v70
  %95 = vmatprep.subr.mxu0 0.0
  %96 = vmatpush1.msra.mxu0 %v71
  %97 = vmatprep.subr.mxu0 0.0
  %98 = vmatpush1.msra.mxu0 %v72
  %99 = vmatprep.subr.mxu0 0.0
  %100 = vmatpush1.msra.mxu0 %v73
  %101 = vmatprep.subr.mxu0 0.0
  %102 = vmatpush1.msra.mxu0 %v74
  %103 = vmatprep.subr.mxu0 0.0
  %104 = vmatpush1.msra.mxu0 %v75
  %105 = vmatprep.subr.mxu0 0.0
  %106 = vmatpush1.msra.mxu0 %v76
  %107 = vmatprep.subr.mxu0 0.0
  %108 = vmatpush1.msra.mxu0 %v77
  %109 = vmatprep.subr.mxu0 0.0
  %110 = vmatpush1.msra.mxu0 %v78
  %111 = vmatprep.subr.mxu0 0.0
  %112 = vmatpush1.msra.mxu0 0.0
  %113 = vmatprep.subr.mxu0 0.0
  %114 = vmatpush1.msra.mxu0 0.0
  %115 = vmatprep.subr.mxu0 0.0
  %116 = vmatpush1.msra.mxu0 0.0
  %117 = vmatprep.subr.mxu0 0.0
  %118 = vmatpush1.msra.mxu0 0.0
  %119 = vmatprep.subr.mxu0 0.0
  %120 = vmatpush1.msra.mxu0 0.0
  %121 = vmatprep.subr.mxu0 0.0
  %122 = vmatpush1.msra.mxu0 0.0
  %123 = vmatprep.subr.mxu0 0.0
  %124 = vmatpush1.msra.mxu0 0.0
  %125 = vmatprep.subr.mxu0 0.0
  %126 = vmatpush1.msra.mxu0 0.0
  %127 = vmatprep.subr.mxu0 0.0
  %128 = vmatpush1.msra.mxu0 0.0
  %129 = vmatprep.subr.mxu0 0.0
  %130 = vmatpush1.msra.mxu0 0.0
  %131 = vmatprep.subr.mxu0 0.0
  %132 = vmatpush1.msra.mxu0 0.0
  %133 = vmatprep.subr.mxu0 0.0
  %134 = vmatpush1.msra.mxu0 0.0
  %135 = vmatprep.subr.mxu0 0.0
  %136 = vmatpush1.msra.mxu0 0.0
  %137 = vmatprep.subr.mxu0 0.0
  %138 = vmatpush1.msra.mxu0 0.0
  %139 = vmatprep.subr.mxu0 0.0
  %140 = vmatpush1.msra.mxu0 0.0
  %141 = vmatprep.subr.mxu0 0.0
  %142 = vmatpush1.msra.mxu0 0.0
  %143 = vmatprep.mubr.f32.mxu0 0.0
  %144 = vmatmul.mubr.f32.gmra.mrb[0].mxu0 %v14
  %v145 = vpop.f32.mrb[0].mxu0
  %v146 = vadd.f32 0.0, %v145
  %v147 = vpop.f32.mrb[0].mxu0
  %148 = vmatprep.mubr.f32.mxu0 0.0
  %149 = vmatmul.mubr.f32.gmra.mrb[0].mxu0 %v15
  %v150 = vpop.f32.mrb[0].mxu0
  %v151 = vadd.f32 0.0, %v150
  %v152 = vpop.f32.mrb[0].mxu0
  %153 = vmatprep.mubr.f32.mxu0 0.0
  %154 = vmatmul.mubr.f32.gmra.mrb[0].mxu0 %v16
  %v155 = vpop.f32.mrb[0].mxu0
  %v156 = vadd.f32 0.0, %v155
  %v157 = vpop.f32.mrb[0].mxu0
  %158 = vmatprep.mubr.f32.mxu0 0.0
  %159 = vmatmul.mubr.f32.gmra.mrb[0].mxu0 %v17
  %v160 = vpop.f32.mrb[0].mxu0
  %v161 = vadd.f32 0.0, %v160
  %v162 = vpop.f32.mrb[0].mxu0
  %163 = vmatprep.mubr.f32.mxu0 0.0
  %164 = vmatmul.mubr.f32.gmra.mrb[0].mxu0 %v18
  %v165 = vpop.f32.mrb[0].mxu0
  %v166 = vadd.f32 0.0, %v165
  %v167 = vpop.f32.mrb[0].mxu0
  %168 = vmatprep.mubr.f32.mxu0 0.0
  %169 = vmatmul.mubr.f32.gmra.mrb[0].mxu0 %v19
  %v170 = vpop.f32.mrb[0].mxu0
  %v171 = vadd.f32 0.0, %v170
  %v172 = vpop.f32.mrb[0].mxu0
  %173 = vmatprep.mubr.f32.mxu0 0.0
  %174 = vmatmul.mubr.f32.gmra.mrb[0].mxu0 %v20
  %v175 = vpop.f32.mrb[0].mxu0
  %v176 = vadd.f32 0.0, %v175
  %v177 = vpop.f32.mrb[0].mxu0
  %178 = vmatprep.mubr.f32.mxu0 0.0
  %179 = vmatmul.mubr.f32.gmra.mrb[0].mxu0 %v21
  %v180 = vpop.f32.mrb[0].mxu0
  %v181 = vadd.f32 0.0, %v180
  %v182 = vpop.f32.mrb[0].mxu0
  %183 = vmatprep.mubr.f32.mxu0 0.0
  %184 = vmatmul.mubr.f32.gmra.mrb[0].mxu0 %v22
  %v185 = vpop.f32.mrb[0].mxu0
  %v186 = vadd.f32 0.0, %v185
  %v187 = vpop.f32.mrb[0].mxu0
  %188 = vmatprep.mubr.f32.mxu0 0.0
  %189 = vmatmul.mubr.f32.gmra.mrb[0].mxu0 %v23
  %v190 = vpop.f32.mrb[0].mxu0
  %v191 = vadd.f32 0.0, %v190
  %v192 = vpop.f32.mrb[0].mxu0
  %193 = vmatprep.mubr.f32.mxu0 0.0
  %194 = vmatmul.mubr.f32.gmra.mrb[0].mxu0 %v24
  %v195 = vpop.f32.mrb[0].mxu0
  %v196 = vadd.f32 0.0, %v195
  %v197 = vpop.f32.mrb[0].mxu0
  %198 = vmatprep.mubr.f32.mxu0 0.0
  %199 = vmatmul.mubr.f32.gmra.mrb[0].mxu0 %v25
  %v200 = vpop.f32.mrb[0].mxu0
  %v201 = vadd.f32 0.0, %v200
  %v202 = vpop.f32.mrb[0].mxu0
  %203 = vmatprep.mubr.f32.mxu0 0.0
  %204 = vmatmul.mubr.f32.gmra.mrb[0].mxu0 %v26
  %v205 = vpop.f32.mrb[0].mxu0
  %v206 = vadd.f32 0.0, %v205
  %v207 = vpop.f32.mrb[0].mxu0
  %208 = vmatprep.mubr.f32.mxu0 0.0
  %209 = vmatmul.mubr.f32.gmra.mrb[0].mxu0 %v27
  %v210 = vpop.f32.mrb[0].mxu0
  %v211 = vadd.f32 0.0, %v210
  %v212 = vpop.f32.mrb[0].mxu0
  %213 = vmatprep.mubr.f32.mxu0 0.0
  %214 = vmatmul.mubr.f32.gmra.mrb[0].mxu0 %v28
  %v215 = vpop.f32.mrb[0].mxu0
  %v216 = vadd.f32 0.0, %v215
  %v217 = vpop.f32.mrb[0].mxu0
  %218 = vmatprep.mubr.f32.mxu0 0.0
  %219 = vmatmul.mubr.f32.gmra.mrb[0].mxu0 %v29
  %v220 = vpop.f32.mrb[0].mxu0
  %v221 = vadd.f32 0.0, %v220
  %v222 = vpop.f32.mrb[0].mxu0
  %223 = vmatprep.mubr.f32.mxu0 0.0
  %224 = vmatmul.mubr.f32.gmra.mrb[0].mxu0 %v30
  %v225 = vpop.f32.mrb[0].mxu0
  %v226 = vadd.f32 0.0, %v225
  %v227 = vpop.f32.mrb[0].mxu0
  %228 = vmatprep.mubr.f32.mxu0 0.0
  %229 = vmatmul.mubr.f32.gmra.mrb[0].mxu0 %v31
  %v230 = vpop.f32.mrb[0].mxu0
  %v231 = vadd.f32 0.0, %v230
  %v232 = vpop.f32.mrb[0].mxu0
  %233 = vmatprep.mubr.f32.mxu0 0.0
  %234 = vmatmul.mubr.f32.gmra.mrb[0].mxu0 %v32
  %v235 = vpop.f32.mrb[0].mxu0
  %v236 = vadd.f32 0.0, %v235
  %v237 = vpop.f32.mrb[0].mxu0
  %238 = vmatprep.mubr.f32.mxu0 0.0
  %239 = vmatmul.mubr.f32.gmra.mrb[0].mxu0 %v33
  %v240 = vpop.f32.mrb[0].mxu0
  %v241 = vadd.f32 0.0, %v240
  %v242 = vpop.f32.mrb[0].mxu0
  %243 = vmatprep.mubr.f32.mxu0 0.0
  %244 = vmatmul.mubr.f32.gmra.mrb[0].mxu0 %v34
  %v245 = vpop.f32.mrb[0].mxu0
  %v246 = vadd.f32 0.0, %v245
  %v247 = vpop.f32.mrb[0].mxu0
  %248 = vmatprep.mubr.f32.mxu0 0.0
  %249 = vmatmul.mubr.f32.gmra.mrb[0].mxu0 %v35
  %v250 = vpop.f32.mrb[0].mxu0
  %v251 = vadd.f32 0.0, %v250
  %v252 = vpop.f32.mrb[0].mxu0
  %253 = vmatprep.mubr.f32.mxu0 0.0
  %254 = vmatmul.mubr.f32.gmra.mrb[0].mxu0 %v36
  %v255 = vpop.f32.mrb[0].mxu0
  %v256 = vadd.f32 0.0, %v255
  %v257 = vpop.f32.mrb[0].mxu0
  %258 = vmatprep.mubr.f32.mxu0 0.0
  %259 = vmatmul.mubr.f32.gmra.mrb[0].mxu0 %v37
  %v260 = vpop.f32.mrb[0].mxu0
  %v261 = vadd.f32 0.0, %v260
  %v262 = vpop.f32.mrb[0].mxu0
  %263 = vmatprep.mubr.f32.mxu0 0.0
  %264 = vmatmul.mubr.f32.gmra.mrb[0].mxu0 %v38
  %v265 = vpop.f32.mrb[0].mxu0
  %v266 = vadd.f32 0.0, %v265
  %v267 = vpop.f32.mrb[0].mxu0
  %268 = vmatprep.mubr.f32.mxu0 0.0
  %269 = vmatmul.mubr.f32.gmra.mrb[0].mxu0 %v39
  %v270 = vpop.f32.mrb[0].mxu0
  %v271 = vadd.f32 0.0, %v270
  %v272 = vpop.f32.mrb[0].mxu0
  %273 = vmatprep.mubr.f32.mxu0 0.0
  %274 = vmatmul.mubr.f32.gmra.mrb[0].mxu0 %v40
  %v275 = vpop.f32.mrb[0].mxu0
  %v276 = vadd.f32 0.0, %v275
  %v277 = vpop.f32.mrb[0].mxu0
  %278 = vmatprep.mubr.f32.mxu0 0.0
  %279 = vmatmul.mubr.f32.gmra.mrb[0].mxu0 %v41
  %v280 = vpop.f32.mrb[0].mxu0
  %v281 = vadd.f32 0.0, %v280
  %v282 = vpop.f32.mrb[0].mxu0
  %283 = vmatprep.mubr.f32.mxu0 0.0
  %284 = vmatmul.mubr.f32.gmra.mrb[0].mxu0 %v42
  %v285 = vpop.f32.mrb[0].mxu0
  %v286 = vadd.f32 0.0, %v285
  %v287 = vpop.f32.mrb[0].mxu0
  %288 = vmatprep.mubr.f32.mxu0 0.0
  %289 = vmatmul.mubr.f32.gmra.mrb[0].mxu0 %v43
  %v290 = vpop.f32.mrb[0].mxu0
  %v291 = vadd.f32 0.0, %v290
  %v292 = vpop.f32.mrb[0].mxu0
  %293 = vmatprep.mubr.f32.mxu0 0.0
  %294 = vmatmul.mubr.f32.gmra.mrb[0].mxu0 %v44
  %v295 = vpop.f32.mrb[0].mxu0
  %v296 = vadd.f32 0.0, %v295
  %v297 = vpop.f32.mrb[0].mxu0
  %298 = vmatprep.mubr.f32.mxu0 0.0
  %299 = vmatmul.mubr.f32.gmra.mrb[0].mxu0 %v45
  %v300 = vpop.f32.mrb[0].mxu0
  %v301 = vadd.f32 0.0, %v300
  %v302 = vpop.f32.mrb[0].mxu0
  %303 = vmatprep.mubr.f32.mxu0 0.0
  %304 = vmatmul.mubr.f32.gmra.mrb[0].mxu0 %v46
  %v305 = vpop.f32.mrb[0].mxu0
  %v306 = vadd.f32 0.0, %v305
  %v307 = vpop.f32.mrb[0].mxu0
  %308 = vmatprep.mubr.f32.mxu0 0.0
  %309 = vmatmul.mubr.f32.gmra.mrb[0].mxu0 %v47
  %v310 = vpop.f32.mrb[0].mxu0
  %v311 = vadd.f32 0.0, %v310
  %v312 = vpop.f32.mrb[0].mxu0
  %313 = vmatprep.mubr.f32.mxu0 0.0
  %314 = vmatmul.mubr.f32.gmra.mrb[0].mxu0 %v48
  %v315 = vpop.f32.mrb[0].mxu0
  %v316 = vadd.f32 0.0, %v315
  %v317 = vpop.f32.mrb[0].mxu0
  %318 = vmatprep.mubr.f32.mxu0 0.0
  %319 = vmatmul.mubr.f32.gmra.mrb[0].mxu0 %v49
  %v320 = vpop.f32.mrb[0].mxu0
  %v321 = vadd.f32 0.0, %v320
  %v322 = vpop.f32.mrb[0].mxu0
  %323 = vmatprep.mubr.f32.mxu0 0.0
  %324 = vmatmul.mubr.f32.gmra.mrb[0].mxu0 %v50
  %v325 = vpop.f32.mrb[0].mxu0
  %v326 = vadd.f32 0.0, %v325
  %v327 = vpop.f32.mrb[0].mxu0
  %328 = vmatprep.mubr.f32.mxu0 0.0
  %329 = vmatmul.mubr.f32.gmra.mrb[0].mxu0 %v51
  %v330 = vpop.f32.mrb[0].mxu0
  %v331 = vadd.f32 0.0, %v330
  %v332 = vpop.f32.mrb[0].mxu0
  %333 = vmatprep.mubr.f32.mxu0 0.0
  %334 = vmatmul.mubr.f32.gmra.mrb[0].mxu0 %v52
  %v335 = vpop.f32.mrb[0].mxu0
  %v336 = vadd.f32 0.0, %v335
  %v337 = vpop.f32.mrb[0].mxu0
  %338 = vmatprep.mubr.f32.mxu0 0.0
  %339 = vmatmul.mubr.f32.gmra.mrb[0].mxu0 %v53
  %v340 = vpop.f32.mrb[0].mxu0
  %v341 = vadd.f32 0.0, %v340
  %v342 = vpop.f32.mrb[0].mxu0
  %343 = vmatprep.mubr.f32.mxu0 0.0
  %344 = vmatmul.mubr.f32.gmra.mrb[0].mxu0 %v54
  %v345 = vpop.f32.mrb[0].mxu0
  %v346 = vadd.f32 0.0, %v345
  %v347 = vpop.f32.mrb[0].mxu0
  %348 = vmatprep.mubr.f32.mxu0 0.0
  %349 = vmatmul.mubr.f32.gmra.mrb[0].mxu0 %v55
  %v350 = vpop.f32.mrb[0].mxu0
  %v351 = vadd.f32 0.0, %v350
  %v352 = vpop.f32.mrb[0].mxu0
  %353 = vmatprep.mubr.f32.mxu0 0.0
  %354 = vmatmul.mubr.f32.gmra.mrb[0].mxu0 %v56
  %v355 = vpop.f32.mrb[0].mxu0
  %v356 = vadd.f32 0.0, %v355
  %v357 = vpop.f32.mrb[0].mxu0
  %358 = vmatprep.mubr.f32.mxu0 0.0
  %359 = vmatmul.mubr.f32.gmra.mrb[0].mxu0 %v57
  %v360 = vpop.f32.mrb[0].mxu0
  %v361 = vadd.f32 0.0, %v360
  %v362 = vpop.f32.mrb[0].mxu0
  %363 = vmatprep.mubr.f32.mxu0 0.0
  %364 = vmatmul.mubr.f32.gmra.mrb[0].mxu0 %v58
  %v365 = vpop.f32.mrb[0].mxu0
  %v366 = vadd.f32 0.0, %v365
  %v367 = vpop.f32.mrb[0].mxu0
  %368 = vmatprep.mubr.f32.mxu0 0.0
  %369 = vmatmul.mubr.f32.gmra.mrb[0].mxu0 %v59
  %v370 = vpop.f32.mrb[0].mxu0
  %v371 = vadd.f32 0.0, %v370
  %v372 = vpop.f32.mrb[0].mxu0
  %373 = vmatprep.mubr.f32.mxu0 0.0
  %374 = vmatmul.mubr.f32.gmra.mrb[0].mxu0 %v60
  %v375 = vpop.f32.mrb[0].mxu0
  %v376 = vadd.f32 0.0, %v375
  %v377 = vpop.f32.mrb[0].mxu0
  %378 = vmatprep.mubr.f32.mxu0 0.0
  %379 = vmatmul.mubr.f32.gmra.mrb[0].mxu0 %v61
  %v380 = vpop.f32.mrb[0].mxu0
  %v381 = vadd.f32 0.0, %v380
  %v382 = vpop.f32.mrb[0].mxu0
  %383 = vmatprep.mubr.f32.mxu0 0.0
  %384 = vmatmul.mubr.f32.gmra.mrb[0].mxu0 %v62
  %v385 = vpop.f32.mrb[0].mxu0
  %v386 = vadd.f32 0.0, %v385
  %v387 = vpop.f32.mrb[0].mxu0
  %388 = vdwg.mxu0
  %389 = vrot.lane.b32.xlu0 %v146, 64
  %v390 = vpop.permute.xlu0 %389
  %391 = vrot.lane.b32.xlu0 %v151, 64
  %v392 = vpop.permute.xlu0 %391
  %393 = vrot.lane.b32.xlu0 %v156, 64
  %v394 = vpop.permute.xlu0 %393
  %395 = vrot.lane.b32.xlu0 %v161, 64
  %v396 = vpop.permute.xlu0 %395
  %397 = vrot.lane.b32.xlu0 %v166, 64
  %v398 = vpop.permute.xlu0 %397
  %399 = vrot.lane.b32.xlu0 %v171, 64
  %v400 = vpop.permute.xlu0 %399
  %401 = vrot.lane.b32.xlu0 %v176, 64
  %v402 = vpop.permute.xlu0 %401
  %403 = vrot.lane.b32.xlu0 %v181, 64
  %v404 = vpop.permute.xlu0 %403
  %405 = vrot.lane.b32.xlu0 %v186, 64
  %v406 = vpop.permute.xlu0 %405
  %407 = vrot.lane.b32.xlu0 %v191, 64
  %v408 = vpop.permute.xlu0 %407
  %409 = vrot.lane.b32.xlu0 %v196, 64
  %v410 = vpop.permute.xlu0 %409
  %411 = vrot.lane.b32.xlu0 %v201, 64
  %v412 = vpop.permute.xlu0 %411
  %413 = vrot.lane.b32.xlu0 %v206, 64
  %v414 = vpop.permute.xlu0 %413
  %415 = vrot.lane.b32.xlu0 %v211, 64
  %v416 = vpop.permute.xlu0 %415
  %417 = vrot.lane.b32.xlu0 %v216, 64
  %v418 = vpop.permute.xlu0 %417
  %419 = vrot.lane.b32.xlu0 %v221, 64
  %v420 = vpop.permute.xlu0 %419
  %421 = vrot.lane.b32.xlu0 %v226, 64
  %v422 = vpop.permute.xlu0 %421
  %423 = vrot.lane.b32.xlu0 %v231, 64
  %v424 = vpop.permute.xlu0 %423
  %425 = vrot.lane.b32.xlu0 %v236, 64
  %v426 = vpop.permute.xlu0 %425
  %427 = vrot.lane.b32.xlu0 %v241, 64
  %v428 = vpop.permute.xlu0 %427
  %429 = vrot.lane.b32.xlu0 %v246, 64
  %v430 = vpop.permute.xlu0 %429
  %431 = vrot.lane.b32.xlu0 %v251, 64
  %v432 = vpop.permute.xlu0 %431
  %433 = vrot.lane.b32.xlu0 %v256, 64
  %v434 = vpop.permute.xlu0 %433
  %435 = vrot.lane.b32.xlu0 %v261, 64
  %v436 = vpop.permute.xlu0 %435
  %437 = vrot.lane.b32.xlu0 %v266, 64
  %v438 = vpop.permute.xlu0 %437
  %439 = vrot.lane.b32.xlu0 %v271, 64
  %v440 = vpop.permute.xlu0 %439
  %441 = vrot.lane.b32.xlu0 %v276, 64
  %v442 = vpop.permute.xlu0 %441
  %443 = vrot.lane.b32.xlu0 %v281, 64
  %v444 = vpop.permute.xlu0 %443
  %445 = vrot.lane.b32.xlu0 %v286, 64
  %v446 = vpop.permute.xlu0 %445
  %447 = vrot.lane.b32.xlu0 %v291, 64
  %v448 = vpop.permute.xlu0 %447
  %449 = vrot.lane.b32.xlu0 %v296, 64
  %v450 = vpop.permute.xlu0 %449
  %451 = vrot.lane.b32.xlu0 %v301, 64
  %v452 = vpop.permute.xlu0 %451
  %453 = vrot.lane.b32.xlu0 %v306, 64
  %v454 = vpop.permute.xlu0 %453
  %455 = vrot.lane.b32.xlu0 %v311, 64
  %v456 = vpop.permute.xlu0 %455
  %457 = vrot.lane.b32.xlu0 %v316, 64
  %v458 = vpop.permute.xlu0 %457
  %459 = vrot.lane.b32.xlu0 %v321, 64
  %v460 = vpop.permute.xlu0 %459
  %461 = vrot.lane.b32.xlu0 %v326, 64
  %v462 = vpop.permute.xlu0 %461
  %463 = vrot.lane.b32.xlu0 %v331, 64
  %v464 = vpop.permute.xlu0 %463
  %465 = vrot.lane.b32.xlu0 %v336, 64
  %v466 = vpop.permute.xlu0 %465
  %467 = vrot.lane.b32.xlu0 %v341, 64
  %v468 = vpop.permute.xlu0 %467
  %469 = vrot.lane.b32.xlu0 %v346, 64
  %v470 = vpop.permute.xlu0 %469
  %471 = vrot.lane.b32.xlu0 %v351, 64
  %v472 = vpop.permute.xlu0 %471
  %473 = vrot.lane.b32.xlu0 %v356, 64
  %v474 = vpop.permute.xlu0 %473
  %475 = vrot.lane.b32.xlu0 %v361, 64
  %v476 = vpop.permute.xlu0 %475
  %477 = vrot.lane.b32.xlu0 %v366, 64
  %v478 = vpop.permute.xlu0 %477
  %479 = vrot.lane.b32.xlu0 %v371, 64
  %v480 = vpop.permute.xlu0 %479
  %481 = vrot.lane.b32.xlu0 %v376, 64
  %v482 = vpop.permute.xlu0 %481
  %483 = vrot.lane.b32.xlu0 %v381, 64
  %v484 = vpop.permute.xlu0 %483
  %485 = vrot.lane.b32.xlu0 %v386, 64
  %v486 = vpop.permute.xlu0 %485
  %v487 = vmax.f32 %v146, %v390
  %v488 = vmax.f32 %v151, %v392
  %v489 = vmax.f32 %v156, %v394
  %v490 = vmax.f32 %v161, %v396
  %v491 = vmax.f32 %v166, %v398
  %v492 = vmax.f32 %v171, %v400
  %v493 = vmax.f32 %v176, %v402
  %v494 = vmax.f32 %v181, %v404
  %v495 = vmax.f32 %v186, %v406
  %v496 = vmax.f32 %v191, %v408
  %v497 = vmax.f32 %v196, %v410
  %v498 = vmax.f32 %v201, %v412
  %v499 = vmax.f32 %v206, %v414
  %v500 = vmax.f32 %v211, %v416
  %v501 = vmax.f32 %v216, %v418
  %v502 = vmax.f32 %v221, %v420
  %v503 = vmax.f32 %v226, %v422
  %v504 = vmax.f32 %v231, %v424
  %v505 = vmax.f32 %v236, %v426
  %v506 = vmax.f32 %v241, %v428
  %v507 = vmax.f32 %v246, %v430
  %v508 = vmax.f32 %v251, %v432
  %v509 = vmax.f32 %v256, %v434
  %v510 = vmax.f32 %v261, %v436
  %v511 = vmax.f32 %v266, %v438
  %v512 = vmax.f32 %v271, %v440
  %v513 = vmax.f32 %v276, %v442
  %v514 = vmax.f32 %v281, %v444
  %v515 = vmax.f32 %v286, %v446
  %v516 = vmax.f32 %v291, %v448
  %v517 = vmax.f32 %v296, %v450
  %v518 = vmax.f32 %v301, %v452
  %v519 = vmax.f32 %v306, %v454
  %v520 = vmax.f32 %v311, %v456
  %v521 = vmax.f32 %v316, %v458
  %v522 = vmax.f32 %v321, %v460
  %v523 = vmax.f32 %v326, %v462
  %v524 = vmax.f32 %v331, %v464
  %v525 = vmax.f32 %v336, %v466
  %v526 = vmax.f32 %v341, %v468
  %v527 = vmax.f32 %v346, %v470
  %v528 = vmax.f32 %v351, %v472
  %v529 = vmax.f32 %v356, %v474
  %v530 = vmax.f32 %v361, %v476
  %v531 = vmax.f32 %v366, %v478
  %v532 = vmax.f32 %v371, %v480
  %v533 = vmax.f32 %v376, %v482
  %v534 = vmax.f32 %v381, %v484
  %v535 = vmax.f32 %v386, %v486
  %536 = vrot.lane.b32.xlu0 %v487, 32
  %v537 = vpop.permute.xlu0 %536
  %538 = vrot.lane.b32.xlu0 %v488, 32
  %v539 = vpop.permute.xlu0 %538
  %540 = vrot.lane.b32.xlu0 %v489, 32
  %v541 = vpop.permute.xlu0 %540
  %542 = vrot.lane.b32.xlu0 %v490, 32
  %v543 = vpop.permute.xlu0 %542
  %544 = vrot.lane.b32.xlu0 %v491, 32
  %v545 = vpop.permute.xlu0 %544
  %546 = vrot.lane.b32.xlu0 %v492, 32
  %v547 = vpop.permute.xlu0 %546
  %548 = vrot.lane.b32.xlu0 %v493, 32
  %v549 = vpop.permute.xlu0 %548
  %550 = vrot.lane.b32.xlu0 %v494, 32
  %v551 = vpop.permute.xlu0 %550
  %552 = vrot.lane.b32.xlu0 %v495, 32
  %v553 = vpop.permute.xlu0 %552
  %554 = vrot.lane.b32.xlu0 %v496, 32
  %v555 = vpop.permute.xlu0 %554
  %556 = vrot.lane.b32.xlu0 %v497, 32
  %v557 = vpop.permute.xlu0 %556
  %558 = vrot.lane.b32.xlu0 %v498, 32
  %v559 = vpop.permute.xlu0 %558
  %560 = vrot.lane.b32.xlu0 %v499, 32
  %v561 = vpop.permute.xlu0 %560
  %562 = vrot.lane.b32.xlu0 %v500, 32
  %v563 = vpop.permute.xlu0 %562
  %564 = vrot.lane.b32.xlu0 %v501, 32
  %v565 = vpop.permute.xlu0 %564
  %566 = vrot.lane.b32.xlu0 %v502, 32
  %v567 = vpop.permute.xlu0 %566
  %568 = vrot.lane.b32.xlu0 %v503, 32
  %v569 = vpop.permute.xlu0 %568
  %570 = vrot.lane.b32.xlu0 %v504, 32
  %v571 = vpop.permute.xlu0 %570
  %572 = vrot.lane.b32.xlu0 %v505, 32
  %v573 = vpop.permute.xlu0 %572
  %574 = vrot.lane.b32.xlu0 %v506, 32
  %v575 = vpop.permute.xlu0 %574
  %576 = vrot.lane.b32.xlu0 %v507, 32
  %v577 = vpop.permute.xlu0 %576
  %578 = vrot.lane.b32.xlu0 %v508, 32
  %v579 = vpop.permute.xlu0 %578
  %580 = vrot.lane.b32.xlu0 %v509, 32
  %v581 = vpop.permute.xlu0 %580
  %582 = vrot.lane.b32.xlu0 %v510, 32
  %v583 = vpop.permute.xlu0 %582
  %584 = vrot.lane.b32.xlu0 %v511, 32
  %v585 = vpop.permute.xlu0 %584
  %586 = vrot.lane.b32.xlu0 %v512, 32
  %v587 = vpop.permute.xlu0 %586
  %588 = vrot.lane.b32.xlu0 %v513, 32
  %v589 = vpop.permute.xlu0 %588
  %590 = vrot.lane.b32.xlu0 %v514, 32
  %v591 = vpop.permute.xlu0 %590
  %592 = vrot.lane.b32.xlu0 %v515, 32
  %v593 = vpop.permute.xlu0 %592
  %594 = vrot.lane.b32.xlu0 %v516, 32
  %v595 = vpop.permute.xlu0 %594
  %596 = vrot.lane.b32.xlu0 %v517, 32
  %v597 = vpop.permute.xlu0 %596
  %598 = vrot.lane.b32.xlu0 %v518, 32
  %v599 = vpop.permute.xlu0 %598
  %600 = vrot.lane.b32.xlu0 %v519, 32
  %v601 = vpop.permute.xlu0 %600
  %602 = vrot.lane.b32.xlu0 %v520, 32
  %v603 = vpop.permute.xlu0 %602
  %604 = vrot.lane.b32.xlu0 %v521, 32
  %v605 = vpop.permute.xlu0 %604
  %606 = vrot.lane.b32.xlu0 %v522, 32
  %v607 = vpop.permute.xlu0 %606
  %608 = vrot.lane.b32.xlu0 %v523, 32
  %v609 = vpop.permute.xlu0 %608
  %610 = vrot.lane.b32.xlu0 %v524, 32
  %v611 = vpop.permute.xlu0 %610
  %612 = vrot.lane.b32.xlu0 %v525, 32
  %v613 = vpop.permute.xlu0 %612
  %614 = vrot.lane.b32.xlu0 %v526, 32
  %v615 = vpop.permute.xlu0 %614
  %616 = vrot.lane.b32.xlu0 %v527, 32
  %v617 = vpop.permute.xlu0 %616
  %618 = vrot.lane.b32.xlu0 %v528, 32
  %v619 = vpop.permute.xlu0 %618
  %620 = vrot.lane.b32.xlu0 %v529, 32
  %v621 = vpop.permute.xlu0 %620
  %622 = vrot.lane.b32.xlu0 %v530, 32
  %v623 = vpop.permute.xlu0 %622
  %624 = vrot.lane.b32.xlu0 %v531, 32
  %v625 = vpop.permute.xlu0 %624
  %626 = vrot.lane.b32.xlu0 %v532, 32
  %v627 = vpop.permute.xlu0 %626
  %628 = vrot.lane.b32.xlu0 %v533, 32
  %v629 = vpop.permute.xlu0 %628
  %630 = vrot.lane.b32.xlu0 %v534, 32
  %v631 = vpop.permute.xlu0 %630
  %632 = vrot.lane.b32.xlu0 %v535, 32
  %v633 = vpop.permute.xlu0 %632
  %v634 = vmax.f32 %v487, %v537
  %v635 = vmax.f32 %v488, %v539
  %v636 = vmax.f32 %v489, %v541
  %v637 = vmax.f32 %v490, %v543
  %v638 = vmax.f32 %v491, %v545
  %v639 = vmax.f32 %v492, %v547
  %v640 = vmax.f32 %v493, %v549
  %v641 = vmax.f32 %v494, %v551
  %v642 = vmax.f32 %v495, %v553
  %v643 = vmax.f32 %v496, %v555
  %v644 = vmax.f32 %v497, %v557
  %v645 = vmax.f32 %v498, %v559
  %v646 = vmax.f32 %v499, %v561
  %v647 = vmax.f32 %v500, %v563
  %v648 = vmax.f32 %v501, %v565
  %v649 = vmax.f32 %v502, %v567
  %v650 = vmax.f32 %v503, %v569
  %v651 = vmax.f32 %v504, %v571
  %v652 = vmax.f32 %v505, %v573
  %v653 = vmax.f32 %v506, %v575
  %v654 = vmax.f32 %v507, %v577
  %v655 = vmax.f32 %v508, %v579
  %v656 = vmax.f32 %v509, %v581
  %v657 = vmax.f32 %v510, %v583
  %v658 = vmax.f32 %v511, %v585
  %v659 = vmax.f32 %v512, %v587
  %v660 = vmax.f32 %v513, %v589
  %v661 = vmax.f32 %v514, %v591
  %v662 = vmax.f32 %v515, %v593
  %v663 = vmax.f32 %v516, %v595
  %v664 = vmax.f32 %v517, %v597
  %v665 = vmax.f32 %v518, %v599
  %v666 = vmax.f32 %v519, %v601
  %v667 = vmax.f32 %v520, %v603
  %v668 = vmax.f32 %v521, %v605
  %v669 = vmax.f32 %v522, %v607
  %v670 = vmax.f32 %v523, %v609
  %v671 = vmax.f32 %v524, %v611
  %v672 = vmax.f32 %v525, %v613
  %v673 = vmax.f32 %v526, %v615
  %v674 = vmax.f32 %v527, %v617
  %v675 = vmax.f32 %v528, %v619
  %v676 = vmax.f32 %v529, %v621
  %v677 = vmax.f32 %v530, %v623
  %v678 = vmax.f32 %v531, %v625
  %v679 = vmax.f32 %v532, %v627
  %v680 = vmax.f32 %v533, %v629
  %v681 = vmax.f32 %v534, %v631
  %v682 = vmax.f32 %v535, %v633
  %v683 = vld [vmem:[%s2] sm:$0x1]
  %v685 = vlaneseq
  %v686 = vshrl.u32 %v685, 7
  %v687 = vsub.s32 0, %v686
  %v688 = vrot.slane %v683, %v687
  %v690 = vadd.f32 %v634, %v688
  %v691 = vadd.f32 %v635, %v688
  %v692 = vadd.f32 %v636, %v688
  %v693 = vadd.f32 %v637, %v688
  %v694 = vadd.f32 %v638, %v688
  %v695 = vadd.f32 %v639, %v688
  %v696 = vadd.f32 %v640, %v688
  %v697 = vadd.f32 %v641, %v688
  %v698 = vadd.f32 %v642, %v688
  %v699 = vadd.f32 %v643, %v688
  %v700 = vadd.f32 %v644, %v688
  %v701 = vadd.f32 %v645, %v688
  %v702 = vadd.f32 %v646, %v688
  %v703 = vadd.f32 %v647, %v688
  %v704 = vadd.f32 %v648, %v688
  %v705 = vadd.f32 %v649, %v688
  %v706 = vadd.f32 %v650, %v688
  %v707 = vadd.f32 %v651, %v688
  %v708 = vadd.f32 %v652, %v688
  %v709 = vadd.f32 %v653, %v688
  %v710 = vadd.f32 %v654, %v688
  %v711 = vadd.f32 %v655, %v688
  %v712 = vadd.f32 %v656, %v688
  %v713 = vadd.f32 %v657, %v688
  %v714 = vadd.f32 %v658, %v688
  %v715 = vadd.f32 %v659, %v688
  %v716 = vadd.f32 %v660, %v688
  %v717 = vadd.f32 %v661, %v688
  %v718 = vadd.f32 %v662, %v688
  %v719 = vadd.f32 %v663, %v688
  %v720 = vadd.f32 %v664, %v688
  %v721 = vadd.f32 %v665, %v688
  %v722 = vadd.f32 %v666, %v688
  %v723 = vadd.f32 %v667, %v688
  %v724 = vadd.f32 %v668, %v688
  %v725 = vadd.f32 %v669, %v688
  %v726 = vadd.f32 %v670, %v688
  %v727 = vadd.f32 %v671, %v688
  %v728 = vadd.f32 %v672, %v688
  %v729 = vadd.f32 %v673, %v688
  %v730 = vadd.f32 %v674, %v688
  %v731 = vadd.f32 %v675, %v688
  %v732 = vadd.f32 %v676, %v688
  %v733 = vadd.f32 %v677, %v688
  %v734 = vadd.f32 %v678, %v688
  %v735 = vadd.f32 %v679, %v688
  %v736 = vadd.f32 %v680, %v688
  %v737 = vadd.f32 %v681, %v688
  %v738 = vadd.f32 %v682, %v688
  %v739 = vmax.f32 %v690, 0.0
  %v740 = vmax.f32 %v691, 0.0
  %v741 = vmax.f32 %v692, 0.0
  %v742 = vmax.f32 %v693, 0.0
  %v743 = vmax.f32 %v694, 0.0
  %v744 = vmax.f32 %v695, 0.0
  %v745 = vmax.f32 %v696, 0.0
  %v746 = vmax.f32 %v697, 0.0
  %v747 = vmax.f32 %v698, 0.0
  %v748 = vmax.f32 %v699, 0.0
  %v749 = vmax.f32 %v700, 0.0
  %v750 = vmax.f32 %v701, 0.0
  %v751 = vmax.f32 %v702, 0.0
  %v752 = vmax.f32 %v703, 0.0
  %v753 = vmax.f32 %v704, 0.0
  %v754 = vmax.f32 %v705, 0.0
  %v755 = vmax.f32 %v706, 0.0
  %v756 = vmax.f32 %v707, 0.0
  %v757 = vmax.f32 %v708, 0.0
  %v758 = vmax.f32 %v709, 0.0
  %v759 = vmax.f32 %v710, 0.0
  %v760 = vmax.f32 %v711, 0.0
  %v761 = vmax.f32 %v712, 0.0
  %v762 = vmax.f32 %v713, 0.0
  %v763 = vmax.f32 %v714, 0.0
  %v764 = vmax.f32 %v715, 0.0
  %v765 = vmax.f32 %v716, 0.0
  %v766 = vmax.f32 %v717, 0.0
  %v767 = vmax.f32 %v718, 0.0
  %v768 = vmax.f32 %v719, 0.0
  %v769 = vmax.f32 %v720, 0.0
  %v770 = vmax.f32 %v721, 0.0
  %v771 = vmax.f32 %v722, 0.0
  %v772 = vmax.f32 %v723, 0.0
  %v773 = vmax.f32 %v724, 0.0
  %v774 = vmax.f32 %v725, 0.0
  %v775 = vmax.f32 %v726, 0.0
  %v776 = vmax.f32 %v727, 0.0
  %v777 = vmax.f32 %v728, 0.0
  %v778 = vmax.f32 %v729, 0.0
  %v779 = vmax.f32 %v730, 0.0
  %v780 = vmax.f32 %v731, 0.0
  %v781 = vmax.f32 %v732, 0.0
  %v782 = vmax.f32 %v733, 0.0
  %v783 = vmax.f32 %v734, 0.0
  %v784 = vmax.f32 %v735, 0.0
  %v785 = vmax.f32 %v736, 0.0
  %v786 = vmax.f32 %v737, 0.0
  %v787 = vmax.f32 %v738, 0.0
  %788 = vst [vmem:[%s3] sm:$0xff] %v739
  %789 = vst [vmem:[%s3 + $0x8] sm:$0xff] %v740
  %790 = vst [vmem:[%s3 + $0x10] sm:$0xff] %v741
  %791 = vst [vmem:[%s3 + $0x18] sm:$0xff] %v742
  %792 = vst [vmem:[%s3 + $0x20] sm:$0xff] %v743
  %793 = vst [vmem:[%s3 + $0x28] sm:$0xff] %v744
  %794 = vst [vmem:[%s3 + $0x30] sm:$0xff] %v745
  %795 = vst [vmem:[%s3 + $0x38] sm:$0xff] %v746
  %796 = vst [vmem:[%s3 + $0x40] sm:$0xff] %v747
  %797 = vst [vmem:[%s3 + $0x48] sm:$0xff] %v748
  %798 = vst [vmem:[%s3 + $0x50] sm:$0xff] %v749
  %799 = vst [vmem:[%s3 + $0x58] sm:$0xff] %v750
  %800 = vst [vmem:[%s3 + $0x60] sm:$0xff] %v751
  %801 = vst [vmem:[%s3 + $0x68] sm:$0xff] %v752
  %802 = vst [vmem:[%s3 + $0x70] sm:$0xff] %v753
  %803 = vst [vmem:[%s3 + $0x78] sm:$0xff] %v754
  %804 = vst [vmem:[%s3 + $0x80] sm:$0xff] %v755
  %805 = vst [vmem:[%s3 + $0x88] sm:$0xff] %v756
  %806 = vst [vmem:[%s3 + $0x90] sm:$0xff] %v757
  %807 = vst [vmem:[%s3 + $0x98] sm:$0xff] %v758
  %808 = vst [vmem:[%s3 + $0xa0] sm:$0xff] %v759
  %809 = vst [vmem:[%s3 + $0xa8] sm:$0xff] %v760
  %810 = vst [vmem:[%s3 + $0xb0] sm:$0xff] %v761
  %811 = vst [vmem:[%s3 + $0xb8] sm:$0xff] %v762
  %812 = vst [vmem:[%s3 + $0xc0] sm:$0xff] %v763
  %813 = vst [vmem:[%s3 + $0xc8] sm:$0xff] %v764
  %814 = vst [vmem:[%s3 + $0xd0] sm:$0xff] %v765
  %815 = vst [vmem:[%s3 + $0xd8] sm:$0xff] %v766
  %816 = vst [vmem:[%s3 + $0xe0] sm:$0xff] %v767
  %817 = vst [vmem:[%s3 + $0xe8] sm:$0xff] %v768
  %818 = vst [vmem:[%s3 + $0xf0] sm:$0xff] %v769
  %819 = vst [vmem:[%s3 + $0xf8] sm:$0xff] %v770
  %820 = vst [vmem:[%s3 + $0x100] sm:$0xff] %v771
  %821 = vst [vmem:[%s3 + $0x108] sm:$0xff] %v772
  %822 = vst [vmem:[%s3 + $0x110] sm:$0xff] %v773
  %823 = vst [vmem:[%s3 + $0x118] sm:$0xff] %v774
  %824 = vst [vmem:[%s3 + $0x120] sm:$0xff] %v775
  %825 = vst [vmem:[%s3 + $0x128] sm:$0xff] %v776
  %826 = vst [vmem:[%s3 + $0x130] sm:$0xff] %v777
  %827 = vst [vmem:[%s3 + $0x138] sm:$0xff] %v778
  %828 = vst [vmem:[%s3 + $0x140] sm:$0xff] %v779
  %829 = vst [vmem:[%s3 + $0x148] sm:$0xff] %v780
  %830 = vst [vmem:[%s3 + $0x150] sm:$0xff] %v781
  %831 = vst [vmem:[%s3 + $0x158] sm:$0xff] %v782
  %832 = vst [vmem:[%s3 + $0x160] sm:$0xff] %v783
  %833 = vst [vmem:[%s3 + $0x168] sm:$0xff] %v784
  %834 = vst [vmem:[%s3 + $0x170] sm:$0xff] %v785
  %835 = vst [vmem:[%s3 + $0x178] sm:$0xff] %v786
  %836 = vst [vmem:[%s3 + $0x180] sm:$0xff] %v787
  // Predicated region
  $region14: #{_lambda_.2} parent=0 // pred_check
    _
  $region15: #{_lambda_.2} parent=0 // pred_check_branch
    %838 = sbr.rel (0) target = $region17
  $region16: #{_lambda_.2} parent=0 // pred_region
    _
  $region17: #{_lambda_.2} parent=0 // pred_fallthru
    _
  // Predicated region
  $region18: #{_lambda_.2} parent=0 // pred_check
    _
  $region19: #{_lambda_.2} parent=0 // pred_check_branch
    %840 = sbr.rel (0) target = $region21
  $region20: #{_lambda_.2} parent=0 // pred_region
    _
  $region21: #{_lambda_.2} parent=0 // pred_fallthru
    _

// kernel: _lambda_.3
$region0: #{_lambda_.3}
  #allocation0 [shape = 'u32[]', space=smem, size = 0x4, offset = 0x4, fixed_abs, tag = 'smem constant byte address 0x4 - core index']
  #allocation1 [shape = 'u32[144,128]{1,0:T(1,128)}', space=vmem, size = 0x12000, scoped, tag = 'internal scratch']
  %s0 = inlined_call_operand.vmem [shape: f32[200,640], index: 0, kind: input, shape index: {}]
  %s1 = inlined_call_operand.vmem [shape: f32[640,128], index: 1, kind: input, shape index: {}]
  %s2 = inlined_call_operand.vmem [shape: f32[1,128], index: 2, kind: input, shape index: {}]
  %s3 = inlined_call_operand.vmem [shape: f32[128,512], index: 3, kind: input, shape index: {}]
  %s4 = inlined_call_operand.vmem [shape: f32[200,512], index: 4, kind: input, shape index: {}]
  %s5 = inlined_call_operand.vmem [shape: f32[8,200], index: 5, kind: input, shape index: {}]
  %s6 = inlined_call_operand.vmem [shape: f32[512,128], index: 6, kind: input, shape index: {}]
  %s7 = inlined_call_operand.vmem [shape: f32[1,128], index: 7, kind: input, shape index: {}]
  %s8 = inlined_call_operand.vmem [shape: f32[128,128], index: 8, kind: input, shape index: {}]
  %s9 = inlined_call_operand.vmem [shape: f32[1,128], index: 9, kind: input, shape index: {}]
  %s10 = inlined_call_operand.vmem [shape: f32[8,128], index: 10, kind: output, shape index: {}]
  %s11 = sld [smem:[#allocation0]]
  $region50: #{_lambda_.3} parent=0
    _
  %s13 = ssub.s32 1, %s11
  %s14 = scalar_select 0, %s13, %s11
  // Predicated region
  $region2: #{_lambda_.3} parent=0 // pred_check
    _
  $region3: #{_lambda_.3} parent=0 // pred_check_branch
    %16 = sbr.rel (0) target = $region5
  $region4: #{_lambda_.3} parent=0 // pred_region
    _
  $region5: #{_lambda_.3} parent=0 // pred_fallthru
    _
  // Predicated region
  $region6: #{_lambda_.3} parent=0 // pred_check
    _
  $region7: #{_lambda_.3} parent=0 // pred_check_branch
    %18 = sbr.rel (0) target = $region9
  $region8: #{_lambda_.3} parent=0 // pred_region
    _
  $region9: #{_lambda_.3} parent=0 // pred_fallthru
    _
  // Predicated region
  $region10: #{_lambda_.3} parent=0 // pred_check
    _
  $region11: #{_lambda_.3} parent=0 // pred_check_branch
    %20 = sbr.rel (0) target = $region13
  $region12: #{_lambda_.3} parent=0 // pred_region
    _
  $region13: #{_lambda_.3} parent=0 // pred_fallthru
    _
  // Predicated region
  $region14: #{_lambda_.3} parent=0 // pred_check
    _
  $region15: #{_lambda_.3} parent=0 // pred_check_branch
    %22 = sbr.rel (0) target = $region17
  $region16: #{_lambda_.3} parent=0 // pred_region
    _
  $region17: #{_lambda_.3} parent=0 // pred_fallthru
    _
  // Predicated region
  $region18: #{_lambda_.3} parent=0 // pred_check
    _
  $region19: #{_lambda_.3} parent=0 // pred_check_branch
    %24 = sbr.rel (0) target = $region21
  $region20: #{_lambda_.3} parent=0 // pred_region
    _
  $region21: #{_lambda_.3} parent=0 // pred_fallthru
    _
  // Predicated region
  $region22: #{_lambda_.3} parent=0 // pred_check
    _
  $region23: #{_lambda_.3} parent=0 // pred_check_branch
    %26 = sbr.rel (0) target = $region25
  $region24: #{_lambda_.3} parent=0 // pred_region
    _
  $region25: #{_lambda_.3} parent=0 // pred_fallthru
    _
  // Predicated region
  $region26: #{_lambda_.3} parent=0 // pred_check
    _
  $region27: #{_lambda_.3} parent=0 // pred_check_branch
    %28 = sbr.rel (0) target = $region29
  $region28: #{_lambda_.3} parent=0 // pred_region
    _
  $region29: #{_lambda_.3} parent=0 // pred_fallthru
    _
  // Predicated region
  $region30: #{_lambda_.3} parent=0 // pred_check
    _
  $region31: #{_lambda_.3} parent=0 // pred_check_branch
    %30 = sbr.rel (0) target = $region33
  $region32: #{_lambda_.3} parent=0 // pred_region
    _
  $region33: #{_lambda_.3} parent=0 // pred_fallthru
    _
  // Predicated region
  $region34: #{_lambda_.3} parent=0 // pred_check
    _
  $region35: #{_lambda_.3} parent=0 // pred_check_branch
    %32 = sbr.rel (0) target = $region37
  $region36: #{_lambda_.3} parent=0 // pred_region
    _
  $region37: #{_lambda_.3} parent=0 // pred_fallthru
    _
  // Predicated region
  $region38: #{_lambda_.3} parent=0 // pred_check
    _
  $region39: #{_lambda_.3} parent=0 // pred_check_branch
    %34 = sbr.rel (0) target = $region41
  $region40: #{_lambda_.3} parent=0 // pred_region
    _
  $region41: #{_lambda_.3} parent=0 // pred_fallthru
    _
  %v35 = vld [vmem:[%s0] sm:$0xff]
  %v36 = vld [vmem:[%s0 + $0x8] sm:$0xff]
  %v37 = vld [vmem:[%s0 + $0x10] sm:$0xff]
  %v38 = vld [vmem:[%s0 + $0x18] sm:$0xff]
  %v39 = vld [vmem:[%s0 + $0x20] sm:$0xff]
  %v40 = vld [vmem:[%s0 + $0x28] sm:$0xff]
  %v41 = vld [vmem:[%s0 + $0x30] sm:$0xff]
  %v42 = vld [vmem:[%s0 + $0x38] sm:$0xff]
  %v43 = vld [vmem:[%s0 + $0x40] sm:$0xff]
  %v44 = vld [vmem:[%s0 + $0x48] sm:$0xff]
  %v45 = vld [vmem:[%s0 + $0x50] sm:$0xff]
  %v46 = vld [vmem:[%s0 + $0x58] sm:$0xff]
  %v47 = vld [vmem:[%s0 + $0x60] sm:$0xff]
  %v48 = vld [vmem:[%s0 + $0x68] sm:$0xff]
  %v49 = vld [vmem:[%s0 + $0x70] sm:$0xff]
  %v50 = vld [vmem:[%s0 + $0x78] sm:$0xff]
  %v51 = vld [vmem:[%s0 + $0x80] sm:$0xff]
  %v52 = vld [vmem:[%s0 + $0x88] sm:$0xff]
  %v53 = vld [vmem:[%s0 + $0x90] sm:$0xff]
  %v54 = vld [vmem:[%s0 + $0x98] sm:$0xff]
  %v55 = vld [vmem:[%s0 + $0xa0] sm:$0xff]
  %v56 = vld [vmem:[%s0 + $0xa8] sm:$0xff]
  %v57 = vld [vmem:[%s0 + $0xb0] sm:$0xff]
  %v58 = vld [vmem:[%s0 + $0xb8] sm:$0xff]
  %v59 = vld [vmem:[%s0 + $0xc0] sm:$0xff]
  %v60 = vld [vmem:[%s0 + $0xc8] sm:$0xff]
  %v61 = vld [vmem:[%s0 + $0xd0] sm:$0xff]
  %v62 = vld [vmem:[%s0 + $0xd8] sm:$0xff]
  %v63 = vld [vmem:[%s0 + $0xe0] sm:$0xff]
  %v64 = vld [vmem:[%s0 + $0xe8] sm:$0xff]
  %v65 = vld [vmem:[%s0 + $0xf0] sm:$0xff]
  %v66 = vld [vmem:[%s0 + $0xf8] sm:$0xff]
  %v67 = vld [vmem:[%s0 + $0x100] sm:$0xff]
  %v68 = vld [vmem:[%s0 + $0x108] sm:$0xff]
  %v69 = vld [vmem:[%s0 + $0x110] sm:$0xff]
  %v70 = vld [vmem:[%s0 + $0x118] sm:$0xff]
  %v71 = vld [vmem:[%s0 + $0x120] sm:$0xff]
  %v72 = vld [vmem:[%s0 + $0x128] sm:$0xff]
  %v73 = vld [vmem:[%s0 + $0x130] sm:$0xff]
  %v74 = vld [vmem:[%s0 + $0x138] sm:$0xff]
  %v75 = vld [vmem:[%s0 + $0x140] sm:$0xff]
  %v76 = vld [vmem:[%s0 + $0x148] sm:$0xff]
  %v77 = vld [vmem:[%s0 + $0x150] sm:$0xff]
  %v78 = vld [vmem:[%s0 + $0x158] sm:$0xff]
  %v79 = vld [vmem:[%s0 + $0x160] sm:$0xff]
  %v80 = vld [vmem:[%s0 + $0x168] sm:$0xff]
  %v81 = vld [vmem:[%s0 + $0x170] sm:$0xff]
  %v82 = vld [vmem:[%s0 + $0x178] sm:$0xff]
  %v83 = vld [vmem:[%s0 + $0x180] sm:$0xff]
  %v84 = vld [vmem:[%s0 + $0x188] sm:$0xff]
  %v85 = vld [vmem:[%s0 + $0x190] sm:$0xff]
  %v86 = vld [vmem:[%s0 + $0x198] sm:$0xff]
  %v87 = vld [vmem:[%s0 + $0x1a0] sm:$0xff]
  %v88 = vld [vmem:[%s0 + $0x1a8] sm:$0xff]
  %v89 = vld [vmem:[%s0 + $0x1b0] sm:$0xff]
  %v90 = vld [vmem:[%s0 + $0x1b8] sm:$0xff]
  %v91 = vld [vmem:[%s0 + $0x1c0] sm:$0xff]
  %v92 = vld [vmem:[%s0 + $0x1c8] sm:$0xff]
  %v93 = vld [vmem:[%s0 + $0x1d0] sm:$0xff]
  %v94 = vld [vmem:[%s0 + $0x1d8] sm:$0xff]
  %v95 = vld [vmem:[%s0 + $0x1e0] sm:$0xff]
  %v96 = vld [vmem:[%s0 + $0x1e8] sm:$0xff]
  %v97 = vld [vmem:[%s0 + $0x1f0] sm:$0xff]
  %v98 = vld [vmem:[%s0 + $0x1f8] sm:$0xff]
  %v99 = vld [vmem:[%s0 + $0x200] sm:$0xff]
  %v100 = vld [vmem:[%s0 + $0x208] sm:$0xff]
  %v101 = vld [vmem:[%s0 + $0x210] sm:$0xff]
  %v102 = vld [vmem:[%s0 + $0x218] sm:$0xff]
  %v103 = vld [vmem:[%s0 + $0x220] sm:$0xff]
  %v104 = vld [vmem:[%s0 + $0x228] sm:$0xff]
  %v105 = vld [vmem:[%s0 + $0x230] sm:$0xff]
  %v106 = vld [vmem:[%s0 + $0x238] sm:$0xff]
  %v107 = vld [vmem:[%s0 + $0x240] sm:$0xff]
  %v108 = vld [vmem:[%s0 + $0x248] sm:$0xff]
  %v109 = vld [vmem:[%s0 + $0x250] sm:$0xff]
  %v110 = vld [vmem:[%s0 + $0x258] sm:$0xff]
  %v111 = vld [vmem:[%s0 + $0x260] sm:$0xff]
  %v112 = vld [vmem:[%s0 + $0x268] sm:$0xff]
  %v113 = vld [vmem:[%s0 + $0x270] sm:$0xff]
  %v114 = vld [vmem:[%s0 + $0x278] sm:$0xff]
  %v115 = vld [vmem:[%s0 + $0x280] sm:$0xff]
  %v116 = vld [vmem:[%s0 + $0x288] sm:$0xff]
  %v117 = vld [vmem:[%s0 + $0x290] sm:$0xff]
  %v118 = vld [vmem:[%s0 + $0x298] sm:$0xff]
  %v119 = vld [vmem:[%s0 + $0x2a0] sm:$0xff]
  %v120 = vld [vmem:[%s0 + $0x2a8] sm:$0xff]
  %v121 = vld [vmem:[%s0 + $0x2b0] sm:$0xff]
  %v122 = vld [vmem:[%s0 + $0x2b8] sm:$0xff]
  %v123 = vld [vmem:[%s0 + $0x2c0] sm:$0xff]
  %v124 = vld [vmem:[%s0 + $0x2c8] sm:$0xff]
  %v125 = vld [vmem:[%s0 + $0x2d0] sm:$0xff]
  %v126 = vld [vmem:[%s0 + $0x2d8] sm:$0xff]
  %v127 = vld [vmem:[%s0 + $0x2e0] sm:$0xff]
  %v128 = vld [vmem:[%s0 + $0x2e8] sm:$0xff]
  %v129 = vld [vmem:[%s0 + $0x2f0] sm:$0xff]
  %v130 = vld [vmem:[%s0 + $0x2f8] sm:$0xff]
  %v131 = vld [vmem:[%s0 + $0x300] sm:$0xff]
  %v132 = vld [vmem:[%s0 + $0x308] sm:$0xff]
  %v133 = vld [vmem:[%s0 + $0x310] sm:$0xff]
  %v134 = vld [vmem:[%s0 + $0x318] sm:$0xff]
  %v135 = vld [vmem:[%s0 + $0x320] sm:$0xff]
  %v136 = vld [vmem:[%s0 + $0x328] sm:$0xff]
  %v137 = vld [vmem:[%s0 + $0x330] sm:$0xff]
  %v138 = vld [vmem:[%s0 + $0x338] sm:$0xff]
  %v139 = vld [vmem:[%s0 + $0x340] sm:$0xff]
  %v140 = vld [vmem:[%s0 + $0x348] sm:$0xff]
  %v141 = vld [vmem:[%s0 + $0x350] sm:$0xff]
  %v142 = vld [vmem:[%s0 + $0x358] sm:$0xff]
  %v143 = vld [vmem:[%s0 + $0x360] sm:$0xff]
  %v144 = vld [vmem:[%s0 + $0x368] sm:$0xff]
  %v145 = vld [vmem:[%s0 + $0x370] sm:$0xff]
  %v146 = vld [vmem:[%s0 + $0x378] sm:$0xff]
  %v147 = vld [vmem:[%s0 + $0x380] sm:$0xff]
  %v148 = vld [vmem:[%s0 + $0x388] sm:$0xff]
  %v149 = vld [vmem:[%s0 + $0x390] sm:$0xff]
  %v150 = vld [vmem:[%s0 + $0x398] sm:$0xff]
  %v151 = vld [vmem:[%s0 + $0x3a0] sm:$0xff]
  %v152 = vld [vmem:[%s0 + $0x3a8] sm:$0xff]
  %v153 = vld [vmem:[%s0 + $0x3b0] sm:$0xff]
  %v154 = vld [vmem:[%s0 + $0x3b8] sm:$0xff]
  %v155 = vld [vmem:[%s0 + $0x3c0] sm:$0xff]
  %v156 = vld [vmem:[%s0 + $0x3c8] sm:$0xff]
  %v157 = vld [vmem:[%s0 + $0x3d0] sm:$0xff]
  %v158 = vld [vmem:[%s0 + $0x3d8] sm:$0xff]
  %v159 = vld [vmem:[%s0 + $0x3e0] sm:$0xff]
  %v160 = vld [vmem:[%s1] sm:$0xff]
  %v161 = vld [vmem:[%s1 + $0x8] sm:$0xff]
  %v162 = vld [vmem:[%s1 + $0x10] sm:$0xff]
  %v163 = vld [vmem:[%s1 + $0x18] sm:$0xff]
  %v164 = vld [vmem:[%s1 + $0x20] sm:$0xff]
  %v165 = vld [vmem:[%s1 + $0x28] sm:$0xff]
  %v166 = vld [vmem:[%s1 + $0x30] sm:$0xff]
  %v167 = vld [vmem:[%s1 + $0x38] sm:$0xff]
  %v168 = vld [vmem:[%s1 + $0x40] sm:$0xff]
  %v169 = vld [vmem:[%s1 + $0x48] sm:$0xff]
  %v170 = vld [vmem:[%s1 + $0x50] sm:$0xff]
  %v171 = vld [vmem:[%s1 + $0x58] sm:$0xff]
  %v172 = vld [vmem:[%s1 + $0x60] sm:$0xff]
  %v173 = vld [vmem:[%s1 + $0x68] sm:$0xff]
  %v174 = vld [vmem:[%s1 + $0x70] sm:$0xff]
  %v175 = vld [vmem:[%s1 + $0x78] sm:$0xff]
  %v176 = vld [vmem:[%s1 + $0x80] sm:$0xff]
  %v177 = vld [vmem:[%s1 + $0x88] sm:$0xff]
  %v178 = vld [vmem:[%s1 + $0x90] sm:$0xff]
  %v179 = vld [vmem:[%s1 + $0x98] sm:$0xff]
  %v180 = vld [vmem:[%s1 + $0xa0] sm:$0xff]
  %v181 = vld [vmem:[%s1 + $0xa8] sm:$0xff]
  %v182 = vld [vmem:[%s1 + $0xb0] sm:$0xff]
  %v183 = vld [vmem:[%s1 + $0xb8] sm:$0xff]
  %v184 = vld [vmem:[%s1 + $0xc0] sm:$0xff]
  %v185 = vld [vmem:[%s1 + $0xc8] sm:$0xff]
  %v186 = vld [vmem:[%s1 + $0xd0] sm:$0xff]
  %v187 = vld [vmem:[%s1 + $0xd8] sm:$0xff]
  %v188 = vld [vmem:[%s1 + $0xe0] sm:$0xff]
  %v189 = vld [vmem:[%s1 + $0xe8] sm:$0xff]
  %v190 = vld [vmem:[%s1 + $0xf0] sm:$0xff]
  %v191 = vld [vmem:[%s1 + $0xf8] sm:$0xff]
  %v192 = vld [vmem:[%s1 + $0x100] sm:$0xff]
  %v193 = vld [vmem:[%s1 + $0x108] sm:$0xff]
  %v194 = vld [vmem:[%s1 + $0x110] sm:$0xff]
  %v195 = vld [vmem:[%s1 + $0x118] sm:$0xff]
  %v196 = vld [vmem:[%s1 + $0x120] sm:$0xff]
  %v197 = vld [vmem:[%s1 + $0x128] sm:$0xff]
  %v198 = vld [vmem:[%s1 + $0x130] sm:$0xff]
  %v199 = vld [vmem:[%s1 + $0x138] sm:$0xff]
  %v200 = vld [vmem:[%s1 + $0x140] sm:$0xff]
  %v201 = vld [vmem:[%s1 + $0x148] sm:$0xff]
  %v202 = vld [vmem:[%s1 + $0x150] sm:$0xff]
  %v203 = vld [vmem:[%s1 + $0x158] sm:$0xff]
  %v204 = vld [vmem:[%s1 + $0x160] sm:$0xff]
  %v205 = vld [vmem:[%s1 + $0x168] sm:$0xff]
  %v206 = vld [vmem:[%s1 + $0x170] sm:$0xff]
  %v207 = vld [vmem:[%s1 + $0x178] sm:$0xff]
  %v208 = vld [vmem:[%s1 + $0x180] sm:$0xff]
  %v209 = vld [vmem:[%s1 + $0x188] sm:$0xff]
  %v210 = vld [vmem:[%s1 + $0x190] sm:$0xff]
  %v211 = vld [vmem:[%s1 + $0x198] sm:$0xff]
  %v212 = vld [vmem:[%s1 + $0x1a0] sm:$0xff]
  %v213 = vld [vmem:[%s1 + $0x1a8] sm:$0xff]
  %v214 = vld [vmem:[%s1 + $0x1b0] sm:$0xff]
  %v215 = vld [vmem:[%s1 + $0x1b8] sm:$0xff]
  %v216 = vld [vmem:[%s1 + $0x1c0] sm:$0xff]
  %v217 = vld [vmem:[%s1 + $0x1c8] sm:$0xff]
  %v218 = vld [vmem:[%s1 + $0x1d0] sm:$0xff]
  %v219 = vld [vmem:[%s1 + $0x1d8] sm:$0xff]
  %v220 = vld [vmem:[%s1 + $0x1e0] sm:$0xff]
  %v221 = vld [vmem:[%s1 + $0x1e8] sm:$0xff]
  %v222 = vld [vmem:[%s1 + $0x1f0] sm:$0xff]
  %v223 = vld [vmem:[%s1 + $0x1f8] sm:$0xff]
  %v224 = vld [vmem:[%s1 + $0x200] sm:$0xff]
  %v225 = vld [vmem:[%s1 + $0x208] sm:$0xff]
  %v226 = vld [vmem:[%s1 + $0x210] sm:$0xff]
  %v227 = vld [vmem:[%s1 + $0x218] sm:$0xff]
  %v228 = vld [vmem:[%s1 + $0x220] sm:$0xff]
  %v229 = vld [vmem:[%s1 + $0x228] sm:$0xff]
  %v230 = vld [vmem:[%s1 + $0x230] sm:$0xff]
  %v231 = vld [vmem:[%s1 + $0x238] sm:$0xff]
  %v232 = vld [vmem:[%s1 + $0x240] sm:$0xff]
  %v233 = vld [vmem:[%s1 + $0x248] sm:$0xff]
  %v234 = vld [vmem:[%s1 + $0x250] sm:$0xff]
  %v235 = vld [vmem:[%s1 + $0x258] sm:$0xff]
  %v236 = vld [vmem:[%s1 + $0x260] sm:$0xff]
  %v237 = vld [vmem:[%s1 + $0x268] sm:$0xff]
  %v238 = vld [vmem:[%s1 + $0x270] sm:$0xff]
  %v239 = vld [vmem:[%s1 + $0x278] sm:$0xff]
  %240 = vmatprep.subr.mxu0 0.0
  %241 = vmatpush1.msra.mxu0 %v160
  %242 = vmatprep.subr.mxu0 0.0
  %243 = vmatpush1.msra.mxu0 %v161
  %244 = vmatprep.subr.mxu0 0.0
  %245 = vmatpush1.msra.mxu0 %v162
  %246 = vmatprep.subr.mxu0 0.0
  %247 = vmatpush1.msra.mxu0 %v163
  %248 = vmatprep.subr.mxu0 0.0
  %249 = vmatpush1.msra.mxu0 %v164
  %250 = vmatprep.subr.mxu0 0.0
  %251 = vmatpush1.msra.mxu0 %v165
  %252 = vmatprep.subr.mxu0 0.0
  %253 = vmatpush1.msra.mxu0 %v166
  %254 = vmatprep.subr.mxu0 0.0
  %255 = vmatpush1.msra.mxu0 %v167
  %256 = vmatprep.subr.mxu0 0.0
  %257 = vmatpush1.msra.mxu0 %v168
  %258 = vmatprep.subr.mxu0 0.0
  %259 = vmatpush1.msra.mxu0 %v169
  %260 = vmatprep.subr.mxu0 0.0
  %261 = vmatpush1.msra.mxu0 %v170
  %262 = vmatprep.subr.mxu0 0.0
  %263 = vmatpush1.msra.mxu0 %v171
  %264 = vmatprep.subr.mxu0 0.0
  %265 = vmatpush1.msra.mxu0 %v172
  %266 = vmatprep.subr.mxu0 0.0
  %267 = vmatpush1.msra.mxu0 %v173
  %268 = vmatprep.subr.mxu0 0.0
  %269 = vmatpush1.msra.mxu0 %v174
  %270 = vmatprep.subr.mxu0 0.0
  %271 = vmatpush1.msra.mxu0 %v175
  %272 = vmatprep.subr.mxu0 0.0
  %273 = vmatpush1.msra.mxu0 %v176
  %274 = vmatprep.subr.mxu0 0.0
  %275 = vmatpush1.msra.mxu0 %v177
  %276 = vmatprep.subr.mxu0 0.0
  %277 = vmatpush1.msra.mxu0 %v178
  %278 = vmatprep.subr.mxu0 0.0
  %279 = vmatpush1.msra.mxu0 %v179
  %280 = vmatprep.subr.mxu0 0.0
  %281 = vmatpush1.msra.mxu0 %v180
  %282 = vmatprep.subr.mxu0 0.0
  %283 = vmatpush1.msra.mxu0 %v181
  %284 = vmatprep.subr.mxu0 0.0
  %285 = vmatpush1.msra.mxu0 %v182
  %286 = vmatprep.subr.mxu0 0.0
  %287 = vmatpush1.msra.mxu0 %v183
  %288 = vmatprep.subr.mxu0 0.0
  %289 = vmatpush1.msra.mxu0 %v184
  %290 = vmatprep.subr.mxu0 0.0
  %291 = vmatpush1.msra.mxu0 %v185
  %292 = vmatprep.subr.mxu0 0.0
  %293 = vmatpush1.msra.mxu0 %v186
  %294 = vmatprep.subr.mxu0 0.0
  %295 = vmatpush1.msra.mxu0 %v187
  %296 = vmatprep.subr.mxu0 0.0
  %297 = vmatpush1.msra.mxu0 %v188
  %298 = vmatprep.subr.mxu0 0.0
  %299 = vmatpush1.msra.mxu0 %v189
  %300 = vmatprep.subr.mxu0 0.0
  %301 = vmatpush1.msra.mxu0 %v190
  %302 = vmatprep.subr.mxu0 0.0
  %303 = vmatpush1.msra.mxu0 %v191
  %304 = vmatprep.mubr.f32.mxu0 %v36
  %305 = vmatmul.mubr.f32.gmra.mrb[0].mxu0 %v35
  %v306 = vpop.f32.mrb[0].mxu0
  %v307 = vadd.f32 0.0, %v306
  %v308 = vpop.f32.mrb[0].mxu0
  %309 = vmatprep.mubr.f32.mxu0 %v41
  %310 = vmatmul.mubr.f32.gmra.mrb[0].mxu0 %v40
  %v311 = vpop.f32.mrb[0].mxu0
  %v312 = vadd.f32 0.0, %v311
  %v313 = vpop.f32.mrb[0].mxu0
  %314 = vmatprep.mubr.f32.mxu0 %v46
  %315 = vmatmul.mubr.f32.gmra.mrb[0].mxu0 %v45
  %v316 = vpop.f32.mrb[0].mxu0
  %v317 = vadd.f32 0.0, %v316
  %v318 = vpop.f32.mrb[0].mxu0
  %319 = vmatprep.mubr.f32.mxu0 %v51
  %320 = vmatmul.mubr.f32.gmra.mrb[0].mxu0 %v50
  %v321 = vpop.f32.mrb[0].mxu0
  %v322 = vadd.f32 0.0, %v321
  %v323 = vpop.f32.mrb[0].mxu0
  %324 = vmatprep.mubr.f32.mxu0 %v56
  %325 = vmatmul.mubr.f32.gmra.mrb[0].mxu0 %v55
  %v326 = vpop.f32.mrb[0].mxu0
  %v327 = vadd.f32 0.0, %v326
  %v328 = vpop.f32.mrb[0].mxu0
  %329 = vmatprep.mubr.f32.mxu0 %v61
  %330 = vmatmul.mubr.f32.gmra.mrb[0].mxu0 %v60
  %v331 = vpop.f32.mrb[0].mxu0
  %v332 = vadd.f32 0.0, %v331
  %v333 = vpop.f32.mrb[0].mxu0
  %334 = vmatprep.mubr.f32.mxu0 %v66
  %335 = vmatmul.mubr.f32.gmra.mrb[0].mxu0 %v65
  %v336 = vpop.f32.mrb[0].mxu0
  %v337 = vadd.f32 0.0, %v336
  %v338 = vpop.f32.mrb[0].mxu0
  %339 = vmatprep.mubr.f32.mxu0 %v71
  %340 = vmatmul.mubr.f32.gmra.mrb[0].mxu0 %v70
  %v341 = vpop.f32.mrb[0].mxu0
  %v342 = vadd.f32 0.0, %v341
  %v343 = vpop.f32.mrb[0].mxu0
  %344 = vmatprep.mubr.f32.mxu0 %v76
  %345 = vmatmul.mubr.f32.gmra.mrb[0].mxu0 %v75
  %v346 = vpop.f32.mrb[0].mxu0
  %v347 = vadd.f32 0.0, %v346
  %v348 = vpop.f32.mrb[0].mxu0
  %349 = vmatprep.mubr.f32.mxu0 %v81
  %350 = vmatmul.mubr.f32.gmra.mrb[0].mxu0 %v80
  %v351 = vpop.f32.mrb[0].mxu0
  %v352 = vadd.f32 0.0, %v351
  %v353 = vpop.f32.mrb[0].mxu0
  %354 = vmatprep.mubr.f32.mxu0 %v86
  %355 = vmatmul.mubr.f32.gmra.mrb[0].mxu0 %v85
  %v356 = vpop.f32.mrb[0].mxu0
  %v357 = vadd.f32 0.0, %v356
  %v358 = vpop.f32.mrb[0].mxu0
  %359 = vmatprep.mubr.f32.mxu0 %v91
  %360 = vmatmul.mubr.f32.gmra.mrb[0].mxu0 %v90
  %v361 = vpop.f32.mrb[0].mxu0
  %v362 = vadd.f32 0.0, %v361
  %v363 = vpop.f32.mrb[0].mxu0
  %364 = vmatprep.mubr.f32.mxu0 %v96
  %365 = vmatmul.mubr.f32.gmra.mrb[0].mxu0 %v95
  %v366 = vpop.f32.mrb[0].mxu0
  %v367 = vadd.f32 0.0, %v366
  %v368 = vpop.f32.mrb[0].mxu0
  %369 = vmatprep.mubr.f32.mxu0 %v101
  %370 = vmatmul.mubr.f32.gmra.mrb[0].mxu0 %v100
  %v371 = vpop.f32.mrb[0].mxu0
  %v372 = vadd.f32 0.0, %v371
  %v373 = vpop.f32.mrb[0].mxu0
  %374 = vmatprep.mubr.f32.mxu0 %v106
  %375 = vmatmul.mubr.f32.gmra.mrb[0].mxu0 %v105
  %v376 = vpop.f32.mrb[0].mxu0
  %v377 = vadd.f32 0.0, %v376
  %v378 = vpop.f32.mrb[0].mxu0
  %379 = vmatprep.mubr.f32.mxu0 %v111
  %380 = vmatmul.mubr.f32.gmra.mrb[0].mxu0 %v110
  %v381 = vpop.f32.mrb[0].mxu0
  %v382 = vadd.f32 0.0, %v381
  %v383 = vpop.f32.mrb[0].mxu0
  %384 = vmatprep.mubr.f32.mxu0 %v116
  %385 = vmatmul.mubr.f32.gmra.mrb[0].mxu0 %v115
  %v386 = vpop.f32.mrb[0].mxu0
  %v387 = vadd.f32 0.0, %v386
  %v388 = vpop.f32.mrb[0].mxu0
  %389 = vmatprep.mubr.f32.mxu0 %v121
  %390 = vmatmul.mubr.f32.gmra.mrb[0].mxu0 %v120
  %v391 = vpop.f32.mrb[0].mxu0
  %v392 = vadd.f32 0.0, %v391
  %v393 = vpop.f32.mrb[0].mxu0
  %394 = vmatprep.mubr.f32.mxu0 %v126
  %395 = vmatmul.mubr.f32.gmra.mrb[0].mxu0 %v125
  %v396 = vpop.f32.mrb[0].mxu0
  %v397 = vadd.f32 0.0, %v396
  %v398 = vpop.f32.mrb[0].mxu0
  %399 = vmatprep.mubr.f32.mxu0 %v131
  %400 = vmatmul.mubr.f32.gmra.mrb[0].mxu0 %v130
  %v401 = vpop.f32.mrb[0].mxu0
  %v402 = vadd.f32 0.0, %v401
  %v403 = vpop.f32.mrb[0].mxu0
  %404 = vmatprep.mubr.f32.mxu0 %v136
  %405 = vmatmul.mubr.f32.gmra.mrb[0].mxu0 %v135
  %v406 = vpop.f32.mrb[0].mxu0
  %v407 = vadd.f32 0.0, %v406
  %v408 = vpop.f32.mrb[0].mxu0
  %409 = vmatprep.mubr.f32.mxu0 %v141
  %410 = vmatmul.mubr.f32.gmra.mrb[0].mxu0 %v140
  %v411 = vpop.f32.mrb[0].mxu0
  %v412 = vadd.f32 0.0, %v411
  %v413 = vpop.f32.mrb[0].mxu0
  %414 = vmatprep.mubr.f32.mxu0 %v146
  %415 = vmatmul.mubr.f32.gmra.mrb[0].mxu0 %v145
  %v416 = vpop.f32.mrb[0].mxu0
  %v417 = vadd.f32 0.0, %v416
  %v418 = vpop.f32.mrb[0].mxu0
  %419 = vmatprep.mubr.f32.mxu0 %v151
  %420 = vmatmul.mubr.f32.gmra.mrb[0].mxu0 %v150
  %v421 = vpop.f32.mrb[0].mxu0
  %v422 = vadd.f32 0.0, %v421
  %v423 = vpop.f32.mrb[0].mxu0
  %424 = vmatprep.mubr.f32.mxu0 %v156
  %425 = vmatmul.mubr.f32.gmra.mrb[0].mxu0 %v155
  %v426 = vpop.f32.mrb[0].mxu0
  %v427 = vadd.f32 0.0, %v426
  %v428 = vpop.f32.mrb[0].mxu0
  %429 = vdwg.mxu0
  %430 = vmatprep.subr.mxu0 0.0
  %431 = vmatpush1.msra.mxu0 %v192
  %432 = vmatprep.subr.mxu0 0.0
  %433 = vmatpush1.msra.mxu0 %v193
  %434 = vmatprep.subr.mxu0 0.0
  %435 = vmatpush1.msra.mxu0 %v194
  %436 = vmatprep.subr.mxu0 0.0
  %437 = vmatpush1.msra.mxu0 %v195
  %438 = vmatprep.subr.mxu0 0.0
  %439 = vmatpush1.msra.mxu0 %v196
  %440 = vmatprep.subr.mxu0 0.0
  %441 = vmatpush1.msra.mxu0 %v197
  %442 = vmatprep.subr.mxu0 0.0
  %443 = vmatpush1.msra.mxu0 %v198
  %444 = vmatprep.subr.mxu0 0.0
  %445 = vmatpush1.msra.mxu0 %v199
  %446 = vmatprep.subr.mxu0 0.0
  %447 = vmatpush1.msra.mxu0 %v200
  %448 = vmatprep.subr.mxu0 0.0
  %449 = vmatpush1.msra.mxu0 %v201
  %450 = vmatprep.subr.mxu0 0.0
  %451 = vmatpush1.msra.mxu0 %v202
  %452 = vmatprep.subr.mxu0 0.0
  %453 = vmatpush1.msra.mxu0 %v203
  %454 = vmatprep.subr.mxu0 0.0
  %455 = vmatpush1.msra.mxu0 %v204
  %456 = vmatprep.subr.mxu0 0.0
  %457 = vmatpush1.msra.mxu0 %v205
  %458 = vmatprep.subr.mxu0 0.0
  %459 = vmatpush1.msra.mxu0 %v206
  %460 = vmatprep.subr.mxu0 0.0
  %461 = vmatpush1.msra.mxu0 %v207
  %462 = vmatprep.subr.mxu0 0.0
  %463 = vmatpush1.msra.mxu0 %v208
  %464 = vmatprep.subr.mxu0 0.0
  %465 = vmatpush1.msra.mxu0 %v209
  %466 = vmatprep.subr.mxu0 0.0
  %467 = vmatpush1.msra.mxu0 %v210
  %468 = vmatprep.subr.mxu0 0.0
  %469 = vmatpush1.msra.mxu0 %v211
  %470 = vmatprep.subr.mxu0 0.0
  %471 = vmatpush1.msra.mxu0 %v212
  %472 = vmatprep.subr.mxu0 0.0
  %473 = vmatpush1.msra.mxu0 %v213
  %474 = vmatprep.subr.mxu0 0.0
  %475 = vmatpush1.msra.mxu0 %v214
  %476 = vmatprep.subr.mxu0 0.0
  %477 = vmatpush1.msra.mxu0 %v215
  %478 = vmatprep.subr.mxu0 0.0
  %479 = vmatpush1.msra.mxu0 %v216
  %480 = vmatprep.subr.mxu0 0.0
  %481 = vmatpush1.msra.mxu0 %v217
  %482 = vmatprep.subr.mxu0 0.0
  %483 = vmatpush1.msra.mxu0 %v218
  %484 = vmatprep.subr.mxu0 0.0
  %485 = vmatpush1.msra.mxu0 %v219
  %486 = vmatprep.subr.mxu0 0.0
  %487 = vmatpush1.msra.mxu0 %v220
  %488 = vmatprep.subr.mxu0 0.0
  %489 = vmatpush1.msra.mxu0 %v221
  %490 = vmatprep.subr.mxu0 0.0
  %491 = vmatpush1.msra.mxu0 %v222
  %492 = vmatprep.subr.mxu0 0.0
  %493 = vmatpush1.msra.mxu0 %v223
  %494 = vmatprep.mubr.f32.mxu0 %v38
  %495 = vmatmul.mubr.f32.gmra.mrb[0].mxu0 %v37
  %v496 = vpop.f32.mrb[0].mxu0
  %v497 = vadd.f32 %v307, %v496
  %v498 = vpop.f32.mrb[0].mxu0
  %499 = vmatprep.mubr.f32.mxu0 %v43
  %500 = vmatmul.mubr.f32.gmra.mrb[0].mxu0 %v42
  %v501 = vpop.f32.mrb[0].mxu0
  %v502 = vadd.f32 %v312, %v501
  %v503 = vpop.f32.mrb[0].mxu0
  %504 = vmatprep.mubr.f32.mxu0 %v48
  %505 = vmatmul.mubr.f32.gmra.mrb[0].mxu0 %v47
  %v506 = vpop.f32.mrb[0].mxu0
  %v507 = vadd.f32 %v317, %v506
  %v508 = vpop.f32.mrb[0].mxu0
  %509 = vmatprep.mubr.f32.mxu0 %v53
  %510 = vmatmul.mubr.f32.gmra.mrb[0].mxu0 %v52
  %v511 = vpop.f32.mrb[0].mxu0
  %v512 = vadd.f32 %v322, %v511
  %v513 = vpop.f32.mrb[0].mxu0
  %514 = vmatprep.mubr.f32.mxu0 %v58
  %515 = vmatmul.mubr.f32.gmra.mrb[0].mxu0 %v57
  %v516 = vpop.f32.mrb[0].mxu0
  %v517 = vadd.f32 %v327, %v516
  %v518 = vpop.f32.mrb[0].mxu0
  %519 = vmatprep.mubr.f32.mxu0 %v63
  %520 = vmatmul.mubr.f32.gmra.mrb[0].mxu0 %v62
  %v521 = vpop.f32.mrb[0].mxu0
  %v522 = vadd.f32 %v332, %v521
  %v523 = vpop.f32.mrb[0].mxu0
  %524 = vmatprep.mubr.f32.mxu0 %v68
  %525 = vmatmul.mubr.f32.gmra.mrb[0].mxu0 %v67
  %v526 = vpop.f32.mrb[0].mxu0
  %v527 = vadd.f32 %v337, %v526
  %v528 = vpop.f32.mrb[0].mxu0
  %529 = vmatprep.mubr.f32.mxu0 %v73
  %530 = vmatmul.mubr.f32.gmra.mrb[0].mxu0 %v72
  %v531 = vpop.f32.mrb[0].mxu0
  %v532 = vadd.f32 %v342, %v531
  %v533 = vpop.f32.mrb[0].mxu0
  %534 = vmatprep.mubr.f32.mxu0 %v78
  %535 = vmatmul.mubr.f32.gmra.mrb[0].mxu0 %v77
  %v536 = vpop.f32.mrb[0].mxu0
  %v537 = vadd.f32 %v347, %v536
  %v538 = vpop.f32.mrb[0].mxu0
  %539 = vmatprep.mubr.f32.mxu0 %v83
  %540 = vmatmul.mubr.f32.gmra.mrb[0].mxu0 %v82
  %v541 = vpop.f32.mrb[0].mxu0
  %v542 = vadd.f32 %v352, %v541
  %v543 = vpop.f32.mrb[0].mxu0
  %544 = vmatprep.mubr.f32.mxu0 %v88
  %545 = vmatmul.mubr.f32.gmra.mrb[0].mxu0 %v87
  %v546 = vpop.f32.mrb[0].mxu0
  %v547 = vadd.f32 %v357, %v546
  %v548 = vpop.f32.mrb[0].mxu0
  %549 = vmatprep.mubr.f32.mxu0 %v93
  %550 = vmatmul.mubr.f32.gmra.mrb[0].mxu0 %v92
  %v551 = vpop.f32.mrb[0].mxu0
  %v552 = vadd.f32 %v362, %v551
  %v553 = vpop.f32.mrb[0].mxu0
  %554 = vmatprep.mubr.f32.mxu0 %v98
  %555 = vmatmul.mubr.f32.gmra.mrb[0].mxu0 %v97
  %v556 = vpop.f32.mrb[0].mxu0
  %v557 = vadd.f32 %v367, %v556
  %v558 = vpop.f32.mrb[0].mxu0
  %559 = vmatprep.mubr.f32.mxu0 %v103
  %560 = vmatmul.mubr.f32.gmra.mrb[0].mxu0 %v102
  %v561 = vpop.f32.mrb[0].mxu0
  %v562 = vadd.f32 %v372, %v561
  %v563 = vpop.f32.mrb[0].mxu0
  %564 = vmatprep.mubr.f32.mxu0 %v108
  %565 = vmatmul.mubr.f32.gmra.mrb[0].mxu0 %v107
  %v566 = vpop.f32.mrb[0].mxu0
  %v567 = vadd.f32 %v377, %v566
  %v568 = vpop.f32.mrb[0].mxu0
  %569 = vmatprep.mubr.f32.mxu0 %v113
  %570 = vmatmul.mubr.f32.gmra.mrb[0].mxu0 %v112
  %v571 = vpop.f32.mrb[0].mxu0
  %v572 = vadd.f32 %v382, %v571
  %v573 = vpop.f32.mrb[0].mxu0
  %574 = vmatprep.mubr.f32.mxu0 %v118
  %575 = vmatmul.mubr.f32.gmra.mrb[0].mxu0 %v117
  %v576 = vpop.f32.mrb[0].mxu0
  %v577 = vadd.f32 %v387, %v576
  %v578 = vpop.f32.mrb[0].mxu0
  %579 = vmatprep.mubr.f32.mxu0 %v123
  %580 = vmatmul.mubr.f32.gmra.mrb[0].mxu0 %v122
  %v581 = vpop.f32.mrb[0].mxu0
  %v582 = vadd.f32 %v392, %v581
  %v583 = vpop.f32.mrb[0].mxu0
  %584 = vmatprep.mubr.f32.mxu0 %v128
  %585 = vmatmul.mubr.f32.gmra.mrb[0].mxu0 %v127
  %v586 = vpop.f32.mrb[0].mxu0
  %v587 = vadd.f32 %v397, %v586
  %v588 = vpop.f32.mrb[0].mxu0
  %589 = vmatprep.mubr.f32.mxu0 %v133
  %590 = vmatmul.mubr.f32.gmra.mrb[0].mxu0 %v132
  %v591 = vpop.f32.mrb[0].mxu0
  %v592 = vadd.f32 %v402, %v591
  %v593 = vpop.f32.mrb[0].mxu0
  %594 = vmatprep.mubr.f32.mxu0 %v138
  %595 = vmatmul.mubr.f32.gmra.mrb[0].mxu0 %v137
  %v596 = vpop.f32.mrb[0].mxu0
  %v597 = vadd.f32 %v407, %v596
  %v598 = vpop.f32.mrb[0].mxu0
  %599 = vmatprep.mubr.f32.mxu0 %v143
  %600 = vmatmul.mubr.f32.gmra.mrb[0].mxu0 %v142
  %v601 = vpop.f32.mrb[0].mxu0
  %v602 = vadd.f32 %v412, %v601
  %v603 = vpop.f32.mrb[0].mxu0
  %604 = vmatprep.mubr.f32.mxu0 %v148
  %605 = vmatmul.mubr.f32.gmra.mrb[0].mxu0 %v147
  %v606 = vpop.f32.mrb[0].mxu0
  %v607 = vadd.f32 %v417, %v606
  %v608 = vpop.f32.mrb[0].mxu0
  %609 = vmatprep.mubr.f32.mxu0 %v153
  %610 = vmatmul.mubr.f32.gmra.mrb[0].mxu0 %v152
  %v611 = vpop.f32.mrb[0].mxu0
  %v612 = vadd.f32 %v422, %v611
  %v613 = vpop.f32.mrb[0].mxu0
  %614 = vmatprep.mubr.f32.mxu0 %v158
  %615 = vmatmul.mubr.f32.gmra.mrb[0].mxu0 %v157
  %v616 = vpop.f32.mrb[0].mxu0
  %v617 = vadd.f32 %v427, %v616
  %v618 = vpop.f32.mrb[0].mxu0
  %619 = vdwg.mxu0
  %620 = vmatprep.subr.mxu0 0.0
  %621 = vmatpush1.msra.mxu0 %v224
  %622 = vmatprep.subr.mxu0 0.0
  %623 = vmatpush1.msra.mxu0 %v225
  %624 = vmatprep.subr.mxu0 0.0
  %625 = vmatpush1.msra.mxu0 %v226
  %626 = vmatprep.subr.mxu0 0.0
  %627 = vmatpush1.msra.mxu0 %v227
  %628 = vmatprep.subr.mxu0 0.0
  %629 = vmatpush1.msra.mxu0 %v228
  %630 = vmatprep.subr.mxu0 0.0
  %631 = vmatpush1.msra.mxu0 %v229
  %632 = vmatprep.subr.mxu0 0.0
  %633 = vmatpush1.msra.mxu0 %v230
  %634 = vmatprep.subr.mxu0 0.0
  %635 = vmatpush1.msra.mxu0 %v231
  %636 = vmatprep.subr.mxu0 0.0
  %637 = vmatpush1.msra.mxu0 %v232
  %638 = vmatprep.subr.mxu0 0.0
  %639 = vmatpush1.msra.mxu0 %v233
  %640 = vmatprep.subr.mxu0 0.0
  %641 = vmatpush1.msra.mxu0 %v234
  %642 = vmatprep.subr.mxu0 0.0
  %643 = vmatpush1.msra.mxu0 %v235
  %644 = vmatprep.subr.mxu0 0.0
  %645 = vmatpush1.msra.mxu0 %v236
  %646 = vmatprep.subr.mxu0 0.0
  %647 = vmatpush1.msra.mxu0 %v237
  %648 = vmatprep.subr.mxu0 0.0
  %649 = vmatpush1.msra.mxu0 %v238
  %650 = vmatprep.subr.mxu0 0.0
  %651 = vmatpush1.msra.mxu0 %v239
  %652 = vmatprep.subr.mxu0 0.0
  %653 = vmatpush1.msra.mxu0 0.0
  %654 = vmatprep.subr.mxu0 0.0
  %655 = vmatpush1.msra.mxu0 0.0
  %656 = vmatprep.subr.mxu0 0.0
  %657 = vmatpush1.msra.mxu0 0.0
  %658 = vmatprep.subr.mxu0 0.0
  %659 = vmatpush1.msra.mxu0 0.0
  %660 = vmatprep.subr.mxu0 0.0
  %661 = vmatpush1.msra.mxu0 0.0
  %662 = vmatprep.subr.mxu0 0.0
  %663 = vmatpush1.msra.mxu0 0.0
  %664 = vmatprep.subr.mxu0 0.0
  %665 = vmatpush1.msra.mxu0 0.0
  %666 = vmatprep.subr.mxu0 0.0
  %667 = vmatpush1.msra.mxu0 0.0
  %668 = vmatprep.subr.mxu0 0.0
  %669 = vmatpush1.msra.mxu0 0.0
  %670 = vmatprep.subr.mxu0 0.0
  %671 = vmatpush1.msra.mxu0 0.0
  %672 = vmatprep.subr.mxu0 0.0
  %673 = vmatpush1.msra.mxu0 0.0
  %674 = vmatprep.subr.mxu0 0.0
  %675 = vmatpush1.msra.mxu0 0.0
  %676 = vmatprep.subr.mxu0 0.0
  %677 = vmatpush1.msra.mxu0 0.0
  %678 = vmatprep.subr.mxu0 0.0
  %679 = vmatpush1.msra.mxu0 0.0
  %680 = vmatprep.subr.mxu0 0.0
  %681 = vmatpush1.msra.mxu0 0.0
  %682 = vmatprep.subr.mxu0 0.0
  %683 = vmatpush1.msra.mxu0 0.0
  %684 = vmatprep.mubr.f32.mxu0 0.0
  %685 = vmatmul.mubr.f32.gmra.mrb[0].mxu0 %v39
  %v686 = vpop.f32.mrb[0].mxu0
  %v687 = vadd.f32 %v497, %v686
  %v688 = vpop.f32.mrb[0].mxu0
  %689 = vmatprep.mubr.f32.mxu0 0.0
  %690 = vmatmul.mubr.f32.gmra.mrb[0].mxu0 %v44
  %v691 = vpop.f32.mrb[0].mxu0
  %v692 = vadd.f32 %v502, %v691
  %v693 = vpop.f32.mrb[0].mxu0
  %694 = vmatprep.mubr.f32.mxu0 0.0
  %695 = vmatmul.mubr.f32.gmra.mrb[0].mxu0 %v49
  %v696 = vpop.f32.mrb[0].mxu0
  %v697 = vadd.f32 %v507, %v696
  %v698 = vpop.f32.mrb[0].mxu0
  %699 = vmatprep.mubr.f32.mxu0 0.0
  %700 = vmatmul.mubr.f32.gmra.mrb[0].mxu0 %v54
  %v701 = vpop.f32.mrb[0].mxu0
  %v702 = vadd.f32 %v512, %v701
  %v703 = vpop.f32.mrb[0].mxu0
  %704 = vmatprep.mubr.f32.mxu0 0.0
  %705 = vmatmul.mubr.f32.gmra.mrb[0].mxu0 %v59
  %v706 = vpop.f32.mrb[0].mxu0
  %v707 = vadd.f32 %v517, %v706
  %v708 = vpop.f32.mrb[0].mxu0
  %709 = vmatprep.mubr.f32.mxu0 0.0
  %710 = vmatmul.mubr.f32.gmra.mrb[0].mxu0 %v64
  %v711 = vpop.f32.mrb[0].mxu0
  %v712 = vadd.f32 %v522, %v711
  %v713 = vpop.f32.mrb[0].mxu0
  %714 = vmatprep.mubr.f32.mxu0 0.0
  %715 = vmatmul.mubr.f32.gmra.mrb[0].mxu0 %v69
  %v716 = vpop.f32.mrb[0].mxu0
  %v717 = vadd.f32 %v527, %v716
  %v718 = vpop.f32.mrb[0].mxu0
  %719 = vmatprep.mubr.f32.mxu0 0.0
  %720 = vmatmul.mubr.f32.gmra.mrb[0].mxu0 %v74
  %v721 = vpop.f32.mrb[0].mxu0
  %v722 = vadd.f32 %v532, %v721
  %v723 = vpop.f32.mrb[0].mxu0
  %724 = vmatprep.mubr.f32.mxu0 0.0
  %725 = vmatmul.mubr.f32.gmra.mrb[0].mxu0 %v79
  %v726 = vpop.f32.mrb[0].mxu0
  %v727 = vadd.f32 %v537, %v726
  %v728 = vpop.f32.mrb[0].mxu0
  %729 = vmatprep.mubr.f32.mxu0 0.0
  %730 = vmatmul.mubr.f32.gmra.mrb[0].mxu0 %v84
  %v731 = vpop.f32.mrb[0].mxu0
  %v732 = vadd.f32 %v542, %v731
  %v733 = vpop.f32.mrb[0].mxu0
  %734 = vmatprep.mubr.f32.mxu0 0.0
  %735 = vmatmul.mubr.f32.gmra.mrb[0].mxu0 %v89
  %v736 = vpop.f32.mrb[0].mxu0
  %v737 = vadd.f32 %v547, %v736
  %v738 = vpop.f32.mrb[0].mxu0
  %739 = vmatprep.mubr.f32.mxu0 0.0
  %740 = vmatmul.mubr.f32.gmra.mrb[0].mxu0 %v94
  %v741 = vpop.f32.mrb[0].mxu0
  %v742 = vadd.f32 %v552, %v741
  %v743 = vpop.f32.mrb[0].mxu0
  %744 = vmatprep.mubr.f32.mxu0 0.0
  %745 = vmatmul.mubr.f32.gmra.mrb[0].mxu0 %v99
  %v746 = vpop.f32.mrb[0].mxu0
  %v747 = vadd.f32 %v557, %v746
  %v748 = vpop.f32.mrb[0].mxu0
  %749 = vmatprep.mubr.f32.mxu0 0.0
  %750 = vmatmul.mubr.f32.gmra.mrb[0].mxu0 %v104
  %v751 = vpop.f32.mrb[0].mxu0
  %v752 = vadd.f32 %v562, %v751
  %v753 = vpop.f32.mrb[0].mxu0
  %754 = vmatprep.mubr.f32.mxu0 0.0
  %755 = vmatmul.mubr.f32.gmra.mrb[0].mxu0 %v109
  %v756 = vpop.f32.mrb[0].mxu0
  %v757 = vadd.f32 %v567, %v756
  %v758 = vpop.f32.mrb[0].mxu0
  %759 = vmatprep.mubr.f32.mxu0 0.0
  %760 = vmatmul.mubr.f32.gmra.mrb[0].mxu0 %v114
  %v761 = vpop.f32.mrb[0].mxu0
  %v762 = vadd.f32 %v572, %v761
  %v763 = vpop.f32.mrb[0].mxu0
  %764 = vmatprep.mubr.f32.mxu0 0.0
  %765 = vmatmul.mubr.f32.gmra.mrb[0].mxu0 %v119
  %v766 = vpop.f32.mrb[0].mxu0
  %v767 = vadd.f32 %v577, %v766
  %v768 = vpop.f32.mrb[0].mxu0
  %769 = vmatprep.mubr.f32.mxu0 0.0
  %770 = vmatmul.mubr.f32.gmra.mrb[0].mxu0 %v124
  %v771 = vpop.f32.mrb[0].mxu0
  %v772 = vadd.f32 %v582, %v771
  %v773 = vpop.f32.mrb[0].mxu0
  %774 = vmatprep.mubr.f32.mxu0 0.0
  %775 = vmatmul.mubr.f32.gmra.mrb[0].mxu0 %v129
  %v776 = vpop.f32.mrb[0].mxu0
  %v777 = vadd.f32 %v587, %v776
  %v778 = vpop.f32.mrb[0].mxu0
  %779 = vmatprep.mubr.f32.mxu0 0.0
  %780 = vmatmul.mubr.f32.gmra.mrb[0].mxu0 %v134
  %v781 = vpop.f32.mrb[0].mxu0
  %v782 = vadd.f32 %v592, %v781
  %v783 = vpop.f32.mrb[0].mxu0
  %784 = vmatprep.mubr.f32.mxu0 0.0
  %785 = vmatmul.mubr.f32.gmra.mrb[0].mxu0 %v139
  %v786 = vpop.f32.mrb[0].mxu0
  %v787 = vadd.f32 %v597, %v786
  %v788 = vpop.f32.mrb[0].mxu0
  %789 = vmatprep.mubr.f32.mxu0 0.0
  %790 = vmatmul.mubr.f32.gmra.mrb[0].mxu0 %v144
  %v791 = vpop.f32.mrb[0].mxu0
  %v792 = vadd.f32 %v602, %v791
  %v793 = vpop.f32.mrb[0].mxu0
  %794 = vmatprep.mubr.f32.mxu0 0.0
  %795 = vmatmul.mubr.f32.gmra.mrb[0].mxu0 %v149
  %v796 = vpop.f32.mrb[0].mxu0
  %v797 = vadd.f32 %v607, %v796
  %v798 = vpop.f32.mrb[0].mxu0
  %799 = vmatprep.mubr.f32.mxu0 0.0
  %800 = vmatmul.mubr.f32.gmra.mrb[0].mxu0 %v154
  %v801 = vpop.f32.mrb[0].mxu0
  %v802 = vadd.f32 %v612, %v801
  %v803 = vpop.f32.mrb[0].mxu0
  %804 = vmatprep.mubr.f32.mxu0 0.0
  %805 = vmatmul.mubr.f32.gmra.mrb[0].mxu0 %v159
  %v806 = vpop.f32.mrb[0].mxu0
  %v807 = vadd.f32 %v617, %v806
  %v808 = vpop.f32.mrb[0].mxu0
  %809 = vdwg.mxu0
  %810 = vrot.lane.b32.xlu0 %v687, 64
  %v811 = vpop.permute.xlu0 %810
  %812 = vrot.lane.b32.xlu0 %v692, 64
  %v813 = vpop.permute.xlu0 %812
  %814 = vrot.lane.b32.xlu0 %v697, 64
  %v815 = vpop.permute.xlu0 %814
  %816 = vrot.lane.b32.xlu0 %v702, 64
  %v817 = vpop.permute.xlu0 %816
  %818 = vrot.lane.b32.xlu0 %v707, 64
  %v819 = vpop.permute.xlu0 %818
  %820 = vrot.lane.b32.xlu0 %v712, 64
  %v821 = vpop.permute.xlu0 %820
  %822 = vrot.lane.b32.xlu0 %v717, 64
  %v823 = vpop.permute.xlu0 %822
  %824 = vrot.lane.b32.xlu0 %v722, 64
  %v825 = vpop.permute.xlu0 %824
  %826 = vrot.lane.b32.xlu0 %v727, 64
  %v827 = vpop.permute.xlu0 %826
  %828 = vrot.lane.b32.xlu0 %v732, 64
  %v829 = vpop.permute.xlu0 %828
  %830 = vrot.lane.b32.xlu0 %v737, 64
  %v831 = vpop.permute.xlu0 %830
  %832 = vrot.lane.b32.xlu0 %v742, 64
  %v833 = vpop.permute.xlu0 %832
  %834 = vrot.lane.b32.xlu0 %v747, 64
  %v835 = vpop.permute.xlu0 %834
  %836 = vrot.lane.b32.xlu0 %v752, 64
  %v837 = vpop.permute.xlu0 %836
  %838 = vrot.lane.b32.xlu0 %v757, 64
  %v839 = vpop.permute.xlu0 %838
  %840 = vrot.lane.b32.xlu0 %v762, 64
  %v841 = vpop.permute.xlu0 %840
  %842 = vrot.lane.b32.xlu0 %v767, 64
  %v843 = vpop.permute.xlu0 %842
  %844 = vrot.lane.b32.xlu0 %v772, 64
  %v845 = vpop.permute.xlu0 %844
  %846 = vrot.lane.b32.xlu0 %v777, 64
  %v847 = vpop.permute.xlu0 %846
  %848 = vrot.lane.b32.xlu0 %v782, 64
  %v849 = vpop.permute.xlu0 %848
  %850 = vrot.lane.b32.xlu0 %v787, 64
  %v851 = vpop.permute.xlu0 %850
  %852 = vrot.lane.b32.xlu0 %v792, 64
  %v853 = vpop.permute.xlu0 %852
  %854 = vrot.lane.b32.xlu0 %v797, 64
  %v855 = vpop.permute.xlu0 %854
  %856 = vrot.lane.b32.xlu0 %v802, 64
  %v857 = vpop.permute.xlu0 %856
  %858 = vrot.lane.b32.xlu0 %v807, 64
  %v859 = vpop.permute.xlu0 %858
  %v860 = vmax.f32 %v687, %v811
  %v861 = vmax.f32 %v692, %v813
  %v862 = vmax.f32 %v697, %v815
  %v863 = vmax.f32 %v702, %v817
  %v864 = vmax.f32 %v707, %v819
  %v865 = vmax.f32 %v712, %v821
  %v866 = vmax.f32 %v717, %v823
  %v867 = vmax.f32 %v722, %v825
  %v868 = vmax.f32 %v727, %v827
  %v869 = vmax.f32 %v732, %v829
  %v870 = vmax.f32 %v737, %v831
  %v871 = vmax.f32 %v742, %v833
  %v872 = vmax.f32 %v747, %v835
  %v873 = vmax.f32 %v752, %v837
  %v874 = vmax.f32 %v757, %v839
  %v875 = vmax.f32 %v762, %v841
  %v876 = vmax.f32 %v767, %v843
  %v877 = vmax.f32 %v772, %v845
  %v878 = vmax.f32 %v777, %v847
  %v879 = vmax.f32 %v782, %v849
  %v880 = vmax.f32 %v787, %v851
  %v881 = vmax.f32 %v792, %v853
  %v882 = vmax.f32 %v797, %v855
  %v883 = vmax.f32 %v802, %v857
  %v884 = vmax.f32 %v807, %v859
  %885 = vrot.lane.b32.xlu0 %v860, 32
  %v886 = vpop.permute.xlu0 %885
  %887 = vrot.lane.b32.xlu0 %v861, 32
  %v888 = vpop.permute.xlu0 %887
  %889 = vrot.lane.b32.xlu0 %v862, 32
  %v890 = vpop.permute.xlu0 %889
  %891 = vrot.lane.b32.xlu0 %v863, 32
  %v892 = vpop.permute.xlu0 %891
  %893 = vrot.lane.b32.xlu0 %v864, 32
  %v894 = vpop.permute.xlu0 %893
  %895 = vrot.lane.b32.xlu0 %v865, 32
  %v896 = vpop.permute.xlu0 %895
  %897 = vrot.lane.b32.xlu0 %v866, 32
  %v898 = vpop.permute.xlu0 %897
  %899 = vrot.lane.b32.xlu0 %v867, 32
  %v900 = vpop.permute.xlu0 %899
  %901 = vrot.lane.b32.xlu0 %v868, 32
  %v902 = vpop.permute.xlu0 %901
  %903 = vrot.lane.b32.xlu0 %v869, 32
  %v904 = vpop.permute.xlu0 %903
  %905 = vrot.lane.b32.xlu0 %v870, 32
  %v906 = vpop.permute.xlu0 %905
  %907 = vrot.lane.b32.xlu0 %v871, 32
  %v908 = vpop.permute.xlu0 %907
  %909 = vrot.lane.b32.xlu0 %v872, 32
  %v910 = vpop.permute.xlu0 %909
  %911 = vrot.lane.b32.xlu0 %v873, 32
  %v912 = vpop.permute.xlu0 %911
  %913 = vrot.lane.b32.xlu0 %v874, 32
  %v914 = vpop.permute.xlu0 %913
  %915 = vrot.lane.b32.xlu0 %v875, 32
  %v916 = vpop.permute.xlu0 %915
  %917 = vrot.lane.b32.xlu0 %v876, 32
  %v918 = vpop.permute.xlu0 %917
  %919 = vrot.lane.b32.xlu0 %v877, 32
  %v920 = vpop.permute.xlu0 %919
  %921 = vrot.lane.b32.xlu0 %v878, 32
  %v922 = vpop.permute.xlu0 %921
  %923 = vrot.lane.b32.xlu0 %v879, 32
  %v924 = vpop.permute.xlu0 %923
  %925 = vrot.lane.b32.xlu0 %v880, 32
  %v926 = vpop.permute.xlu0 %925
  %927 = vrot.lane.b32.xlu0 %v881, 32
  %v928 = vpop.permute.xlu0 %927
  %929 = vrot.lane.b32.xlu0 %v882, 32
  %v930 = vpop.permute.xlu0 %929
  %931 = vrot.lane.b32.xlu0 %v883, 32
  %v932 = vpop.permute.xlu0 %931
  %933 = vrot.lane.b32.xlu0 %v884, 32
  %v934 = vpop.permute.xlu0 %933
  %v935 = vmax.f32 %v860, %v886
  %v936 = vmax.f32 %v861, %v888
  %v937 = vmax.f32 %v862, %v890
  %v938 = vmax.f32 %v863, %v892
  %v939 = vmax.f32 %v864, %v894
  %v940 = vmax.f32 %v865, %v896
  %v941 = vmax.f32 %v866, %v898
  %v942 = vmax.f32 %v867, %v900
  %v943 = vmax.f32 %v868, %v902
  %v944 = vmax.f32 %v869, %v904
  %v945 = vmax.f32 %v870, %v906
  %v946 = vmax.f32 %v871, %v908
  %v947 = vmax.f32 %v872, %v910
  %v948 = vmax.f32 %v873, %v912
  %v949 = vmax.f32 %v874, %v914
  %v950 = vmax.f32 %v875, %v916
  %v951 = vmax.f32 %v876, %v918
  %v952 = vmax.f32 %v877, %v920
  %v953 = vmax.f32 %v878, %v922
  %v954 = vmax.f32 %v879, %v924
  %v955 = vmax.f32 %v880, %v926
  %v956 = vmax.f32 %v881, %v928
  %v957 = vmax.f32 %v882, %v930
  %v958 = vmax.f32 %v883, %v932
  %v959 = vmax.f32 %v884, %v934
  %v960 = vld [vmem:[%s2] sm:$0x1]
  %v962 = vlaneseq
  %v963 = vshrl.u32 %v962, 7
  %v964 = vsub.s32 0, %v963
  %v965 = vrot.slane %v960, %v964
  %v967 = vadd.f32 %v935, %v965
  %v968 = vadd.f32 %v936, %v965
  %v969 = vadd.f32 %v937, %v965
  %v970 = vadd.f32 %v938, %v965
  %v971 = vadd.f32 %v939, %v965
  %v972 = vadd.f32 %v940, %v965
  %v973 = vadd.f32 %v941, %v965
  %v974 = vadd.f32 %v942, %v965
  %v975 = vadd.f32 %v943, %v965
  %v976 = vadd.f32 %v944, %v965
  %v977 = vadd.f32 %v945, %v965
  %v978 = vadd.f32 %v946, %v965
  %v979 = vadd.f32 %v947, %v965
  %v980 = vadd.f32 %v948, %v965
  %v981 = vadd.f32 %v949, %v965
  %v982 = vadd.f32 %v950, %v965
  %v983 = vadd.f32 %v951, %v965
  %v984 = vadd.f32 %v952, %v965
  %v985 = vadd.f32 %v953, %v965
  %v986 = vadd.f32 %v954, %v965
  %v987 = vadd.f32 %v955, %v965
  %v988 = vadd.f32 %v956, %v965
  %v989 = vadd.f32 %v957, %v965
  %v990 = vadd.f32 %v958, %v965
  %v991 = vadd.f32 %v959, %v965
  %v992 = vmax.f32 %v967, 0.0
  %v993 = vmax.f32 %v968, 0.0
  %v994 = vmax.f32 %v969, 0.0
  %v995 = vmax.f32 %v970, 0.0
  %v996 = vmax.f32 %v971, 0.0
  %v997 = vmax.f32 %v972, 0.0
  %v998 = vmax.f32 %v973, 0.0
  %v999 = vmax.f32 %v974, 0.0
  %v1000 = vmax.f32 %v975, 0.0
  %v1001 = vmax.f32 %v976, 0.0
  %v1002 = vmax.f32 %v977, 0.0
  %v1003 = vmax.f32 %v978, 0.0
  %v1004 = vmax.f32 %v979, 0.0
  %v1005 = vmax.f32 %v980, 0.0
  %v1006 = vmax.f32 %v981, 0.0
  %v1007 = vmax.f32 %v982, 0.0
  %v1008 = vmax.f32 %v983, 0.0
  %v1009 = vmax.f32 %v984, 0.0
  %v1010 = vmax.f32 %v985, 0.0
  %v1011 = vmax.f32 %v986, 0.0
  %v1012 = vmax.f32 %v987, 0.0
  %v1013 = vmax.f32 %v988, 0.0
  %v1014 = vmax.f32 %v989, 0.0
  %v1015 = vmax.f32 %v990, 0.0
  %v1016 = vmax.f32 %v991, 0.0
  %v1017 = vld [vmem:[%s3] sm:$0xff]
  %v1018 = vld [vmem:[%s3 + $0x8] sm:$0xff]
  %v1019 = vld [vmem:[%s3 + $0x10] sm:$0xff]
  %v1020 = vld [vmem:[%s3 + $0x18] sm:$0xff]
  %v1021 = vld [vmem:[%s3 + $0x20] sm:$0xff]
  %v1022 = vld [vmem:[%s3 + $0x28] sm:$0xff]
  %v1023 = vld [vmem:[%s3 + $0x30] sm:$0xff]
  %v1024 = vld [vmem:[%s3 + $0x38] sm:$0xff]
  %v1025 = vld [vmem:[%s3 + $0x40] sm:$0xff]
  %v1026 = vld [vmem:[%s3 + $0x48] sm:$0xff]
  %v1027 = vld [vmem:[%s3 + $0x50] sm:$0xff]
  %v1028 = vld [vmem:[%s3 + $0x58] sm:$0xff]
  %v1029 = vld [vmem:[%s3 + $0x60] sm:$0xff]
  %v1030 = vld [vmem:[%s3 + $0x68] sm:$0xff]
  %v1031 = vld [vmem:[%s3 + $0x70] sm:$0xff]
  %v1032 = vld [vmem:[%s3 + $0x78] sm:$0xff]
  %v1033 = vld [vmem:[%s3 + $0x80] sm:$0xff]
  %v1034 = vld [vmem:[%s3 + $0x88] sm:$0xff]
  %v1035 = vld [vmem:[%s3 + $0x90] sm:$0xff]
  %v1036 = vld [vmem:[%s3 + $0x98] sm:$0xff]
  %v1037 = vld [vmem:[%s3 + $0xa0] sm:$0xff]
  %v1038 = vld [vmem:[%s3 + $0xa8] sm:$0xff]
  %v1039 = vld [vmem:[%s3 + $0xb0] sm:$0xff]
  %v1040 = vld [vmem:[%s3 + $0xb8] sm:$0xff]
  %v1041 = vld [vmem:[%s3 + $0xc0] sm:$0xff]
  %v1042 = vld [vmem:[%s3 + $0xc8] sm:$0xff]
  %v1043 = vld [vmem:[%s3 + $0xd0] sm:$0xff]
  %v1044 = vld [vmem:[%s3 + $0xd8] sm:$0xff]
  %v1045 = vld [vmem:[%s3 + $0xe0] sm:$0xff]
  %v1046 = vld [vmem:[%s3 + $0xe8] sm:$0xff]
  %v1047 = vld [vmem:[%s3 + $0xf0] sm:$0xff]
  %v1048 = vld [vmem:[%s3 + $0xf8] sm:$0xff]
  %v1049 = vld [vmem:[%s3 + $0x100] sm:$0xff]
  %v1050 = vld [vmem:[%s3 + $0x108] sm:$0xff]
  %v1051 = vld [vmem:[%s3 + $0x110] sm:$0xff]
  %v1052 = vld [vmem:[%s3 + $0x118] sm:$0xff]
  %v1053 = vld [vmem:[%s3 + $0x120] sm:$0xff]
  %v1054 = vld [vmem:[%s3 + $0x128] sm:$0xff]
  %v1055 = vld [vmem:[%s3 + $0x130] sm:$0xff]
  %v1056 = vld [vmem:[%s3 + $0x138] sm:$0xff]
  %v1057 = vld [vmem:[%s3 + $0x140] sm:$0xff]
  %v1058 = vld [vmem:[%s3 + $0x148] sm:$0xff]
  %v1059 = vld [vmem:[%s3 + $0x150] sm:$0xff]
  %v1060 = vld [vmem:[%s3 + $0x158] sm:$0xff]
  %v1061 = vld [vmem:[%s3 + $0x160] sm:$0xff]
  %v1062 = vld [vmem:[%s3 + $0x168] sm:$0xff]
  %v1063 = vld [vmem:[%s3 + $0x170] sm:$0xff]
  %v1064 = vld [vmem:[%s3 + $0x178] sm:$0xff]
  %v1065 = vld [vmem:[%s3 + $0x180] sm:$0xff]
  %v1066 = vld [vmem:[%s3 + $0x188] sm:$0xff]
  %v1067 = vld [vmem:[%s3 + $0x190] sm:$0xff]
  %v1068 = vld [vmem:[%s3 + $0x198] sm:$0xff]
  %v1069 = vld [vmem:[%s3 + $0x1a0] sm:$0xff]
  %v1070 = vld [vmem:[%s3 + $0x1a8] sm:$0xff]
  %v1071 = vld [vmem:[%s3 + $0x1b0] sm:$0xff]
  %v1072 = vld [vmem:[%s3 + $0x1b8] sm:$0xff]
  %v1073 = vld [vmem:[%s3 + $0x1c0] sm:$0xff]
  %v1074 = vld [vmem:[%s3 + $0x1c8] sm:$0xff]
  %v1075 = vld [vmem:[%s3 + $0x1d0] sm:$0xff]
  %v1076 = vld [vmem:[%s3 + $0x1d8] sm:$0xff]
  %v1077 = vld [vmem:[%s3 + $0x1e0] sm:$0xff]
  %v1078 = vld [vmem:[%s3 + $0x1e8] sm:$0xff]
  %v1079 = vld [vmem:[%s3 + $0x1f0] sm:$0xff]
  %v1080 = vld [vmem:[%s3 + $0x1f8] sm:$0xff]
  %1081 = vmatprep.subr.mxu0 %v1018
  %1082 = vmatpush1.msra.mxu0 %v1017
  %1083 = vmatprep.subr.mxu0 %v1022
  %1084 = vmatpush1.msra.mxu0 %v1021
  %1085 = vmatprep.subr.mxu0 %v1026
  %1086 = vmatpush1.msra.mxu0 %v1025
  %1087 = vmatprep.subr.mxu0 %v1030
  %1088 = vmatpush1.msra.mxu0 %v1029
  %1089 = vmatprep.subr.mxu0 %v1034
  %1090 = vmatpush1.msra.mxu0 %v1033
  %1091 = vmatprep.subr.mxu0 %v1038
  %1092 = vmatpush1.msra.mxu0 %v1037
  %1093 = vmatprep.subr.mxu0 %v1042
  %1094 = vmatpush1.msra.mxu0 %v1041
  %1095 = vmatprep.subr.mxu0 %v1046
  %1096 = vmatpush1.msra.mxu0 %v1045
  %1097 = vmatprep.subr.mxu0 %v1050
  %1098 = vmatpush1.msra.mxu0 %v1049
  %1099 = vmatprep.subr.mxu0 %v1054
  %1100 = vmatpush1.msra.mxu0 %v1053
  %1101 = vmatprep.subr.mxu0 %v1058
  %1102 = vmatpush1.msra.mxu0 %v1057
  %1103 = vmatprep.subr.mxu0 %v1062
  %1104 = vmatpush1.msra.mxu0 %v1061
  %1105 = vmatprep.subr.mxu0 %v1066
  %1106 = vmatpush1.msra.mxu0 %v1065
  %1107 = vmatprep.subr.mxu0 %v1070
  %1108 = vmatpush1.msra.mxu0 %v1069
  %1109 = vmatprep.subr.mxu0 %v1074
  %1110 = vmatpush1.msra.mxu0 %v1073
  %1111 = vmatprep.subr.mxu0 %v1078
  %1112 = vmatpush1.msra.mxu0 %v1077
  %1113 = vmatprep.subr.mxu0 0.0
  %1114 = vmatpush1.msra.mxu0 0.0
  %1115 = vmatprep.subr.mxu0 0.0
  %1116 = vmatpush1.msra.mxu0 0.0
  %1117 = vmatprep.subr.mxu0 0.0
  %1118 = vmatpush1.msra.mxu0 0.0
  %1119 = vmatprep.subr.mxu0 0.0
  %1120 = vmatpush1.msra.mxu0 0.0
  %1121 = vmatprep.subr.mxu0 0.0
  %1122 = vmatpush1.msra.mxu0 0.0
  %1123 = vmatprep.subr.mxu0 0.0
  %1124 = vmatpush1.msra.mxu0 0.0
  %1125 = vmatprep.subr.mxu0 0.0
  %1126 = vmatpush1.msra.mxu0 0.0
  %1127 = vmatprep.subr.mxu0 0.0
  %1128 = vmatpush1.msra.mxu0 0.0
  %1129 = vmatprep.subr.mxu0 0.0
  %1130 = vmatpush1.msra.mxu0 0.0
  %1131 = vmatprep.subr.mxu0 0.0
  %1132 = vmatpush1.msra.mxu0 0.0
  %1133 = vmatprep.subr.mxu0 0.0
  %1134 = vmatpush1.msra.mxu0 0.0
  %1135 = vmatprep.subr.mxu0 0.0
  %1136 = vmatpush1.msra.mxu0 0.0
  %1137 = vmatprep.subr.mxu0 0.0
  %1138 = vmatpush1.msra.mxu0 0.0
  %1139 = vmatprep.subr.mxu0 0.0
  %1140 = vmatpush1.msra.mxu0 0.0
  %1141 = vmatprep.subr.mxu0 0.0
  %1142 = vmatpush1.msra.mxu0 0.0
  %1143 = vmatprep.subr.mxu0 0.0
  %1144 = vmatpush1.msra.mxu0 0.0
  %1145 = vmatprep.mubr.f32.mxu0 0.0
  %1146 = vmatmul.mubr.f32.gmra.mrb[0].mxu0 %v992
  %v1147 = vpop.f32.mrb[0].mxu0
  %v1148 = vadd.f32 0.0, %v1147
  %v1149 = vpop.f32.mrb[0].mxu0
  %v1150 = vadd.f32 0.0, %v1149
  %1151 = vmatprep.mubr.f32.mxu0 0.0
  %1152 = vmatmul.mubr.f32.gmra.mrb[0].mxu0 %v993
  %v1153 = vpop.f32.mrb[0].mxu0
  %v1154 = vadd.f32 0.0, %v1153
  %v1155 = vpop.f32.mrb[0].mxu0
  %v1156 = vadd.f32 0.0, %v1155
  %1157 = vmatprep.mubr.f32.mxu0 0.0
  %1158 = vmatmul.mubr.f32.gmra.mrb[0].mxu0 %v994
  %v1159 = vpop.f32.mrb[0].mxu0
  %v1160 = vadd.f32 0.0, %v1159
  %v1161 = vpop.f32.mrb[0].mxu0
  %v1162 = vadd.f32 0.0, %v1161
  %1163 = vmatprep.mubr.f32.mxu0 0.0
  %1164 = vmatmul.mubr.f32.gmra.mrb[0].mxu0 %v995
  %v1165 = vpop.f32.mrb[0].mxu0
  %v1166 = vadd.f32 0.0, %v1165
  %v1167 = vpop.f32.mrb[0].mxu0
  %v1168 = vadd.f32 0.0, %v1167
  %1169 = vmatprep.mubr.f32.mxu0 0.0
  %1170 = vmatmul.mubr.f32.gmra.mrb[0].mxu0 %v996
  %v1171 = vpop.f32.mrb[0].mxu0
  %v1172 = vadd.f32 0.0, %v1171
  %v1173 = vpop.f32.mrb[0].mxu0
  %v1174 = vadd.f32 0.0, %v1173
  %1175 = vmatprep.mubr.f32.mxu0 0.0
  %1176 = vmatmul.mubr.f32.gmra.mrb[0].mxu0 %v997
  %v1177 = vpop.f32.mrb[0].mxu0
  %v1178 = vadd.f32 0.0, %v1177
  %v1179 = vpop.f32.mrb[0].mxu0
  %v1180 = vadd.f32 0.0, %v1179
  %1181 = vmatprep.mubr.f32.mxu0 0.0
  %1182 = vmatmul.mubr.f32.gmra.mrb[0].mxu0 %v998
  %v1183 = vpop.f32.mrb[0].mxu0
  %v1184 = vadd.f32 0.0, %v1183
  %v1185 = vpop.f32.mrb[0].mxu0
  %v1186 = vadd.f32 0.0, %v1185
  %1187 = vmatprep.mubr.f32.mxu0 0.0
  %1188 = vmatmul.mubr.f32.gmra.mrb[0].mxu0 %v999
  %v1189 = vpop.f32.mrb[0].mxu0
  %v1190 = vadd.f32 0.0, %v1189
  %v1191 = vpop.f32.mrb[0].mxu0
  %v1192 = vadd.f32 0.0, %v1191
  %1193 = vmatprep.mubr.f32.mxu0 0.0
  %1194 = vmatmul.mubr.f32.gmra.mrb[0].mxu0 %v1000
  %v1195 = vpop.f32.mrb[0].mxu0
  %v1196 = vadd.f32 0.0, %v1195
  %v1197 = vpop.f32.mrb[0].mxu0
  %v1198 = vadd.f32 0.0, %v1197
  %1199 = vmatprep.mubr.f32.mxu0 0.0
  %1200 = vmatmul.mubr.f32.gmra.mrb[0].mxu0 %v1001
  %v1201 = vpop.f32.mrb[0].mxu0
  %v1202 = vadd.f32 0.0, %v1201
  %v1203 = vpop.f32.mrb[0].mxu0
  %v1204 = vadd.f32 0.0, %v1203
  %1205 = vmatprep.mubr.f32.mxu0 0.0
  %1206 = vmatmul.mubr.f32.gmra.mrb[0].mxu0 %v1002
  %v1207 = vpop.f32.mrb[0].mxu0
  %v1208 = vadd.f32 0.0, %v1207
  %v1209 = vpop.f32.mrb[0].mxu0
  %v1210 = vadd.f32 0.0, %v1209
  %1211 = vmatprep.mubr.f32.mxu0 0.0
  %1212 = vmatmul.mubr.f32.gmra.mrb[0].mxu0 %v1003
  %v1213 = vpop.f32.mrb[0].mxu0
  %v1214 = vadd.f32 0.0, %v1213
  %v1215 = vpop.f32.mrb[0].mxu0
  %v1216 = vadd.f32 0.0, %v1215
  %1217 = vmatprep.mubr.f32.mxu0 0.0
  %1218 = vmatmul.mubr.f32.gmra.mrb[0].mxu0 %v1004
  %v1219 = vpop.f32.mrb[0].mxu0
  %v1220 = vadd.f32 0.0, %v1219
  %v1221 = vpop.f32.mrb[0].mxu0
  %v1222 = vadd.f32 0.0, %v1221
  %1223 = vmatprep.mubr.f32.mxu0 0.0
  %1224 = vmatmul.mubr.f32.gmra.mrb[0].mxu0 %v1005
  %v1225 = vpop.f32.mrb[0].mxu0
  %v1226 = vadd.f32 0.0, %v1225
  %v1227 = vpop.f32.mrb[0].mxu0
  %v1228 = vadd.f32 0.0, %v1227
  %1229 = vmatprep.mubr.f32.mxu0 0.0
  %1230 = vmatmul.mubr.f32.gmra.mrb[0].mxu0 %v1006
  %v1231 = vpop.f32.mrb[0].mxu0
  %v1232 = vadd.f32 0.0, %v1231
  %v1233 = vpop.f32.mrb[0].mxu0
  %v1234 = vadd.f32 0.0, %v1233
  %1235 = vmatprep.mubr.f32.mxu0 0.0
  %1236 = vmatmul.mubr.f32.gmra.mrb[0].mxu0 %v1007
  %v1237 = vpop.f32.mrb[0].mxu0
  %v1238 = vadd.f32 0.0, %v1237
  %v1239 = vpop.f32.mrb[0].mxu0
  %v1240 = vadd.f32 0.0, %v1239
  %1241 = vmatprep.mubr.f32.mxu0 0.0
  %1242 = vmatmul.mubr.f32.gmra.mrb[0].mxu0 %v1008
  %v1243 = vpop.f32.mrb[0].mxu0
  %v1244 = vadd.f32 0.0, %v1243
  %v1245 = vpop.f32.mrb[0].mxu0
  %v1246 = vadd.f32 0.0, %v1245
  %1247 = vmatprep.mubr.f32.mxu0 0.0
  %1248 = vmatmul.mubr.f32.gmra.mrb[0].mxu0 %v1009
  %v1249 = vpop.f32.mrb[0].mxu0
  %v1250 = vadd.f32 0.0, %v1249
  %v1251 = vpop.f32.mrb[0].mxu0
  %v1252 = vadd.f32 0.0, %v1251
  %1253 = vmatprep.mubr.f32.mxu0 0.0
  %1254 = vmatmul.mubr.f32.gmra.mrb[0].mxu0 %v1010
  %v1255 = vpop.f32.mrb[0].mxu0
  %v1256 = vadd.f32 0.0, %v1255
  %v1257 = vpop.f32.mrb[0].mxu0
  %v1258 = vadd.f32 0.0, %v1257
  %1259 = vmatprep.mubr.f32.mxu0 0.0
  %1260 = vmatmul.mubr.f32.gmra.mrb[0].mxu0 %v1011
  %v1261 = vpop.f32.mrb[0].mxu0
  %v1262 = vadd.f32 0.0, %v1261
  %v1263 = vpop.f32.mrb[0].mxu0
  %v1264 = vadd.f32 0.0, %v1263
  %1265 = vmatprep.mubr.f32.mxu0 0.0
  %1266 = vmatmul.mubr.f32.gmra.mrb[0].mxu0 %v1012
  %v1267 = vpop.f32.mrb[0].mxu0
  %v1268 = vadd.f32 0.0, %v1267
  %v1269 = vpop.f32.mrb[0].mxu0
  %v1270 = vadd.f32 0.0, %v1269
  %1271 = vmatprep.mubr.f32.mxu0 0.0
  %1272 = vmatmul.mubr.f32.gmra.mrb[0].mxu0 %v1013
  %v1273 = vpop.f32.mrb[0].mxu0
  %v1274 = vadd.f32 0.0, %v1273
  %v1275 = vpop.f32.mrb[0].mxu0
  %v1276 = vadd.f32 0.0, %v1275
  %1277 = vmatprep.mubr.f32.mxu0 0.0
  %1278 = vmatmul.mubr.f32.gmra.mrb[0].mxu0 %v1014
  %v1279 = vpop.f32.mrb[0].mxu0
  %v1280 = vadd.f32 0.0, %v1279
  %v1281 = vpop.f32.mrb[0].mxu0
  %v1282 = vadd.f32 0.0, %v1281
  %1283 = vmatprep.mubr.f32.mxu0 0.0
  %1284 = vmatmul.mubr.f32.gmra.mrb[0].mxu0 %v1015
  %v1285 = vpop.f32.mrb[0].mxu0
  %v1286 = vadd.f32 0.0, %v1285
  %v1287 = vpop.f32.mrb[0].mxu0
  %v1288 = vadd.f32 0.0, %v1287
  %1289 = vmatprep.mubr.f32.mxu0 0.0
  %1290 = vmatmul.mubr.f32.gmra.mrb[0].mxu0 %v1016
  %v1291 = vpop.f32.mrb[0].mxu0
  %v1292 = vadd.f32 0.0, %v1291
  %v1293 = vpop.f32.mrb[0].mxu0
  %v1294 = vadd.f32 0.0, %v1293
  %1295 = vdwg.mxu0
  %1296 = vmatprep.subr.mxu0 %v1020
  %1297 = vmatpush1.msra.mxu0 %v1019
  %1298 = vmatprep.subr.mxu0 %v1024
  %1299 = vmatpush1.msra.mxu0 %v1023
  %1300 = vmatprep.subr.mxu0 %v1028
  %1301 = vmatpush1.msra.mxu0 %v1027
  %1302 = vmatprep.subr.mxu0 %v1032
  %1303 = vmatpush1.msra.mxu0 %v1031
  %1304 = vmatprep.subr.mxu0 %v1036
  %1305 = vmatpush1.msra.mxu0 %v1035
  %1306 = vmatprep.subr.mxu0 %v1040
  %1307 = vmatpush1.msra.mxu0 %v1039
  %1308 = vmatprep.subr.mxu0 %v1044
  %1309 = vmatpush1.msra.mxu0 %v1043
  %1310 = vmatprep.subr.mxu0 %v1048
  %1311 = vmatpush1.msra.mxu0 %v1047
  %1312 = vmatprep.subr.mxu0 %v1052
  %1313 = vmatpush1.msra.mxu0 %v1051
  %1314 = vmatprep.subr.mxu0 %v1056
  %1315 = vmatpush1.msra.mxu0 %v1055
  %1316 = vmatprep.subr.mxu0 %v1060
  %1317 = vmatpush1.msra.mxu0 %v1059
  %1318 = vmatprep.subr.mxu0 %v1064
  %1319 = vmatpush1.msra.mxu0 %v1063
  %1320 = vmatprep.subr.mxu0 %v1068
  %1321 = vmatpush1.msra.mxu0 %v1067
  %1322 = vmatprep.subr.mxu0 %v1072
  %1323 = vmatpush1.msra.mxu0 %v1071
  %1324 = vmatprep.subr.mxu0 %v1076
  %1325 = vmatpush1.msra.mxu0 %v1075
  %1326 = vmatprep.subr.mxu0 %v1080
  %1327 = vmatpush1.msra.mxu0 %v1079
  %1328 = vmatprep.subr.mxu0 0.0
  %1329 = vmatpush1.msra.mxu0 0.0
  %1330 = vmatprep.subr.mxu0 0.0
  %1331 = vmatpush1.msra.mxu0 0.0
  %1332 = vmatprep.subr.mxu0 0.0
  %1333 = vmatpush1.msra.mxu0 0.0
  %1334 = vmatprep.subr.mxu0 0.0
  %1335 = vmatpush1.msra.mxu0 0.0
  %1336 = vmatprep.subr.mxu0 0.0
  %1337 = vmatpush1.msra.mxu0 0.0
  %1338 = vmatprep.subr.mxu0 0.0
  %1339 = vmatpush1.msra.mxu0 0.0
  %1340 = vmatprep.subr.mxu0 0.0
  %1341 = vmatpush1.msra.mxu0 0.0
  %1342 = vmatprep.subr.mxu0 0.0
  %1343 = vmatpush1.msra.mxu0 0.0
  %1344 = vmatprep.subr.mxu0 0.0
  %1345 = vmatpush1.msra.mxu0 0.0
  %1346 = vmatprep.subr.mxu0 0.0
  %1347 = vmatpush1.msra.mxu0 0.0
  %1348 = vmatprep.subr.mxu0 0.0
  %1349 = vmatpush1.msra.mxu0 0.0
  %1350 = vmatprep.subr.mxu0 0.0
  %1351 = vmatpush1.msra.mxu0 0.0
  %1352 = vmatprep.subr.mxu0 0.0
  %1353 = vmatpush1.msra.mxu0 0.0
  %1354 = vmatprep.subr.mxu0 0.0
  %1355 = vmatpush1.msra.mxu0 0.0
  %1356 = vmatprep.subr.mxu0 0.0
  %1357 = vmatpush1.msra.mxu0 0.0
  %1358 = vmatprep.subr.mxu0 0.0
  %1359 = vmatpush1.msra.mxu0 0.0
  %1360 = vmatprep.mubr.f32.mxu0 0.0
  %1361 = vmatmul.mubr.f32.gmra.mrb[0].mxu0 %v992
  %v1362 = vpop.f32.mrb[0].mxu0
  %v1363 = vadd.f32 0.0, %v1362
  %v1364 = vpop.f32.mrb[0].mxu0
  %v1365 = vadd.f32 0.0, %v1364
  %1366 = vmatprep.mubr.f32.mxu0 0.0
  %1367 = vmatmul.mubr.f32.gmra.mrb[0].mxu0 %v993
  %v1368 = vpop.f32.mrb[0].mxu0
  %v1369 = vadd.f32 0.0, %v1368
  %v1370 = vpop.f32.mrb[0].mxu0
  %v1371 = vadd.f32 0.0, %v1370
  %1372 = vmatprep.mubr.f32.mxu0 0.0
  %1373 = vmatmul.mubr.f32.gmra.mrb[0].mxu0 %v994
  %v1374 = vpop.f32.mrb[0].mxu0
  %v1375 = vadd.f32 0.0, %v1374
  %v1376 = vpop.f32.mrb[0].mxu0
  %v1377 = vadd.f32 0.0, %v1376
  %1378 = vmatprep.mubr.f32.mxu0 0.0
  %1379 = vmatmul.mubr.f32.gmra.mrb[0].mxu0 %v995
  %v1380 = vpop.f32.mrb[0].mxu0
  %v1381 = vadd.f32 0.0, %v1380
  %v1382 = vpop.f32.mrb[0].mxu0
  %v1383 = vadd.f32 0.0, %v1382
  %1384 = vmatprep.mubr.f32.mxu0 0.0
  %1385 = vmatmul.mubr.f32.gmra.mrb[0].mxu0 %v996
  %v1386 = vpop.f32.mrb[0].mxu0
  %v1387 = vadd.f32 0.0, %v1386
  %v1388 = vpop.f32.mrb[0].mxu0
  %v1389 = vadd.f32 0.0, %v1388
  %1390 = vmatprep.mubr.f32.mxu0 0.0
  %1391 = vmatmul.mubr.f32.gmra.mrb[0].mxu0 %v997
  %v1392 = vpop.f32.mrb[0].mxu0
  %v1393 = vadd.f32 0.0, %v1392
  %v1394 = vpop.f32.mrb[0].mxu0
  %v1395 = vadd.f32 0.0, %v1394
  %1396 = vmatprep.mubr.f32.mxu0 0.0
  %1397 = vmatmul.mubr.f32.gmra.mrb[0].mxu0 %v998
  %v1398 = vpop.f32.mrb[0].mxu0
  %v1399 = vadd.f32 0.0, %v1398
  %v1400 = vpop.f32.mrb[0].mxu0
  %v1401 = vadd.f32 0.0, %v1400
  %1402 = vmatprep.mubr.f32.mxu0 0.0
  %1403 = vmatmul.mubr.f32.gmra.mrb[0].mxu0 %v999
  %v1404 = vpop.f32.mrb[0].mxu0
  %v1405 = vadd.f32 0.0, %v1404
  %v1406 = vpop.f32.mrb[0].mxu0
  %v1407 = vadd.f32 0.0, %v1406
  %1408 = vmatprep.mubr.f32.mxu0 0.0
  %1409 = vmatmul.mubr.f32.gmra.mrb[0].mxu0 %v1000
  %v1410 = vpop.f32.mrb[0].mxu0
  %v1411 = vadd.f32 0.0, %v1410
  %v1412 = vpop.f32.mrb[0].mxu0
  %v1413 = vadd.f32 0.0, %v1412
  %1414 = vmatprep.mubr.f32.mxu0 0.0
  %1415 = vmatmul.mubr.f32.gmra.mrb[0].mxu0 %v1001
  %v1416 = vpop.f32.mrb[0].mxu0
  %v1417 = vadd.f32 0.0, %v1416
  %v1418 = vpop.f32.mrb[0].mxu0
  %v1419 = vadd.f32 0.0, %v1418
  %1420 = vmatprep.mubr.f32.mxu0 0.0
  %1421 = vmatmul.mubr.f32.gmra.mrb[0].mxu0 %v1002
  %v1422 = vpop.f32.mrb[0].mxu0
  %v1423 = vadd.f32 0.0, %v1422
  %v1424 = vpop.f32.mrb[0].mxu0
  %v1425 = vadd.f32 0.0, %v1424
  %1426 = vmatprep.mubr.f32.mxu0 0.0
  %1427 = vmatmul.mubr.f32.gmra.mrb[0].mxu0 %v1003
  %v1428 = vpop.f32.mrb[0].mxu0
  %v1429 = vadd.f32 0.0, %v1428
  %v1430 = vpop.f32.mrb[0].mxu0
  %v1431 = vadd.f32 0.0, %v1430
  %1432 = vmatprep.mubr.f32.mxu0 0.0
  %1433 = vmatmul.mubr.f32.gmra.mrb[0].mxu0 %v1004
  %v1434 = vpop.f32.mrb[0].mxu0
  %v1435 = vadd.f32 0.0, %v1434
  %v1436 = vpop.f32.mrb[0].mxu0
  %v1437 = vadd.f32 0.0, %v1436
  %1438 = vmatprep.mubr.f32.mxu0 0.0
  %1439 = vmatmul.mubr.f32.gmra.mrb[0].mxu0 %v1005
  %v1440 = vpop.f32.mrb[0].mxu0
  %v1441 = vadd.f32 0.0, %v1440
  %v1442 = vpop.f32.mrb[0].mxu0
  %v1443 = vadd.f32 0.0, %v1442
  %1444 = vmatprep.mubr.f32.mxu0 0.0
  %1445 = vmatmul.mubr.f32.gmra.mrb[0].mxu0 %v1006
  %v1446 = vpop.f32.mrb[0].mxu0
  %v1447 = vadd.f32 0.0, %v1446
  %v1448 = vpop.f32.mrb[0].mxu0
  %v1449 = vadd.f32 0.0, %v1448
  %1450 = vmatprep.mubr.f32.mxu0 0.0
  %1451 = vmatmul.mubr.f32.gmra.mrb[0].mxu0 %v1007
  %v1452 = vpop.f32.mrb[0].mxu0
  %v1453 = vadd.f32 0.0, %v1452
  %v1454 = vpop.f32.mrb[0].mxu0
  %v1455 = vadd.f32 0.0, %v1454
  %1456 = vmatprep.mubr.f32.mxu0 0.0
  %1457 = vmatmul.mubr.f32.gmra.mrb[0].mxu0 %v1008
  %v1458 = vpop.f32.mrb[0].mxu0
  %v1459 = vadd.f32 0.0, %v1458
  %v1460 = vpop.f32.mrb[0].mxu0
  %v1461 = vadd.f32 0.0, %v1460
  %1462 = vmatprep.mubr.f32.mxu0 0.0
  %1463 = vmatmul.mubr.f32.gmra.mrb[0].mxu0 %v1009
  %v1464 = vpop.f32.mrb[0].mxu0
  %v1465 = vadd.f32 0.0, %v1464
  %v1466 = vpop.f32.mrb[0].mxu0
  %v1467 = vadd.f32 0.0, %v1466
  %1468 = vmatprep.mubr.f32.mxu0 0.0
  %1469 = vmatmul.mubr.f32.gmra.mrb[0].mxu0 %v1010
  %v1470 = vpop.f32.mrb[0].mxu0
  %v1471 = vadd.f32 0.0, %v1470
  %v1472 = vpop.f32.mrb[0].mxu0
  %v1473 = vadd.f32 0.0, %v1472
  %1474 = vmatprep.mubr.f32.mxu0 0.0
  %1475 = vmatmul.mubr.f32.gmra.mrb[0].mxu0 %v1011
  %v1476 = vpop.f32.mrb[0].mxu0
  %v1477 = vadd.f32 0.0, %v1476
  %v1478 = vpop.f32.mrb[0].mxu0
  %v1479 = vadd.f32 0.0, %v1478
  %1480 = vmatprep.mubr.f32.mxu0 0.0
  %1481 = vmatmul.mubr.f32.gmra.mrb[0].mxu0 %v1012
  %v1482 = vpop.f32.mrb[0].mxu0
  %v1483 = vadd.f32 0.0, %v1482
  %v1484 = vpop.f32.mrb[0].mxu0
  %v1485 = vadd.f32 0.0, %v1484
  %1486 = vmatprep.mubr.f32.mxu0 0.0
  %1487 = vmatmul.mubr.f32.gmra.mrb[0].mxu0 %v1013
  %v1488 = vpop.f32.mrb[0].mxu0
  %v1489 = vadd.f32 0.0, %v1488
  %v1490 = vpop.f32.mrb[0].mxu0
  %v1491 = vadd.f32 0.0, %v1490
  %1492 = vmatprep.mubr.f32.mxu0 0.0
  %1493 = vmatmul.mubr.f32.gmra.mrb[0].mxu0 %v1014
  %v1494 = vpop.f32.mrb[0].mxu0
  %v1495 = vadd.f32 0.0, %v1494
  %v1496 = vpop.f32.mrb[0].mxu0
  %v1497 = vadd.f32 0.0, %v1496
  %1498 = vmatprep.mubr.f32.mxu0 0.0
  %1499 = vmatmul.mubr.f32.gmra.mrb[0].mxu0 %v1015
  %v1500 = vpop.f32.mrb[0].mxu0
  %v1501 = vadd.f32 0.0, %v1500
  %v1502 = vpop.f32.mrb[0].mxu0
  %v1503 = vadd.f32 0.0, %v1502
  %1504 = vmatprep.mubr.f32.mxu0 0.0
  %1505 = vmatmul.mubr.f32.gmra.mrb[0].mxu0 %v1016
  %v1506 = vpop.f32.mrb[0].mxu0
  %v1507 = vadd.f32 0.0, %v1506
  %v1508 = vpop.f32.mrb[0].mxu0
  %v1509 = vadd.f32 0.0, %v1508
  %1510 = vdwg.mxu0
  %v1511 = vld [vmem:[%s5] sm:$0xff]
  %v1512 = vld [vmem:[%s5 + $0x8] sm:$0xff]
  %v1513 = vld [vmem:[%s4] sm:$0xff]
  %v1514 = vld [vmem:[%s4 + $0x8] sm:$0xff]
  %v1515 = vld [vmem:[%s4 + $0x10] sm:$0xff]
  %v1516 = vld [vmem:[%s4 + $0x18] sm:$0xff]
  %v1517 = vld [vmem:[%s4 + $0x20] sm:$0xff]
  %v1518 = vld [vmem:[%s4 + $0x28] sm:$0xff]
  %v1519 = vld [vmem:[%s4 + $0x30] sm:$0xff]
  %v1520 = vld [vmem:[%s4 + $0x38] sm:$0xff]
  %v1521 = vld [vmem:[%s4 + $0x40] sm:$0xff]
  %v1522 = vld [vmem:[%s4 + $0x48] sm:$0xff]
  %v1523 = vld [vmem:[%s4 + $0x50] sm:$0xff]
  %v1524 = vld [vmem:[%s4 + $0x58] sm:$0xff]
  %v1525 = vld [vmem:[%s4 + $0x60] sm:$0xff]
  %v1526 = vld [vmem:[%s4 + $0x68] sm:$0xff]
  %v1527 = vld [vmem:[%s4 + $0x70] sm:$0xff]
  %v1528 = vld [vmem:[%s4 + $0x78] sm:$0xff]
  %v1529 = vld [vmem:[%s4 + $0x80] sm:$0xff]
  %v1530 = vld [vmem:[%s4 + $0x88] sm:$0xff]
  %v1531 = vld [vmem:[%s4 + $0x90] sm:$0xff]
  %v1532 = vld [vmem:[%s4 + $0x98] sm:$0xff]
  %v1533 = vld [vmem:[%s4 + $0xa0] sm:$0xff]
  %v1534 = vld [vmem:[%s4 + $0xa8] sm:$0xff]
  %v1535 = vld [vmem:[%s4 + $0xb0] sm:$0xff]
  %v1536 = vld [vmem:[%s4 + $0xb8] sm:$0xff]
  %v1537 = vld [vmem:[%s4 + $0xc0] sm:$0xff]
  %v1538 = vld [vmem:[%s4 + $0xc8] sm:$0xff]
  %v1539 = vld [vmem:[%s4 + $0xd0] sm:$0xff]
  %v1540 = vld [vmem:[%s4 + $0xd8] sm:$0xff]
  %v1541 = vld [vmem:[%s4 + $0xe0] sm:$0xff]
  %v1542 = vld [vmem:[%s4 + $0xe8] sm:$0xff]
  %v1543 = vld [vmem:[%s4 + $0xf0] sm:$0xff]
  %v1544 = vld [vmem:[%s4 + $0xf8] sm:$0xff]
  %v1545 = vld [vmem:[%s4 + $0x100] sm:$0xff]
  %v1546 = vld [vmem:[%s4 + $0x108] sm:$0xff]
  %v1547 = vld [vmem:[%s4 + $0x110] sm:$0xff]
  %v1548 = vld [vmem:[%s4 + $0x118] sm:$0xff]
  %v1549 = vld [vmem:[%s4 + $0x120] sm:$0xff]
  %v1550 = vld [vmem:[%s4 + $0x128] sm:$0xff]
  %v1551 = vld [vmem:[%s4 + $0x130] sm:$0xff]
  %v1552 = vld [vmem:[%s4 + $0x138] sm:$0xff]
  %v1553 = vld [vmem:[%s4 + $0x140] sm:$0xff]
  %v1554 = vld [vmem:[%s4 + $0x148] sm:$0xff]
  %v1555 = vld [vmem:[%s4 + $0x150] sm:$0xff]
  %v1556 = vld [vmem:[%s4 + $0x158] sm:$0xff]
  %v1557 = vld [vmem:[%s4 + $0x160] sm:$0xff]
  %v1558 = vld [vmem:[%s4 + $0x168] sm:$0xff]
  %v1559 = vld [vmem:[%s4 + $0x170] sm:$0xff]
  %v1560 = vld [vmem:[%s4 + $0x178] sm:$0xff]
  %v1561 = vld [vmem:[%s4 + $0x180] sm:$0xff]
  %v1562 = vld [vmem:[%s4 + $0x188] sm:$0xff]
  %v1563 = vld [vmem:[%s4 + $0x190] sm:$0xff]
  %v1564 = vld [vmem:[%s4 + $0x198] sm:$0xff]
  %v1565 = vld [vmem:[%s4 + $0x1a0] sm:$0xff]
  %v1566 = vld [vmem:[%s4 + $0x1a8] sm:$0xff]
  %v1567 = vld [vmem:[%s4 + $0x1b0] sm:$0xff]
  %v1568 = vld [vmem:[%s4 + $0x1b8] sm:$0xff]
  %v1569 = vld [vmem:[%s4 + $0x1c0] sm:$0xff]
  %v1570 = vld [vmem:[%s4 + $0x1c8] sm:$0xff]
  %v1571 = vld [vmem:[%s4 + $0x1d0] sm:$0xff]
  %v1572 = vld [vmem:[%s4 + $0x1d8] sm:$0xff]
  %v1573 = vld [vmem:[%s4 + $0x1e0] sm:$0xff]
  %v1574 = vld [vmem:[%s4 + $0x1e8] sm:$0xff]
  %v1575 = vld [vmem:[%s4 + $0x1f0] sm:$0xff]
  %v1576 = vld [vmem:[%s4 + $0x1f8] sm:$0xff]
  %v1577 = vld [vmem:[%s4 + $0x200] sm:$0xff]
  %v1578 = vld [vmem:[%s4 + $0x208] sm:$0xff]
  %v1579 = vld [vmem:[%s4 + $0x210] sm:$0xff]
  %v1580 = vld [vmem:[%s4 + $0x218] sm:$0xff]
  %v1581 = vld [vmem:[%s4 + $0x220] sm:$0xff]
  %v1582 = vld [vmem:[%s4 + $0x228] sm:$0xff]
  %v1583 = vld [vmem:[%s4 + $0x230] sm:$0xff]
  %v1584 = vld [vmem:[%s4 + $0x238] sm:$0xff]
  %v1585 = vld [vmem:[%s4 + $0x240] sm:$0xff]
  %v1586 = vld [vmem:[%s4 + $0x248] sm:$0xff]
  %v1587 = vld [vmem:[%s4 + $0x250] sm:$0xff]
  %v1588 = vld [vmem:[%s4 + $0x258] sm:$0xff]
  %v1589 = vld [vmem:[%s4 + $0x260] sm:$0xff]
  %v1590 = vld [vmem:[%s4 + $0x268] sm:$0xff]
  %v1591 = vld [vmem:[%s4 + $0x270] sm:$0xff]
  %v1592 = vld [vmem:[%s4 + $0x278] sm:$0xff]
  %v1593 = vld [vmem:[%s4 + $0x280] sm:$0xff]
  %v1594 = vld [vmem:[%s4 + $0x288] sm:$0xff]
  %v1595 = vld [vmem:[%s4 + $0x290] sm:$0xff]
  %v1596 = vld [vmem:[%s4 + $0x298] sm:$0xff]
  %v1597 = vld [vmem:[%s4 + $0x2a0] sm:$0xff]
  %v1598 = vld [vmem:[%s4 + $0x2a8] sm:$0xff]
  %v1599 = vld [vmem:[%s4 + $0x2b0] sm:$0xff]
  %v1600 = vld [vmem:[%s4 + $0x2b8] sm:$0xff]
  %v1601 = vld [vmem:[%s4 + $0x2c0] sm:$0xff]
  %v1602 = vld [vmem:[%s4 + $0x2c8] sm:$0xff]
  %v1603 = vld [vmem:[%s4 + $0x2d0] sm:$0xff]
  %v1604 = vld [vmem:[%s4 + $0x2d8] sm:$0xff]
  %v1605 = vld [vmem:[%s4 + $0x2e0] sm:$0xff]
  %v1606 = vld [vmem:[%s4 + $0x2e8] sm:$0xff]
  %v1607 = vld [vmem:[%s4 + $0x2f0] sm:$0xff]
  %v1608 = vld [vmem:[%s4 + $0x2f8] sm:$0xff]
  %v1609 = vld [vmem:[%s4 + $0x300] sm:$0xff]
  %v1610 = vld [vmem:[%s4 + $0x308] sm:$0xff]
  %v1611 = vld [vmem:[%s4 + $0x310] sm:$0xff]
  %v1612 = vld [vmem:[%s4 + $0x318] sm:$0xff]
  %v1613 = vmul.f32 %v1148, %v1513
  %v1614 = vmul.f32 %v1150, %v1514
  %v1615 = vmul.f32 %v1363, %v1515
  %v1616 = vmul.f32 %v1365, %v1516
  %v1617 = vmul.f32 %v1154, %v1517
  %v1618 = vmul.f32 %v1156, %v1518
  %v1619 = vmul.f32 %v1369, %v1519
  %v1620 = vmul.f32 %v1371, %v1520
  %v1621 = vmul.f32 %v1160, %v1521
  %v1622 = vmul.f32 %v1162, %v1522
  %v1623 = vmul.f32 %v1375, %v1523
  %v1624 = vmul.f32 %v1377, %v1524
  %v1625 = vmul.f32 %v1166, %v1525
  %v1626 = vmul.f32 %v1168, %v1526
  %v1627 = vmul.f32 %v1381, %v1527
  %v1628 = vmul.f32 %v1383, %v1528
  %v1629 = vmul.f32 %v1172, %v1529
  %v1630 = vmul.f32 %v1174, %v1530
  %v1631 = vmul.f32 %v1387, %v1531
  %v1632 = vmul.f32 %v1389, %v1532
  %v1633 = vmul.f32 %v1178, %v1533
  %v1634 = vmul.f32 %v1180, %v1534
  %v1635 = vmul.f32 %v1393, %v1535
  %v1636 = vmul.f32 %v1395, %v1536
  %v1637 = vmul.f32 %v1184, %v1537
  %v1638 = vmul.f32 %v1186, %v1538
  %v1639 = vmul.f32 %v1399, %v1539
  %v1640 = vmul.f32 %v1401, %v1540
  %v1641 = vmul.f32 %v1190, %v1541
  %v1642 = vmul.f32 %v1192, %v1542
  %v1643 = vmul.f32 %v1405, %v1543
  %v1644 = vmul.f32 %v1407, %v1544
  %v1645 = vmul.f32 %v1196, %v1545
  %v1646 = vmul.f32 %v1198, %v1546
  %v1647 = vmul.f32 %v1411, %v1547
  %v1648 = vmul.f32 %v1413, %v1548
  %v1649 = vmul.f32 %v1202, %v1549
  %v1650 = vmul.f32 %v1204, %v1550
  %v1651 = vmul.f32 %v1417, %v1551
  %v1652 = vmul.f32 %v1419, %v1552
  %v1653 = vmul.f32 %v1208, %v1553
  %v1654 = vmul.f32 %v1210, %v1554
  %v1655 = vmul.f32 %v1423, %v1555
  %v1656 = vmul.f32 %v1425, %v1556
  %v1657 = vmul.f32 %v1214, %v1557
  %v1658 = vmul.f32 %v1216, %v1558
  %v1659 = vmul.f32 %v1429, %v1559
  %v1660 = vmul.f32 %v1431, %v1560
  %v1661 = vmul.f32 %v1220, %v1561
  %v1662 = vmul.f32 %v1222, %v1562
  %v1663 = vmul.f32 %v1435, %v1563
  %v1664 = vmul.f32 %v1437, %v1564
  %v1665 = vmul.f32 %v1226, %v1565
  %v1666 = vmul.f32 %v1228, %v1566
  %v1667 = vmul.f32 %v1441, %v1567
  %v1668 = vmul.f32 %v1443, %v1568
  %v1669 = vmul.f32 %v1232, %v1569
  %v1670 = vmul.f32 %v1234, %v1570
  %v1671 = vmul.f32 %v1447, %v1571
  %v1672 = vmul.f32 %v1449, %v1572
  %v1673 = vmul.f32 %v1238, %v1573
  %v1674 = vmul.f32 %v1240, %v1574
  %v1675 = vmul.f32 %v1453, %v1575
  %v1676 = vmul.f32 %v1455, %v1576
  %v1677 = vmul.f32 %v1244, %v1577
  %v1678 = vmul.f32 %v1246, %v1578
  %v1679 = vmul.f32 %v1459, %v1579
  %v1680 = vmul.f32 %v1461, %v1580
  %v1681 = vmul.f32 %v1250, %v1581
  %v1682 = vmul.f32 %v1252, %v1582
  %v1683 = vmul.f32 %v1465, %v1583
  %v1684 = vmul.f32 %v1467, %v1584
  %v1685 = vmul.f32 %v1256, %v1585
  %v1686 = vmul.f32 %v1258, %v1586
  %v1687 = vmul.f32 %v1471, %v1587
  %v1688 = vmul.f32 %v1473, %v1588
  %v1689 = vmul.f32 %v1262, %v1589
  %v1690 = vmul.f32 %v1264, %v1590
  %v1691 = vmul.f32 %v1477, %v1591
  %v1692 = vmul.f32 %v1479, %v1592
  %v1693 = vmul.f32 %v1268, %v1593
  %v1694 = vmul.f32 %v1270, %v1594
  %v1695 = vmul.f32 %v1483, %v1595
  %v1696 = vmul.f32 %v1485, %v1596
  %v1697 = vmul.f32 %v1274, %v1597
  %v1698 = vmul.f32 %v1276, %v1598
  %v1699 = vmul.f32 %v1489, %v1599
  %v1700 = vmul.f32 %v1491, %v1600
  %v1701 = vmul.f32 %v1280, %v1601
  %v1702 = vmul.f32 %v1282, %v1602
  %v1703 = vmul.f32 %v1495, %v1603
  %v1704 = vmul.f32 %v1497, %v1604
  %v1705 = vmul.f32 %v1286, %v1605
  %v1706 = vmul.f32 %v1288, %v1606
  %v1707 = vmul.f32 %v1501, %v1607
  %v1708 = vmul.f32 %v1503, %v1608
  %v1709 = vmul.f32 %v1292, %v1609
  %v1710 = vmul.f32 %v1294, %v1610
  %v1711 = vmul.f32 %v1507, %v1611
  %v1712 = vmul.f32 %v1509, %v1612
  %vm1713 = vcmask 588800
  %v1715 = vsel %vm1713, %v1512, 0
  %1717 = vmatprep.subr.mxu0 %v1614
  %1718 = vmatpush1.msra.mxu0 %v1613
  %1719 = vmatprep.subr.mxu0 %v1618
  %1720 = vmatpush1.msra.mxu0 %v1617
  %1721 = vmatprep.subr.mxu0 %v1622
  %1722 = vmatpush1.msra.mxu0 %v1621
  %1723 = vmatprep.subr.mxu0 %v1626
  %1724 = vmatpush1.msra.mxu0 %v1625
  %1725 = vmatprep.subr.mxu0 %v1630
  %1726 = vmatpush1.msra.mxu0 %v1629
  %1727 = vmatprep.subr.mxu0 %v1634
  %1728 = vmatpush1.msra.mxu0 %v1633
  %1729 = vmatprep.subr.mxu0 %v1638
  %1730 = vmatpush1.msra.mxu0 %v1637
  %1731 = vmatprep.subr.mxu0 %v1642
  %1732 = vmatpush1.msra.mxu0 %v1641
  %1733 = vmatprep.subr.mxu0 %v1646
  %1734 = vmatpush1.msra.mxu0 %v1645
  %1735 = vmatprep.subr.mxu0 %v1650
  %1736 = vmatpush1.msra.mxu0 %v1649
  %1737 = vmatprep.subr.mxu0 %v1654
  %1738 = vmatpush1.msra.mxu0 %v1653
  %1739 = vmatprep.subr.mxu0 %v1658
  %1740 = vmatpush1.msra.mxu0 %v1657
  %1741 = vmatprep.subr.mxu0 %v1662
  %1742 = vmatpush1.msra.mxu0 %v1661
  %1743 = vmatprep.subr.mxu0 %v1666
  %1744 = vmatpush1.msra.mxu0 %v1665
  %1745 = vmatprep.subr.mxu0 %v1670
  %1746 = vmatpush1.msra.mxu0 %v1669
  %1747 = vmatprep.subr.mxu0 %v1674
  %1748 = vmatpush1.msra.mxu0 %v1673
  %1749 = vmatprep.subr.mxu0 %v1678
  %1750 = vmatpush1.msra.mxu0 %v1677
  %1751 = vmatprep.subr.mxu0 %v1682
  %1752 = vmatpush1.msra.mxu0 %v1681
  %1753 = vmatprep.subr.mxu0 %v1686
  %1754 = vmatpush1.msra.mxu0 %v1685
  %1755 = vmatprep.subr.mxu0 %v1690
  %1756 = vmatpush1.msra.mxu0 %v1689
  %1757 = vmatprep.subr.mxu0 %v1694
  %1758 = vmatpush1.msra.mxu0 %v1693
  %1759 = vmatprep.subr.mxu0 %v1698
  %1760 = vmatpush1.msra.mxu0 %v1697
  %1761 = vmatprep.subr.mxu0 %v1702
  %1762 = vmatpush1.msra.mxu0 %v1701
  %1763 = vmatprep.subr.mxu0 %v1706
  %1764 = vmatpush1.msra.mxu0 %v1705
  %1765 = vmatprep.subr.mxu0 %v1710
  %1766 = vmatpush1.msra.mxu0 %v1709
  %1767 = vmatprep.subr.mxu0 0.0
  %1768 = vmatpush1.msra.mxu0 0.0
  %1769 = vmatprep.subr.mxu0 0.0
  %1770 = vmatpush1.msra.mxu0 0.0
  %1771 = vmatprep.subr.mxu0 0.0
  %1772 = vmatpush1.msra.mxu0 0.0
  %1773 = vmatprep.subr.mxu0 0.0
  %1774 = vmatpush1.msra.mxu0 0.0
  %1775 = vmatprep.subr.mxu0 0.0
  %1776 = vmatpush1.msra.mxu0 0.0
  %1777 = vmatprep.subr.mxu0 0.0
  %1778 = vmatpush1.msra.mxu0 0.0
  %1779 = vmatprep.subr.mxu0 0.0
  %1780 = vmatpush1.msra.mxu0 0.0
  %1781 = vmatprep.mubr.f32.mxu0 %v1715
  %1782 = vmatmul.mubr.f32.gmra.mrb[0].mxu0 %v1511
  %v1783 = vpop.f32.mrb[0].mxu0
  %v1784 = vadd.f32 0.0, %v1783
  %v1785 = vpop.f32.mrb[0].mxu0
  %v1786 = vadd.f32 0.0, %v1785
  %1787 = vdwg.mxu0
  %1788 = vmatprep.subr.mxu0 %v1616
  %1789 = vmatpush1.msra.mxu0 %v1615
  %1790 = vmatprep.subr.mxu0 %v1620
  %1791 = vmatpush1.msra.mxu0 %v1619
  %1792 = vmatprep.subr.mxu0 %v1624
  %1793 = vmatpush1.msra.mxu0 %v1623
  %1794 = vmatprep.subr.mxu0 %v1628
  %1795 = vmatpush1.msra.mxu0 %v1627
  %1796 = vmatprep.subr.mxu0 %v1632
  %1797 = vmatpush1.msra.mxu0 %v1631
  %1798 = vmatprep.subr.mxu0 %v1636
  %1799 = vmatpush1.msra.mxu0 %v1635
  %1800 = vmatprep.subr.mxu0 %v1640
  %1801 = vmatpush1.msra.mxu0 %v1639
  %1802 = vmatprep.subr.mxu0 %v1644
  %1803 = vmatpush1.msra.mxu0 %v1643
  %1804 = vmatprep.subr.mxu0 %v1648
  %1805 = vmatpush1.msra.mxu0 %v1647
  %1806 = vmatprep.subr.mxu0 %v1652
  %1807 = vmatpush1.msra.mxu0 %v1651
  %1808 = vmatprep.subr.mxu0 %v1656
  %1809 = vmatpush1.msra.mxu0 %v1655
  %1810 = vmatprep.subr.mxu0 %v1660
  %1811 = vmatpush1.msra.mxu0 %v1659
  %1812 = vmatprep.subr.mxu0 %v1664
  %1813 = vmatpush1.msra.mxu0 %v1663
  %1814 = vmatprep.subr.mxu0 %v1668
  %1815 = vmatpush1.msra.mxu0 %v1667
  %1816 = vmatprep.subr.mxu0 %v1672
  %1817 = vmatpush1.msra.mxu0 %v1671
  %1818 = vmatprep.subr.mxu0 %v1676
  %1819 = vmatpush1.msra.mxu0 %v1675
  %1820 = vmatprep.subr.mxu0 %v1680
  %1821 = vmatpush1.msra.mxu0 %v1679
  %1822 = vmatprep.subr.mxu0 %v1684
  %1823 = vmatpush1.msra.mxu0 %v1683
  %1824 = vmatprep.subr.mxu0 %v1688
  %1825 = vmatpush1.msra.mxu0 %v1687
  %1826 = vmatprep.subr.mxu0 %v1692
  %1827 = vmatpush1.msra.mxu0 %v1691
  %1828 = vmatprep.subr.mxu0 %v1696
  %1829 = vmatpush1.msra.mxu0 %v1695
  %1830 = vmatprep.subr.mxu0 %v1700
  %1831 = vmatpush1.msra.mxu0 %v1699
  %1832 = vmatprep.subr.mxu0 %v1704
  %1833 = vmatpush1.msra.mxu0 %v1703
  %1834 = vmatprep.subr.mxu0 %v1708
  %1835 = vmatpush1.msra.mxu0 %v1707
  %1836 = vmatprep.subr.mxu0 %v1712
  %1837 = vmatpush1.msra.mxu0 %v1711
  %1838 = vmatprep.subr.mxu0 0.0
  %1839 = vmatpush1.msra.mxu0 0.0
  %1840 = vmatprep.subr.mxu0 0.0
  %1841 = vmatpush1.msra.mxu0 0.0
  %1842 = vmatprep.subr.mxu0 0.0
  %1843 = vmatpush1.msra.mxu0 0.0
  %1844 = vmatprep.subr.mxu0 0.0
  %1845 = vmatpush1.msra.mxu0 0.0
  %1846 = vmatprep.subr.mxu0 0.0
  %1847 = vmatpush1.msra.mxu0 0.0
  %1848 = vmatprep.subr.mxu0 0.0
  %1849 = vmatpush1.msra.mxu0 0.0
  %1850 = vmatprep.subr.mxu0 0.0
  %1851 = vmatpush1.msra.mxu0 0.0
  %1852 = vmatprep.mubr.f32.mxu0 %v1715
  %1853 = vmatmul.mubr.f32.gmra.mrb[0].mxu0 %v1511
  %v1854 = vpop.f32.mrb[0].mxu0
  %v1855 = vadd.f32 0.0, %v1854
  %v1856 = vpop.f32.mrb[0].mxu0
  %v1857 = vadd.f32 0.0, %v1856
  %1858 = vdwg.mxu0
  %v1859 = vld [vmem:[%s6] sm:$0xff]
  %v1860 = vld [vmem:[%s6 + $0x8] sm:$0xff]
  %v1861 = vld [vmem:[%s6 + $0x10] sm:$0xff]
  %v1862 = vld [vmem:[%s6 + $0x18] sm:$0xff]
  %v1863 = vld [vmem:[%s6 + $0x20] sm:$0xff]
  %v1864 = vld [vmem:[%s6 + $0x28] sm:$0xff]
  %v1865 = vld [vmem:[%s6 + $0x30] sm:$0xff]
  %v1866 = vld [vmem:[%s6 + $0x38] sm:$0xff]
  %v1867 = vld [vmem:[%s6 + $0x40] sm:$0xff]
  %v1868 = vld [vmem:[%s6 + $0x48] sm:$0xff]
  %v1869 = vld [vmem:[%s6 + $0x50] sm:$0xff]
  %v1870 = vld [vmem:[%s6 + $0x58] sm:$0xff]
  %v1871 = vld [vmem:[%s6 + $0x60] sm:$0xff]
  %v1872 = vld [vmem:[%s6 + $0x68] sm:$0xff]
  %v1873 = vld [vmem:[%s6 + $0x70] sm:$0xff]
  %v1874 = vld [vmem:[%s6 + $0x78] sm:$0xff]
  %v1875 = vld [vmem:[%s6 + $0x80] sm:$0xff]
  %v1876 = vld [vmem:[%s6 + $0x88] sm:$0xff]
  %v1877 = vld [vmem:[%s6 + $0x90] sm:$0xff]
  %v1878 = vld [vmem:[%s6 + $0x98] sm:$0xff]
  %v1879 = vld [vmem:[%s6 + $0xa0] sm:$0xff]
  %v1880 = vld [vmem:[%s6 + $0xa8] sm:$0xff]
  %v1881 = vld [vmem:[%s6 + $0xb0] sm:$0xff]
  %v1882 = vld [vmem:[%s6 + $0xb8] sm:$0xff]
  %v1883 = vld [vmem:[%s6 + $0xc0] sm:$0xff]
  %v1884 = vld [vmem:[%s6 + $0xc8] sm:$0xff]
  %v1885 = vld [vmem:[%s6 + $0xd0] sm:$0xff]
  %v1886 = vld [vmem:[%s6 + $0xd8] sm:$0xff]
  %v1887 = vld [vmem:[%s6 + $0xe0] sm:$0xff]
  %v1888 = vld [vmem:[%s6 + $0xe8] sm:$0xff]
  %v1889 = vld [vmem:[%s6 + $0xf0] sm:$0xff]
  %v1890 = vld [vmem:[%s6 + $0xf8] sm:$0xff]
  %v1891 = vld [vmem:[%s6 + $0x100] sm:$0xff]
  %v1892 = vld [vmem:[%s6 + $0x108] sm:$0xff]
  %v1893 = vld [vmem:[%s6 + $0x110] sm:$0xff]
  %v1894 = vld [vmem:[%s6 + $0x118] sm:$0xff]
  %v1895 = vld [vmem:[%s6 + $0x120] sm:$0xff]
  %v1896 = vld [vmem:[%s6 + $0x128] sm:$0xff]
  %v1897 = vld [vmem:[%s6 + $0x130] sm:$0xff]
  %v1898 = vld [vmem:[%s6 + $0x138] sm:$0xff]
  %v1899 = vld [vmem:[%s6 + $0x140] sm:$0xff]
  %v1900 = vld [vmem:[%s6 + $0x148] sm:$0xff]
  %v1901 = vld [vmem:[%s6 + $0x150] sm:$0xff]
  %v1902 = vld [vmem:[%s6 + $0x158] sm:$0xff]
  %v1903 = vld [vmem:[%s6 + $0x160] sm:$0xff]
  %v1904 = vld [vmem:[%s6 + $0x168] sm:$0xff]
  %v1905 = vld [vmem:[%s6 + $0x170] sm:$0xff]
  %v1906 = vld [vmem:[%s6 + $0x178] sm:$0xff]
  %v1907 = vld [vmem:[%s6 + $0x180] sm:$0xff]
  %v1908 = vld [vmem:[%s6 + $0x188] sm:$0xff]
  %v1909 = vld [vmem:[%s6 + $0x190] sm:$0xff]
  %v1910 = vld [vmem:[%s6 + $0x198] sm:$0xff]
  %v1911 = vld [vmem:[%s6 + $0x1a0] sm:$0xff]
  %v1912 = vld [vmem:[%s6 + $0x1a8] sm:$0xff]
  %v1913 = vld [vmem:[%s6 + $0x1b0] sm:$0xff]
  %v1914 = vld [vmem:[%s6 + $0x1b8] sm:$0xff]
  %v1915 = vld [vmem:[%s6 + $0x1c0] sm:$0xff]
  %v1916 = vld [vmem:[%s6 + $0x1c8] sm:$0xff]
  %v1917 = vld [vmem:[%s6 + $0x1d0] sm:$0xff]
  %v1918 = vld [vmem:[%s6 + $0x1d8] sm:$0xff]
  %v1919 = vld [vmem:[%s6 + $0x1e0] sm:$0xff]
  %v1920 = vld [vmem:[%s6 + $0x1e8] sm:$0xff]
  %v1921 = vld [vmem:[%s6 + $0x1f0] sm:$0xff]
  %v1922 = vld [vmem:[%s6 + $0x1f8] sm:$0xff]
  %v1923 = vld [vmem:[%s7] sm:$0x1]
  %v1925 = vlaneseq
  %v1926 = vshrl.u32 %v1925, 7
  %v1927 = vsub.s32 0, %v1926
  %v1928 = vrot.slane %v1923, %v1927
  %1930 = vmatprep.subr.mxu0 0.0
  %1931 = vmatpush1.msra.mxu0 %v1859
  %1932 = vmatprep.subr.mxu0 0.0
  %1933 = vmatpush1.msra.mxu0 %v1860
  %1934 = vmatprep.subr.mxu0 0.0
  %1935 = vmatpush1.msra.mxu0 %v1861
  %1936 = vmatprep.subr.mxu0 0.0
  %1937 = vmatpush1.msra.mxu0 %v1862
  %1938 = vmatprep.subr.mxu0 0.0
  %1939 = vmatpush1.msra.mxu0 %v1863
  %1940 = vmatprep.subr.mxu0 0.0
  %1941 = vmatpush1.msra.mxu0 %v1864
  %1942 = vmatprep.subr.mxu0 0.0
  %1943 = vmatpush1.msra.mxu0 %v1865
  %1944 = vmatprep.subr.mxu0 0.0
  %1945 = vmatpush1.msra.mxu0 %v1866
  %1946 = vmatprep.subr.mxu0 0.0
  %1947 = vmatpush1.msra.mxu0 %v1867
  %1948 = vmatprep.subr.mxu0 0.0
  %1949 = vmatpush1.msra.mxu0 %v1868
  %1950 = vmatprep.subr.mxu0 0.0
  %1951 = vmatpush1.msra.mxu0 %v1869
  %1952 = vmatprep.subr.mxu0 0.0
  %1953 = vmatpush1.msra.mxu0 %v1870
  %1954 = vmatprep.subr.mxu0 0.0
  %1955 = vmatpush1.msra.mxu0 %v1871
  %1956 = vmatprep.subr.mxu0 0.0
  %1957 = vmatpush1.msra.mxu0 %v1872
  %1958 = vmatprep.subr.mxu0 0.0
  %1959 = vmatpush1.msra.mxu0 %v1873
  %1960 = vmatprep.subr.mxu0 0.0
  %1961 = vmatpush1.msra.mxu0 %v1874
  %1962 = vmatprep.subr.mxu0 0.0
  %1963 = vmatpush1.msra.mxu0 %v1875
  %1964 = vmatprep.subr.mxu0 0.0
  %1965 = vmatpush1.msra.mxu0 %v1876
  %1966 = vmatprep.subr.mxu0 0.0
  %1967 = vmatpush1.msra.mxu0 %v1877
  %1968 = vmatprep.subr.mxu0 0.0
  %1969 = vmatpush1.msra.mxu0 %v1878
  %1970 = vmatprep.subr.mxu0 0.0
  %1971 = vmatpush1.msra.mxu0 %v1879
  %1972 = vmatprep.subr.mxu0 0.0
  %1973 = vmatpush1.msra.mxu0 %v1880
  %1974 = vmatprep.subr.mxu0 0.0
  %1975 = vmatpush1.msra.mxu0 %v1881
  %1976 = vmatprep.subr.mxu0 0.0
  %1977 = vmatpush1.msra.mxu0 %v1882
  %1978 = vmatprep.subr.mxu0 0.0
  %1979 = vmatpush1.msra.mxu0 %v1883
  %1980 = vmatprep.subr.mxu0 0.0
  %1981 = vmatpush1.msra.mxu0 %v1884
  %1982 = vmatprep.subr.mxu0 0.0
  %1983 = vmatpush1.msra.mxu0 %v1885
  %1984 = vmatprep.subr.mxu0 0.0
  %1985 = vmatpush1.msra.mxu0 %v1886
  %1986 = vmatprep.subr.mxu0 0.0
  %1987 = vmatpush1.msra.mxu0 %v1887
  %1988 = vmatprep.subr.mxu0 0.0
  %1989 = vmatpush1.msra.mxu0 %v1888
  %1990 = vmatprep.subr.mxu0 0.0
  %1991 = vmatpush1.msra.mxu0 %v1889
  %1992 = vmatprep.subr.mxu0 0.0
  %1993 = vmatpush1.msra.mxu0 %v1890
  %1994 = vmatprep.mubr.f32.mxu0 %v1786
  %1995 = vmatmul.mubr.f32.gmra.mrb[0].mxu0 %v1784
  %v1996 = vpop.f32.mrb[0].mxu0
  %v1997 = vadd.f32 %v1928, %v1996
  %v1998 = vpop.f32.mrb[0].mxu0
  %1999 = vdwg.mxu0
  %2000 = vmatprep.subr.mxu0 0.0
  %2001 = vmatpush1.msra.mxu0 %v1891
  %2002 = vmatprep.subr.mxu0 0.0
  %2003 = vmatpush1.msra.mxu0 %v1892
  %2004 = vmatprep.subr.mxu0 0.0
  %2005 = vmatpush1.msra.mxu0 %v1893
  %2006 = vmatprep.subr.mxu0 0.0
  %2007 = vmatpush1.msra.mxu0 %v1894
  %2008 = vmatprep.subr.mxu0 0.0
  %2009 = vmatpush1.msra.mxu0 %v1895
  %2010 = vmatprep.subr.mxu0 0.0
  %2011 = vmatpush1.msra.mxu0 %v1896
  %2012 = vmatprep.subr.mxu0 0.0
  %2013 = vmatpush1.msra.mxu0 %v1897
  %2014 = vmatprep.subr.mxu0 0.0
  %2015 = vmatpush1.msra.mxu0 %v1898
  %2016 = vmatprep.subr.mxu0 0.0
  %2017 = vmatpush1.msra.mxu0 %v1899
  %2018 = vmatprep.subr.mxu0 0.0
  %2019 = vmatpush1.msra.mxu0 %v1900
  %2020 = vmatprep.subr.mxu0 0.0
  %2021 = vmatpush1.msra.mxu0 %v1901
  %2022 = vmatprep.subr.mxu0 0.0
  %2023 = vmatpush1.msra.mxu0 %v1902
  %2024 = vmatprep.subr.mxu0 0.0
  %2025 = vmatpush1.msra.mxu0 %v1903
  %2026 = vmatprep.subr.mxu0 0.0
  %2027 = vmatpush1.msra.mxu0 %v1904
  %2028 = vmatprep.subr.mxu0 0.0
  %2029 = vmatpush1.msra.mxu0 %v1905
  %2030 = vmatprep.subr.mxu0 0.0
  %2031 = vmatpush1.msra.mxu0 %v1906
  %2032 = vmatprep.subr.mxu0 0.0
  %2033 = vmatpush1.msra.mxu0 %v1907
  %2034 = vmatprep.subr.mxu0 0.0
  %2035 = vmatpush1.msra.mxu0 %v1908
  %2036 = vmatprep.subr.mxu0 0.0
  %2037 = vmatpush1.msra.mxu0 %v1909
  %2038 = vmatprep.subr.mxu0 0.0
  %2039 = vmatpush1.msra.mxu0 %v1910
  %2040 = vmatprep.subr.mxu0 0.0
  %2041 = vmatpush1.msra.mxu0 %v1911
  %2042 = vmatprep.subr.mxu0 0.0
  %2043 = vmatpush1.msra.mxu0 %v1912
  %2044 = vmatprep.subr.mxu0 0.0
  %2045 = vmatpush1.msra.mxu0 %v1913
  %2046 = vmatprep.subr.mxu0 0.0
  %2047 = vmatpush1.msra.mxu0 %v1914
  %2048 = vmatprep.subr.mxu0 0.0
  %2049 = vmatpush1.msra.mxu0 %v1915
  %2050 = vmatprep.subr.mxu0 0.0
  %2051 = vmatpush1.msra.mxu0 %v1916
  %2052 = vmatprep.subr.mxu0 0.0
  %2053 = vmatpush1.msra.mxu0 %v1917
  %2054 = vmatprep.subr.mxu0 0.0
  %2055 = vmatpush1.msra.mxu0 %v1918
  %2056 = vmatprep.subr.mxu0 0.0
  %2057 = vmatpush1.msra.mxu0 %v1919
  %2058 = vmatprep.subr.mxu0 0.0
  %2059 = vmatpush1.msra.mxu0 %v1920
  %2060 = vmatprep.subr.mxu0 0.0
  %2061 = vmatpush1.msra.mxu0 %v1921
  %2062 = vmatprep.subr.mxu0 0.0
  %2063 = vmatpush1.msra.mxu0 %v1922
  %2064 = vmatprep.mubr.f32.mxu0 %v1857
  %2065 = vmatmul.mubr.f32.gmra.mrb[0].mxu0 %v1855
  %v2066 = vpop.f32.mrb[0].mxu0
  %v2067 = vadd.f32 %v1997, %v2066
  %v2068 = vpop.f32.mrb[0].mxu0
  %2069 = vdwg.mxu0
  %v2070 = vmax.f32 %v2067, 0.0
  %v2071 = vld [vmem:[%s8] sm:$0xff]
  %v2072 = vld [vmem:[%s8 + $0x8] sm:$0xff]
  %v2073 = vld [vmem:[%s8 + $0x10] sm:$0xff]
  %v2074 = vld [vmem:[%s8 + $0x18] sm:$0xff]
  %v2075 = vld [vmem:[%s8 + $0x20] sm:$0xff]
  %v2076 = vld [vmem:[%s8 + $0x28] sm:$0xff]
  %v2077 = vld [vmem:[%s8 + $0x30] sm:$0xff]
  %v2078 = vld [vmem:[%s8 + $0x38] sm:$0xff]
  %v2079 = vld [vmem:[%s8 + $0x40] sm:$0xff]
  %v2080 = vld [vmem:[%s8 + $0x48] sm:$0xff]
  %v2081 = vld [vmem:[%s8 + $0x50] sm:$0xff]
  %v2082 = vld [vmem:[%s8 + $0x58] sm:$0xff]
  %v2083 = vld [vmem:[%s8 + $0x60] sm:$0xff]
  %v2084 = vld [vmem:[%s8 + $0x68] sm:$0xff]
  %v2085 = vld [vmem:[%s8 + $0x70] sm:$0xff]
  %v2086 = vld [vmem:[%s8 + $0x78] sm:$0xff]
  %v2087 = vld [vmem:[%s9] sm:$0x1]
  %v2089 = vlaneseq
  %v2090 = vshrl.u32 %v2089, 7
  %v2091 = vsub.s32 0, %v2090
  %v2092 = vrot.slane %v2087, %v2091
  %2094 = vmatprep.subr.mxu0 0.0
  %2095 = vmatpush1.msra.mxu0 %v2071
  %2096 = vmatprep.subr.mxu0 0.0
  %2097 = vmatpush1.msra.mxu0 %v2072
  %2098 = vmatprep.subr.mxu0 0.0
  %2099 = vmatpush1.msra.mxu0 %v2073
  %2100 = vmatprep.subr.mxu0 0.0
  %2101 = vmatpush1.msra.mxu0 %v2074
  %2102 = vmatprep.subr.mxu0 0.0
  %2103 = vmatpush1.msra.mxu0 %v2075
  %2104 = vmatprep.subr.mxu0 0.0
  %2105 = vmatpush1.msra.mxu0 %v2076
  %2106 = vmatprep.subr.mxu0 0.0
  %2107 = vmatpush1.msra.mxu0 %v2077
  %2108 = vmatprep.subr.mxu0 0.0
  %2109 = vmatpush1.msra.mxu0 %v2078
  %2110 = vmatprep.subr.mxu0 0.0
  %2111 = vmatpush1.msra.mxu0 %v2079
  %2112 = vmatprep.subr.mxu0 0.0
  %2113 = vmatpush1.msra.mxu0 %v2080
  %2114 = vmatprep.subr.mxu0 0.0
  %2115 = vmatpush1.msra.mxu0 %v2081
  %2116 = vmatprep.subr.mxu0 0.0
  %2117 = vmatpush1.msra.mxu0 %v2082
  %2118 = vmatprep.subr.mxu0 0.0
  %2119 = vmatpush1.msra.mxu0 %v2083
  %2120 = vmatprep.subr.mxu0 0.0
  %2121 = vmatpush1.msra.mxu0 %v2084
  %2122 = vmatprep.subr.mxu0 0.0
  %2123 = vmatpush1.msra.mxu0 %v2085
  %2124 = vmatprep.subr.mxu0 0.0
  %2125 = vmatpush1.msra.mxu0 %v2086
  %2126 = vmatprep.subr.mxu0 0.0
  %2127 = vmatpush1.msra.mxu0 0.0
  %2128 = vmatprep.subr.mxu0 0.0
  %2129 = vmatpush1.msra.mxu0 0.0
  %2130 = vmatprep.subr.mxu0 0.0
  %2131 = vmatpush1.msra.mxu0 0.0
  %2132 = vmatprep.subr.mxu0 0.0
  %2133 = vmatpush1.msra.mxu0 0.0
  %2134 = vmatprep.subr.mxu0 0.0
  %2135 = vmatpush1.msra.mxu0 0.0
  %2136 = vmatprep.subr.mxu0 0.0
  %2137 = vmatpush1.msra.mxu0 0.0
  %2138 = vmatprep.subr.mxu0 0.0
  %2139 = vmatpush1.msra.mxu0 0.0
  %2140 = vmatprep.subr.mxu0 0.0
  %2141 = vmatpush1.msra.mxu0 0.0
  %2142 = vmatprep.subr.mxu0 0.0
  %2143 = vmatpush1.msra.mxu0 0.0
  %2144 = vmatprep.subr.mxu0 0.0
  %2145 = vmatpush1.msra.mxu0 0.0
  %2146 = vmatprep.subr.mxu0 0.0
  %2147 = vmatpush1.msra.mxu0 0.0
  %2148 = vmatprep.subr.mxu0 0.0
  %2149 = vmatpush1.msra.mxu0 0.0
  %2150 = vmatprep.subr.mxu0 0.0
  %2151 = vmatpush1.msra.mxu0 0.0
  %2152 = vmatprep.subr.mxu0 0.0
  %2153 = vmatpush1.msra.mxu0 0.0
  %2154 = vmatprep.subr.mxu0 0.0
  %2155 = vmatpush1.msra.mxu0 0.0
  %2156 = vmatprep.subr.mxu0 0.0
  %2157 = vmatpush1.msra.mxu0 0.0
  %2158 = vmatprep.mubr.f32.mxu0 0.0
  %2159 = vmatmul.mubr.f32.gmra.mrb[0].mxu0 %v2070
  %v2160 = vpop.f32.mrb[0].mxu0
  %v2161 = vadd.f32 %v2092, %v2160
  %v2162 = vpop.f32.mrb[0].mxu0
  %2163 = vdwg.mxu0
  %2164 = vst [vmem:[%s10] sm:$0xff] %v2161
  // Predicated region
  $region42: #{_lambda_.3} parent=0 // pred_check
    _
  $region43: #{_lambda_.3} parent=0 // pred_check_branch
    %2166 = sbr.rel (0) target = $region45
  $region44: #{_lambda_.3} parent=0 // pred_region
    _
  $region45: #{_lambda_.3} parent=0 // pred_fallthru
    _
  // Predicated region
  $region46: #{_lambda_.3} parent=0 // pred_check
    _
  $region47: #{_lambda_.3} parent=0 // pred_check_branch
    %2168 = sbr.rel (0) target = $region49
  $region48: #{_lambda_.3} parent=0 // pred_region
    _
  $region49: #{_lambda_.3} parent=0 // pred_fallthru
    _

</llo_original>
